<compile_context>
chip_gen: v5e
topology: v5e:2x2
jax: 0.10.0
libtpu: 0.0.40
codegen_flags: <defaults>
</compile_context>

<pallas_src>
import functools
import math

import numpy as np

import jax
import jax.numpy as jnp
from jax.experimental import pallas as pl
from jax.experimental.pallas import tpu as pltpu


_INV_SQRT2 = 1.0 / math.sqrt(2.0)


def _gelu(x):
    # exact (erf) GELU, matching torch.nn.functional.gelu default
    return 0.5 * x * (1.0 + jax.lax.erf(x * _INV_SQRT2))


# ---------------------------------------------------------------------------
# Truncated DFT matrices.
# TODO(synk): a general rfftn/irfftn has no Pallas TPU primitive; since only the
# retained modes matter, the FFTs are folded exactly into these matrices.
# ---------------------------------------------------------------------------
def build_dft_mats(xs, ys, tp, modes_space, modes_time, mpad):
    """Matrices replicating rfftn -> fftshift -> centred slice (forward) and the
    zero-filled irfftn (inverse) of the PyTorch FourierLayer (even xs/ys)."""
    m = modes_space
    assert xs % 2 == 0 and ys % 2 == 0, "fftshift round trip assumes even spatial dims"
    assert 2 * m <= xs and 2 * m <= ys, "modesSpace too large for spatial grid"
    assert modes_time <= tp // 2 + 1, "modesTime exceeds rfft length"

    # Frequencies selected by fftshift + centred [mid-m, mid+m) slice, in the
    # same order as the (2m, 2m, mt) weight tensor.
    kx = np.concatenate([np.arange(xs - m, xs), np.arange(0, m)]).astype(np.float64)
    ky = np.concatenate([np.arange(ys - m, ys), np.arange(0, m)]).astype(np.float64)
    kt = np.arange(modes_time, dtype=np.float64)
    KX, KY, KT = (a.ravel() for a in np.meshgrid(kx, ky, kt, indexing="ij"))
    nm = KX.size

    gx, gy, gt = (a.ravel() for a in np.meshgrid(
        np.arange(xs), np.arange(ys), np.arange(tp), indexing="ij"))
    theta = 2.0 * np.pi * (np.outer(gx, KX) / xs + np.outer(gy, KY) / ys
                           + np.outer(gt, KT) / tp)                     # (S, nm)

    s = xs * ys * tp
    fwd = np.zeros((s, 2 * mpad), np.float32)          # [cos | -sin]  (e^{-i theta})
    fwd[:, :nm] = np.cos(theta)
    fwd[:, mpad:mpad + nm] = -np.sin(theta)

    # irfftn of a spectrum zero outside the kept modes: weight 2 for strictly
    # positive time frequencies (Hermitian pair), 1 for DC / Nyquist.
    wk = np.where((KT == 0) | ((tp % 2 == 0) & (KT == tp // 2)), 1.0, 2.0)
    wk = wk / float(xs * ys * tp)
    br = np.zeros((mpad, s), np.float32)
    bi = np.zeros((mpad, s), np.float32)
    br[:nm, :] = wk[:, None] * np.cos(theta).T
    bi[:nm, :] = -(wk[:, None] * np.sin(theta).T)
    return jnp.asarray(fwd), jnp.asarray(br), jnp.asarray(bi)


# ---------------------------------------------------------------------------
# Small channels-first pointwise kernels (p Linear and q MLP); lane-dense S.
# ---------------------------------------------------------------------------
def _pointwise_kernel(x_ref, w_ref, b_ref, o_ref):
    o_ref[0] = (jnp.dot(w_ref[...], x_ref[0], preferred_element_type=jnp.float32)
                + b_ref[...])


def pointwise(x_cf, w, b):
    """out(B, Cout, S) = W(Cout, Cin) @ x(B, Cin, S) + b."""
    bsz, cin, s = x_cf.shape
    cout = w.shape[0]
    return pl.pallas_call(
        _pointwise_kernel,
        grid=(bsz,),
        in_specs=[pl.BlockSpec((1, cin, s), lambda i: (i, 0, 0)),
                  pl.BlockSpec((cout, cin), lambda i: (0, 0)),
                  pl.BlockSpec((cout, 1), lambda i: (0, 0))],
        out_specs=pl.BlockSpec((1, cout, s), lambda i: (i, 0, 0)),
        out_shape=jax.ShapeDtypeStruct((bsz, cout, s), jnp.float32),
        compiler_params=pltpu.CompilerParams(dimension_semantics=("parallel",)),
    )(x_cf, w, b)


def _mlp_kernel(x_ref, w1_ref, b1_ref, w2_ref, b2_ref, o_ref):
    t = _gelu(jnp.dot(w1_ref[...], x_ref[0], preferred_element_type=jnp.float32)
              + b1_ref[...])
    o_ref[0] = (jnp.dot(w2_ref[...], t, preferred_element_type=jnp.float32)
                + b2_ref[...])


def mlp(x_cf, w1, b1, w2, b2):
    """Fused conv1x1 -> gelu -> conv1x1 on (B, Cin, S)."""
    bsz, cin, s = x_cf.shape
    hid, cout = w1.shape[0], w2.shape[0]
    return pl.pallas_call(
        _mlp_kernel,
        grid=(bsz,),
        in_specs=[pl.BlockSpec((1, cin, s), lambda i: (i, 0, 0)),
                  pl.BlockSpec((hid, cin), lambda i: (0, 0)),
                  pl.BlockSpec((hid, 1), lambda i: (0, 0)),
                  pl.BlockSpec((cout, hid), lambda i: (0, 0)),
                  pl.BlockSpec((cout, 1), lambda i: (0, 0))],
        out_specs=pl.BlockSpec((1, cout, s), lambda i: (i, 0, 0)),
        out_shape=jax.ShapeDtypeStruct((bsz, cout, s), jnp.float32),
        compiler_params=pltpu.CompilerParams(dimension_semantics=("parallel",)),
    )(x_cf, w1, b1, w2, b2)


# ---------------------------------------------------------------------------
# The fused FNO trunk: all 4 blocks in one pallas_call, h carried in VMEM.
# ---------------------------------------------------------------------------
def _fno_trunk_kernel(h0_ref, fwd_ref, br_ref, bi_ref, wr_ref, wi_ref,
                      m1w_ref, m1b_ref, m2w_ref, m2b_ref, ww_ref, wb_ref,
                      o_ref, h_scr, *, n_blocks, mpad):
    k = pl.program_id(1)

    @pl.when(k == 0)
    def _():                                   # load this batch's activations once
        h_scr[...] = h0_ref[0]

    h = h_scr[...]                                                      # (C, S)

    # Truncated forward DFT (one K=S MXU matmul): [Re | Im] of the kept,
    # wrapped-frequency modes, zero-padded to mpad lanes.
    ft = jnp.dot(h, fwd_ref[...], preferred_element_type=jnp.float32)  # (C, 2*mpad)
    xr = ft[:, :mpad]
    xi = ft[:, mpad:]

    # Per-mode complex channel mixing: out[o,m] = sum_i x[i,m] * w[i,o,m]
    # (plain 4-mult complex product; Cin contraction on the sublane axis).
    wr = wr_ref[0]                                                      # (C, C, mpad)
    wi = wi_ref[0]
    out_r = jnp.sum(xr[None] * wr - xi[None] * wi, axis=1)              # (C, mpad)
    out_i = jnp.sum(xr[None] * wi + xi[None] * wr, axis=1)

    # Truncated inverse DFT (== irfftn of the zero-filled spectrum).
    x1 = (jnp.dot(out_r, br_ref[...], preferred_element_type=jnp.float32)
          + jnp.dot(out_i, bi_ref[...], preferred_element_type=jnp.float32))  # (C, S)

    # MLP epilogue + 1x1x1 skip conv.
    t = _gelu(jnp.dot(m1w_ref[0], x1, preferred_element_type=jnp.float32)
              + m1b_ref[0])
    y = jnp.dot(m2w_ref[0], t, preferred_element_type=jnp.float32) + m2b_ref[0]
    y = y + jnp.dot(ww_ref[0], h, preferred_element_type=jnp.float32) + wb_ref[0]

    @pl.when(k < n_blocks - 1)
    def _():                                   # blocks 0..n-2: GELU, carry in VMEM
        h_scr[...] = _gelu(y)

    @pl.when(k == n_blocks - 1)
    def _():                                   # last block: no GELU, emit to HBM
        o_ref[0] = y


def fno_trunk(h0, dft_fwd, dft_br, dft_bi, params):
    """All FNO blocks fused: grid = (batch 'parallel', block 'arbitrary')."""
    bsz, c, s = h0.shape
    n_blocks, hid = params["m1_w"].shape[0], params["m1_w"].shape[1]
    mpad = dft_br.shape[0]
    kernel = functools.partial(_fno_trunk_kernel, n_blocks=n_blocks, mpad=mpad)

    def blk_w(*shape):   # per-block (stacked) weight: new block index each step
        return pl.BlockSpec((1,) + shape, lambda i, k: (k,) + (0,) * len(shape))

    return pl.pallas_call(
        kernel,
        grid=(bsz, n_blocks),
        in_specs=[
            pl.BlockSpec((1, c, s), lambda i, k: (i, 0, 0)),       # h0 (resident per batch)
            pl.BlockSpec((s, 2 * mpad), lambda i, k: (0, 0)),      # forward DFT  (resident)
            pl.BlockSpec((mpad, s), lambda i, k: (0, 0)),          # inverse DFT, real part
            pl.BlockSpec((mpad, s), lambda i, k: (0, 0)),          # inverse DFT, imag part
            blk_w(c, c, mpad),                                     # spectral wr
            blk_w(c, c, mpad),                                     # spectral wi
            blk_w(hid, c), blk_w(hid, 1),                          # mlp_k.mlp1
            blk_w(c, hid), blk_w(c, 1),                            # mlp_k.mlp2
            blk_w(c, c), blk_w(c, 1),                              # skip conv w_k
        ],
        out_specs=pl.BlockSpec((1, c, s), lambda i, k: (i, 0, 0)),
        out_shape=jax.ShapeDtypeStruct((bsz, c, s), jnp.float32),
        scratch_shapes=[pltpu.VMEM((c, s), jnp.float32)],          # h carried across blocks
        compiler_params=pltpu.CompilerParams(
            dimension_semantics=("parallel", "arbitrary")),
    )(h0, dft_fwd, dft_br, dft_bi,
      params["swr"], params["swi"],
      params["m1_w"], params["m1_b"], params["m2_w"], params["m2_b"],
      params["w_w"], params["w_b"])


# ---------------------------------------------------------------------------
# FNOModel forward
# ---------------------------------------------------------------------------
def fno_forward(x, params, dft_fwd, dft_br, dft_bi, *, padding):
    """x: (B, X, Y, T, input_size) -> (B, X, Y, T)."""
    bsz, xs, ys, ts, fin = x.shape
    c = params["p_w"].shape[0]
    tp = ts + padding

    # p: Linear(input_size -> C), channels-first with lane-dense S.
    x_cf = jnp.transpose(x, (0, 4, 1, 2, 3)).reshape(bsz, fin, xs * ys * ts)
    h = pointwise(x_cf, params["p_w"], params["p_b"]).reshape(bsz, c, xs, ys, ts)
    if padding > 0:
        h = jnp.pad(h, ((0, 0), (0, 0), (0, 0), (0, 0), (0, padding)))

    # 4 fused FNO blocks (spectral conv + MLP + skip + GELU) in one pallas_call.
    h = fno_trunk(h.reshape(bsz, c, xs * ys * tp), dft_fwd, dft_br, dft_bi, params)

    # un-pad time, then the q MLP (C -> 4*hidden -> 1).
    h = h.reshape(bsz, c, xs, ys, tp)[..., :ts].reshape(bsz, c, xs * ys * ts)
    out = mlp(h, params["q1_w"], params["q1_b"], params["q2_w"], params["q2_b"])
    return out.reshape(bsz, xs, ys, ts)        # == permute(0,2,3,4,1).squeeze(-1)


# ---------------------------------------------------------------------------
# Pure-JAX reference (mirrors the PyTorch module op-for-op; used for self-check)
# ---------------------------------------------------------------------------
def reference_forward(x, params, *, padding, modes_space, modes_time):
    bsz, xs, ys, ts, _ = x.shape
    c = params["p_w"].shape[0]
    nm = (2 * modes_space) ** 2 * modes_time
    hp = jax.lax.Precision.HIGHEST
    m = modes_space
    tp = ts + padding

    def bias(b):
        return b[:, 0][None, :, None, None, None]

    h = jnp.einsum("bxytf,cf->bcxyt", x, params["p_w"], precision=hp) + bias(params["p_b"])
    h = jnp.pad(h, ((0, 0), (0, 0), (0, 0), (0, 0), (0, padding)))
    n_blocks = params["swr"].shape[0]
    for k in range(n_blocks):
        wr = params["swr"][k][..., :nm].reshape(c, c, 2 * m, 2 * m, modes_time)
        wi = params["swi"][k][..., :nm].reshape(c, c, 2 * m, 2 * m, modes_time)
        w = (wr + 1j * wi).astype(jnp.complex64).transpose(1, 0, 2, 3, 4)   # (in, out, ...)
        x_ft = jnp.fft.fftshift(jnp.fft.rfftn(h, axes=(-3, -2, -1)), axes=(-3, -2))
        midx, midy = xs // 2, ys // 2
        sl = x_ft[:, :, midx - m:midx + m, midy - m:midy + m, :modes_time]
        om = jnp.einsum("bixyt,ioxyt->boxyt", sl, w, precision=hp)
        out_ft = jnp.zeros(x_ft.shape[:1] + (c,) + x_ft.shape[2:], jnp.complex64)
        out_ft = out_ft.at[:, :, midx - m:midx + m, midy - m:midy + m, :modes_time].set(om)
        out_ft = jnp.fft.fftshift(out_ft, axes=(-3, -2))
        x1 = jnp.fft.irfftn(out_ft, s=(xs, ys, tp), axes=(-3, -2, -1)).astype(jnp.float32)
        t = jax.nn.gelu(jnp.einsum("hc,bcxyt->bhxyt", params["m1_w"][k], x1, precision=hp)
                        + bias(params["m1_b"][k]), approximate=False)
        y = jnp.einsum("ch,bhxyt->bcxyt", params["m2_w"][k], t, precision=hp) + bias(params["m2_b"][k])
        y = y + jnp.einsum("oc,bcxyt->boxyt", params["w_w"][k], h, precision=hp) + bias(params["w_b"][k])
        h = jax.nn.gelu(y, approximate=False) if k < n_blocks - 1 else y
    h = h[..., :ts]
    t = jax.nn.gelu(jnp.einsum("hc,bcxyt->bhxyt", params["q1_w"], h, precision=hp)
                    + bias(params["q1_b"]), approximate=False)
    out = jnp.einsum("ch,bhxyt->bcxyt", params["q2_w"], t, precision=hp) + bias(params["q2_b"])
    return out[:, 0]


# ---------------------------------------------------------------------------
# Deterministic synthetic parameters (PyTorch layouts, pre-arranged for the
# kernels: (out, in) weights; spectral weights as (out, in, Mpad) real/imag).
# ---------------------------------------------------------------------------
def init_params(key, c, hidden, modes_space, modes_time, input_size, n_blocks, mpad):
    keys = iter(jax.random.split(key, 8 + 8 * n_blocks))

    def dense(cin, cout):
        bound = 1.0 / math.sqrt(cin)
        w = jax.random.uniform(next(keys), (cout, cin), jnp.float32, -bound, bound)
        b = jax.random.uniform(next(keys), (cout, 1), jnp.float32, -bound, bound)
        return w, b

    nm = (2 * modes_space) ** 2 * modes_time

    def spectral(cin, cout):
        scale = 1.0 / (cin * cout)
        shp = (cin, cout, 2 * modes_space, 2 * modes_space, modes_time)
        wr = scale * jax.random.uniform(next(keys), shp, jnp.float32)
        wi = scale * jax.random.uniform(next(keys), shp, jnp.float32)

        def to_kernel(a):  # (in, out, 2m, 2m, mt) -> (out, in, Mpad)
            a = jnp.transpose(a, (1, 0, 2, 3, 4)).reshape(cout, cin, nm)
            return jnp.pad(a, ((0, 0), (0, 0), (0, mpad - nm)))

        return to_kernel(wr), to_kernel(wi)

    p_w, p_b = dense(input_size, c)
    stacks = {n: [] for n in ("swr", "swi", "m1_w", "m1_b", "m2_w", "m2_b", "w_w", "w_b")}
    for _ in range(n_blocks):
        swr, swi = spectral(c, c)
        m1w, m1b = dense(c, hidden)
        m2w, m2b = dense(hidden, c)
        ww, wb = dense(c, c)
        for name, v in zip(stacks, (swr, swi, m1w, m1b, m2w, m2b, ww, wb)):
            stacks[name].append(v)
    q1w, q1b = dense(c, 4 * hidden)
    q2w, q2b = dense(4 * hidden, 1)
    params = {n: jnp.stack(v) for n, v in stacks.items()}
    params.update(p_w=p_w, p_b=p_b, q1_w=q1w, q1_b=q1b, q2_w=q2w, q2_b=q2b)
    return params


if __name__ == "__main__":
    # in_neurons must equal out_neurons for the PyTorch module to be consistent.
    C = 8              # in_neurons == out_neurons
    HIDDEN = 8         # hidden_neurons
    MODES_SPACE = 2
    MODES_TIME = 3
    TIME_PADDING = 2
    INPUT_SIZE = 4
    N_BLOCKS = 4
    B, X, Y, T = 2, 8, 8, 6

    NM = (2 * MODES_SPACE) ** 2 * MODES_TIME           # 48 kept modes
    MPAD = max(128, ((NM + 127) // 128) * 128)          # lane-dense mode axis

    key = jax.random.PRNGKey(0)
    pkey, xkey = jax.random.split(key)
    params = init_params(pkey, C, HIDDEN, MODES_SPACE, MODES_TIME, INPUT_SIZE,
                         N_BLOCKS, MPAD)
    x = jax.random.normal(xkey, (B, X, Y, T, INPUT_SIZE), jnp.float32)

    TP = T + TIME_PADDING
    dft_fwd, dft_br, dft_bi = build_dft_mats(X, Y, TP, MODES_SPACE, MODES_TIME, MPAD)

    fwd = jax.jit(functools.partial(fno_forward, padding=TIME_PADDING))
    out = fwd(x, params, dft_fwd, dft_br, dft_bi)
    jax.block_until_ready(out)

    assert out.shape == (B, X, Y, T), out.shape
    assert out.dtype == jnp.float32
    assert bool(jnp.all(jnp.isfinite(out)))

    # --- self-check 1 (tight): truncated-DFT matrices vs. jnp.fft ----------
    hp = jax.lax.Precision.HIGHEST
    mm = MODES_SPACE
    hh = jax.random.normal(jax.random.PRNGKey(7), (B, C, X, Y, TP), jnp.float32)
    ft = jnp.einsum("bcs,sm->bcm", hh.reshape(B, C, -1), dft_fwd, precision=hp)
    got_r, got_i = ft[..., :NM], ft[..., MPAD:MPAD + NM]
    xf = jnp.fft.fftshift(jnp.fft.rfftn(hh, axes=(-3, -2, -1)), axes=(-3, -2))
    want = xf[:, :, X // 2 - mm:X // 2 + mm, Y // 2 - mm:Y // 2 + mm, :MODES_TIME]
    want = want.reshape(B, C, NM)
    np.testing.assert_allclose(got_r, jnp.real(want), rtol=1e-3, atol=1e-3)
    np.testing.assert_allclose(got_i, jnp.imag(want), rtol=1e-3, atol=1e-3)

    cr = jax.random.normal(jax.random.PRNGKey(8), (B, C, NM), jnp.float32)
    ci = jax.random.normal(jax.random.PRNGKey(9), (B, C, NM), jnp.float32)
    got = (jnp.einsum("bcm,ms->bcs", cr, dft_br[:NM], precision=hp)
           + jnp.einsum("bcm,ms->bcs", ci, dft_bi[:NM], precision=hp))
    full = jnp.zeros((B, C, X, Y, TP // 2 + 1), jnp.complex64)
    full = full.at[:, :, X // 2 - mm:X // 2 + mm, Y // 2 - mm:Y // 2 + mm, :MODES_TIME].set(
        (cr + 1j * ci).astype(jnp.complex64).reshape(B, C, 2 * mm, 2 * mm, MODES_TIME))
    full = jnp.fft.fftshift(full, axes=(-3, -2))
    want_b = jnp.fft.irfftn(full, s=(X, Y, TP), axes=(-3, -2, -1)).reshape(B, C, -1)
    np.testing.assert_allclose(got, want_b, rtol=1e-3, atol=1e-4)

    # --- self-check 2 (coarse wiring check): fused Pallas forward vs. a
    # plain-JAX mirror of the PyTorch module (loose bound only to stay robust
    # to MXU matmul precision; the tight math check is self-check 1 above). ---
    ref = reference_forward(x, params, padding=TIME_PADDING,
                            modes_space=MODES_SPACE, modes_time=MODES_TIME)
    err = float(jnp.max(jnp.abs(out - ref)))
    assert err < 1e-1, f"mismatch vs reference: max abs err {err}"

    print("KERNEL_OK")
</pallas_src>

<mosaic_0001>
module attributes {stable_mosaic.version = 11 : i64} {
  func.func @_pointwise_kernel(%arg0: i32, %arg1: memref<1x4x384xf32, #tpu.memory_space<vmem>>, %arg2: memref<8x4xf32, #tpu.memory_space<vmem>>, %arg3: memref<8x1xf32, #tpu.memory_space<vmem>>, %arg4: memref<1x8x384xf32, #tpu.memory_space<vmem>>) attributes {dimension_semantics = [#tpu.dimension_semantics<parallel>], iteration_bounds = array<i64: 2>, scalar_prefetch = 0 : i64, scratch_operands = 0 : i64, tpu.core_type = #tpu.core_type<tc>, window_params = [{transform_indices = @transform_0, window_bounds = array<i64: 1, 4, 384>}, {pipeline_mode = #tpu.pipeline_mode<synchronous>, transform_indices = @transform_1, window_bounds = array<i64: 8, 4>}, {pipeline_mode = #tpu.pipeline_mode<synchronous>, transform_indices = @transform_2, window_bounds = array<i64: 8, 1>}, {transform_indices = @transform_3, window_bounds = array<i64: 1, 8, 384>}]} {
    %c0 = arith.constant 0 : index
    %c0_0 = arith.constant 0 : index
    %0 = vector.load %arg2[%c0, %c0_0] : memref<8x4xf32, #tpu.memory_space<vmem>>, vector<8x4xf32>
    %c0_1 = arith.constant 0 : index
    %c0_2 = arith.constant 0 : index
    %c0_3 = arith.constant 0 : index
    %1 = vector.load %arg1[%c0_1, %c0_2, %c0_3] : memref<1x4x384xf32, #tpu.memory_space<vmem>>, vector<1x4x384xf32>
    %2 = vector.shape_cast %1 : vector<1x4x384xf32> to vector<4x384xf32>
    %cst = arith.constant dense<0.000000e+00> : vector<8x384xf32>
    %3 = tpu.matmul %0, %2, %cst {dimension_numbers = #tpu.dot_dimension_numbers<[1], [0], [0], [1], [0, 0, 1, 1], [], []>} : vector<8x4xf32>, vector<4x384xf32>, vector<8x384xf32> -> vector<8x384xf32>
    %c0_4 = arith.constant 0 : index
    %c0_5 = arith.constant 0 : index
    %4 = vector.load %arg3[%c0_4, %c0_5] : memref<8x1xf32, #tpu.memory_space<vmem>>, vector<8x1xf32>
    %5 = vector.broadcast %4 : vector<8x1xf32> to vector<8x384xf32>
    %6 = arith.addf %3, %5 : vector<8x384xf32>
    %c0_6 = arith.constant 0 : index
    %c0_7 = arith.constant 0 : index
    %c0_8 = arith.constant 0 : index
    %7 = vector.load %arg4[%c0_6, %c0_7, %c0_8] : memref<1x8x384xf32, #tpu.memory_space<vmem>>, vector<1x8x384xf32>
    %8 = vector.shape_cast %7 : vector<1x8x384xf32> to vector<8x384xf32>
    %9 = vector.shape_cast %6 : vector<8x384xf32> to vector<1x8x384xf32>
    tpu.vector_store %arg4[%c0_6, %c0_7, %c0_8], %9 {strides = array<i32>} : memref<1x8x384xf32, #tpu.memory_space<vmem>>, vector<1x8x384xf32>,
    return
  }
  func.func @transform_0(%arg0: i32) -> (i32, i32, i32) {
    %c0_i32 = arith.constant 0 : i32
    %c0_i32_0 = arith.constant 0 : i32
    %c0_i32_1 = arith.constant 0 : i32
    return %arg0, %c0_i32, %c0_i32_0 : i32, i32, i32
  }
  func.func @transform_1(%arg0: i32) -> (i32, i32) {
    %c0_i32 = arith.constant 0 : i32
    %c0_i32_0 = arith.constant 0 : i32
    %c0_i32_1 = arith.constant 0 : i32
    return %c0_i32, %c0_i32_0 : i32, i32
  }
  func.func @transform_2(%arg0: i32) -> (i32, i32) {
    %c0_i32 = arith.constant 0 : i32
    %c0_i32_0 = arith.constant 0 : i32
    %c0_i32_1 = arith.constant 0 : i32
    return %c0_i32, %c0_i32_0 : i32, i32
  }
  func.func @transform_3(%arg0: i32) -> (i32, i32, i32) {
    %c0_i32 = arith.constant 0 : i32
    %c0_i32_0 = arith.constant 0 : i32
    %c0_i32_1 = arith.constant 0 : i32
    return %arg0, %c0_i32, %c0_i32_0 : i32, i32, i32
  }
}

module attributes {stable_mosaic.version = 11 : i64} {
  func.func @_fno_trunk_kernel(%arg0: i32, %arg1: i32, %arg2: memref<1x8x512xf32, #tpu.memory_space<vmem>>, %arg3: memref<512x256xf32, #tpu.memory_space<vmem>>, %arg4: memref<128x512xf32, #tpu.memory_space<vmem>>, %arg5: memref<128x512xf32, #tpu.memory_space<vmem>>, %arg6: memref<1x8x8x128xf32, #tpu.memory_space<vmem>>, %arg7: memref<1x8x8x128xf32, #tpu.memory_space<vmem>>, %arg8: memref<1x8x8xf32, #tpu.memory_space<vmem>>, %arg9: memref<1x8x1xf32, #tpu.memory_space<vmem>>, %arg10: memref<1x8x8xf32, #tpu.memory_space<vmem>>, %arg11: memref<1x8x1xf32, #tpu.memory_space<vmem>>, %arg12: memref<1x8x8xf32, #tpu.memory_space<vmem>>, %arg13: memref<1x8x1xf32, #tpu.memory_space<vmem>>, %arg14: memref<1x8x512xf32, #tpu.memory_space<vmem>>, %arg15: memref<8x512xf32, #tpu.memory_space<vmem>>) attributes {dimension_semantics = [#tpu.dimension_semantics<parallel>, #tpu.dimension_semantics<arbitrary>], iteration_bounds = array<i64: 2, 4>, scalar_prefetch = 0 : i64, scratch_operands = 1 : i64, tpu.core_type = #tpu.core_type<tc>, window_params = [{transform_indices = @transform_0, window_bounds = array<i64: 1, 8, 512>}, {pipeline_mode = #tpu.pipeline_mode<synchronous>, transform_indices = @transform_1, window_bounds = array<i64: 512, 256>}, {pipeline_mode = #tpu.pipeline_mode<synchronous>, transform_indices = @transform_2, window_bounds = array<i64: 128, 512>}, {pipeline_mode = #tpu.pipeline_mode<synchronous>, transform_indices = @transform_3, window_bounds = array<i64: 128, 512>}, {transform_indices = @transform_4, window_bounds = array<i64: 1, 8, 8, 128>}, {transform_indices = @transform_5, window_bounds = array<i64: 1, 8, 8, 128>}, {transform_indices = @transform_6, window_bounds = array<i64: 1, 8, 8>}, {transform_indices = @transform_7, window_bounds = array<i64: 1, 8, 1>}, {transform_indices = @transform_8, window_bounds = array<i64: 1, 8, 8>}, {transform_indices = @transform_9, window_bounds = array<i64: 1, 8, 1>}, {transform_indices = @transform_10, window_bounds = array<i64: 1, 8, 8>}, {transform_indices = @transform_11, window_bounds = array<i64: 1, 8, 1>}, {transform_indices = @transform_12, window_bounds = array<i64: 1, 8, 512>}]} {
    %c0_i32 = arith.constant 0 : i32
    %0 = arith.cmpi eq, %arg1, %c0_i32 : i32
    %1 = arith.extui %0 : i1 to i32
    %c0_i32_0 = arith.constant 0 : i32
    %2 = arith.cmpi ne, %1, %c0_i32_0 : i32
    scf.if %2 {
      %c0_47 = arith.constant 0 : index
      %c0_48 = arith.constant 0 : index
      %c0_49 = arith.constant 0 : index
      %69 = vector.load %arg2[%c0_47, %c0_48, %c0_49] : memref<1x8x512xf32, #tpu.memory_space<vmem>>, vector<1x8x512xf32>
      %70 = vector.shape_cast %69 : vector<1x8x512xf32> to vector<8x512xf32>
      %c0_50 = arith.constant 0 : index
      %c0_51 = arith.constant 0 : index
      %71 = vector.load %arg15[%c0_50, %c0_51] : memref<8x512xf32, #tpu.memory_space<vmem>>, vector<8x512xf32>
      tpu.vector_store %arg15[%c0_50, %c0_51], %70 {strides = array<i32>} : memref<8x512xf32, #tpu.memory_space<vmem>>, vector<8x512xf32>,
    } else {
    }
    %c0 = arith.constant 0 : index
    %c0_1 = arith.constant 0 : index
    %3 = vector.load %arg15[%c0, %c0_1] : memref<8x512xf32, #tpu.memory_space<vmem>>, vector<8x512xf32>
    %c0_2 = arith.constant 0 : index
    %c0_3 = arith.constant 0 : index
    %4 = vector.load %arg3[%c0_2, %c0_3] : memref<512x256xf32, #tpu.memory_space<vmem>>, vector<512x256xf32>
    %cst = arith.constant dense<0.000000e+00> : vector<8x256xf32>
    %5 = tpu.matmul %3, %4, %cst {dimension_numbers = #tpu.dot_dimension_numbers<[1], [0], [0], [1], [0, 0, 1, 1], [], []>} : vector<8x512xf32>, vector<512x256xf32>, vector<8x256xf32> -> vector<8x256xf32>
    %6 = vector.extract_strided_slice %5 {offsets = [0, 0], sizes = [8, 128], strides = [1, 1]} : vector<8x256xf32> to vector<8x128xf32>
    %7 = vector.extract_strided_slice %5 {offsets = [0, 128], sizes = [8, 128], strides = [1, 1]} : vector<8x256xf32> to vector<8x128xf32>
    %c0_4 = arith.constant 0 : index
    %c0_5 = arith.constant 0 : index
    %c0_6 = arith.constant 0 : index
    %c0_7 = arith.constant 0 : index
    %8 = vector.load %arg6[%c0_4, %c0_5, %c0_6, %c0_7] : memref<1x8x8x128xf32, #tpu.memory_space<vmem>>, vector<1x8x8x128xf32>
    %9 = vector.shape_cast %8 : vector<1x8x8x128xf32> to vector<8x8x128xf32>
    %c0_8 = arith.constant 0 : index
    %c0_9 = arith.constant 0 : index
    %c0_10 = arith.constant 0 : index
    %c0_11 = arith.constant 0 : index
    %10 = vector.load %arg7[%c0_8, %c0_9, %c0_10, %c0_11] : memref<1x8x8x128xf32, #tpu.memory_space<vmem>>, vector<1x8x8x128xf32>
    %11 = vector.shape_cast %10 : vector<1x8x8x128xf32> to vector<8x8x128xf32>
    %12 = vector.shape_cast %6 : vector<8x128xf32> to vector<1x8x128xf32>
    %13 = vector.broadcast %12 : vector<1x8x128xf32> to vector<8x8x128xf32>
    %14 = arith.mulf %13, %9 : vector<8x8x128xf32>
    %15 = vector.shape_cast %7 : vector<8x128xf32> to vector<1x8x128xf32>
    %16 = vector.broadcast %15 : vector<1x8x128xf32> to vector<8x8x128xf32>
    %17 = arith.mulf %16, %11 : vector<8x8x128xf32>
    %18 = arith.subf %14, %17 : vector<8x8x128xf32>
    %cst_12 = arith.constant dense<0.000000e+00> : vector<8x128xf32>
    %19 = vector.multi_reduction <add>, %18, %cst_12 [1] : vector<8x8x128xf32> to vector<8x128xf32>
    %20 = vector.shape_cast %6 : vector<8x128xf32> to vector<1x8x128xf32>
    %21 = vector.broadcast %20 : vector<1x8x128xf32> to vector<8x8x128xf32>
    %22 = arith.mulf %21, %11 : vector<8x8x128xf32>
    %23 = vector.shape_cast %7 : vector<8x128xf32> to vector<1x8x128xf32>
    %24 = vector.broadcast %23 : vector<1x8x128xf32> to vector<8x8x128xf32>
    %25 = arith.mulf %24, %9 : vector<8x8x128xf32>
    %26 = arith.addf %22, %25 : vector<8x8x128xf32>
    %cst_13 = arith.constant dense<0.000000e+00> : vector<8x128xf32>
    %27 = vector.multi_reduction <add>, %26, %cst_13 [1] : vector<8x8x128xf32> to vector<8x128xf32>
    %c0_14 = arith.constant 0 : index
    %c0_15 = arith.constant 0 : index
    %28 = vector.load %arg4[%c0_14, %c0_15] : memref<128x512xf32, #tpu.memory_space<vmem>>, vector<128x512xf32>
    %cst_16 = arith.constant dense<0.000000e+00> : vector<8x512xf32>
    %29 = tpu.matmul %19, %28, %cst_16 {dimension_numbers = #tpu.dot_dimension_numbers<[1], [0], [0], [1], [0, 0, 1, 1], [], []>} : vector<8x128xf32>, vector<128x512xf32>, vector<8x512xf32> -> vector<8x512xf32>
    %c0_17 = arith.constant 0 : index
    %c0_18 = arith.constant 0 : index
    %30 = vector.load %arg5[%c0_17, %c0_18] : memref<128x512xf32, #tpu.memory_space<vmem>>, vector<128x512xf32>
    %cst_19 = arith.constant dense<0.000000e+00> : vector<8x512xf32>
    %31 = tpu.matmul %27, %30, %cst_19 {dimension_numbers = #tpu.dot_dimension_numbers<[1], [0], [0], [1], [0, 0, 1, 1], [], []>} : vector<8x128xf32>, vector<128x512xf32>, vector<8x512xf32> -> vector<8x512xf32>
    %32 = arith.addf %29, %31 : vector<8x512xf32>
    %c0_20 = arith.constant 0 : index
    %c0_21 = arith.constant 0 : index
    %c0_22 = arith.constant 0 : index
    %33 = vector.load %arg8[%c0_20, %c0_21, %c0_22] : memref<1x8x8xf32, #tpu.memory_space<vmem>>, vector<1x8x8xf32>
    %34 = vector.shape_cast %33 : vector<1x8x8xf32> to vector<8x8xf32>
    %cst_23 = arith.constant dense<0.000000e+00> : vector<8x512xf32>
    %35 = tpu.matmul %34, %32, %cst_23 {dimension_numbers = #tpu.dot_dimension_numbers<[1], [0], [0], [1], [0, 0, 1, 1], [], []>} : vector<8x8xf32>, vector<8x512xf32>, vector<8x512xf32> -> vector<8x512xf32>
    %c0_24 = arith.constant 0 : index
    %c0_25 = arith.constant 0 : index
    %c0_26 = arith.constant 0 : index
    %36 = vector.load %arg9[%c0_24, %c0_25, %c0_26] : memref<1x8x1xf32, #tpu.memory_space<vmem>>, vector<1x8x1xf32>
    %37 = vector.shape_cast %36 : vector<1x8x1xf32> to vector<8x1xf32>
    %38 = vector.broadcast %37 : vector<8x1xf32> to vector<8x512xf32>
    %39 = arith.addf %35, %38 : vector<8x512xf32>
    %cst_27 = arith.constant 5.000000e-01 : f32
    %40 = vector.broadcast %cst_27 : f32 to vector<8x512xf32>
    %41 = arith.mulf %40, %39 : vector<8x512xf32>
    %cst_28 = arith.constant 0.707106769 : f32
    %42 = vector.broadcast %cst_28 : f32 to vector<8x512xf32>
    %43 = arith.mulf %39, %42 : vector<8x512xf32>
    %44 = math.erf %43 : vector<8x512xf32>
    %cst_29 = arith.constant 1.000000e+00 : f32
    %45 = vector.broadcast %cst_29 : f32 to vector<8x512xf32>
    %46 = arith.addf %45, %44 : vector<8x512xf32>
    %47 = arith.mulf %41, %46 : vector<8x512xf32>
    %c0_30 = arith.constant 0 : index
    %c0_31 = arith.constant 0 : index
    %c0_32 = arith.constant 0 : index
    %48 = vector.load %arg10[%c0_30, %c0_31, %c0_32] : memref<1x8x8xf32, #tpu.memory_space<vmem>>, vector<1x8x8xf32>
    %49 = vector.shape_cast %48 : vector<1x8x8xf32> to vector<8x8xf32>
    %cst_33 = arith.constant dense<0.000000e+00> : vector<8x512xf32>
    %50 = tpu.matmul %49, %47, %cst_33 {dimension_numbers = #tpu.dot_dimension_numbers<[1], [0], [0], [1], [0, 0, 1, 1], [], []>} : vector<8x8xf32>, vector<8x512xf32>, vector<8x512xf32> -> vector<8x512xf32>
    %c0_34 = arith.constant 0 : index
    %c0_35 = arith.constant 0 : index
    %c0_36 = arith.constant 0 : index
    %51 = vector.load %arg11[%c0_34, %c0_35, %c0_36] : memref<1x8x1xf32, #tpu.memory_space<vmem>>, vector<1x8x1xf32>
    %52 = vector.shape_cast %51 : vector<1x8x1xf32> to vector<8x1xf32>
    %53 = vector.broadcast %52 : vector<8x1xf32> to vector<8x512xf32>
    %54 = arith.addf %50, %53 : vector<8x512xf32>
    %c0_37 = arith.constant 0 : index
    %c0_38 = arith.constant 0 : index
    %c0_39 = arith.constant 0 : index
    %55 = vector.load %arg12[%c0_37, %c0_38, %c0_39] : memref<1x8x8xf32, #tpu.memory_space<vmem>>, vector<1x8x8xf32>
    %56 = vector.shape_cast %55 : vector<1x8x8xf32> to vector<8x8xf32>
    %cst_40 = arith.constant dense<0.000000e+00> : vector<8x512xf32>
    %57 = tpu.matmul %56, %3, %cst_40 {dimension_numbers = #tpu.dot_dimension_numbers<[1], [0], [0], [1], [0, 0, 1, 1], [], []>} : vector<8x8xf32>, vector<8x512xf32>, vector<8x512xf32> -> vector<8x512xf32>
    %58 = arith.addf %54, %57 : vector<8x512xf32>
    %c0_41 = arith.constant 0 : index
    %c0_42 = arith.constant 0 : index
    %c0_43 = arith.constant 0 : index
    %59 = vector.load %arg13[%c0_41, %c0_42, %c0_43] : memref<1x8x1xf32, #tpu.memory_space<vmem>>, vector<1x8x1xf32>
    %60 = vector.shape_cast %59 : vector<1x8x1xf32> to vector<8x1xf32>
    %61 = vector.broadcast %60 : vector<8x1xf32> to vector<8x512xf32>
    %62 = arith.addf %58, %61 : vector<8x512xf32>
    %c3_i32 = arith.constant 3 : i32
    %63 = arith.cmpi slt, %arg1, %c3_i32 : i32
    %64 = arith.extui %63 : i1 to i32
    %c0_i32_44 = arith.constant 0 : i32
    %65 = arith.cmpi ne, %64, %c0_i32_44 : i32
    scf.if %65 {
      %cst_47 = arith.constant 5.000000e-01 : f32
      %69 = vector.broadcast %cst_47 : f32 to vector<8x512xf32>
      %70 = arith.mulf %69, %62 : vector<8x512xf32>
      %cst_48 = arith.constant 0.707106769 : f32
      %71 = vector.broadcast %cst_48 : f32 to vector<8x512xf32>
      %72 = arith.mulf %62, %71 : vector<8x512xf32>
      %73 = math.erf %72 : vector<8x512xf32>
      %cst_49 = arith.constant 1.000000e+00 : f32
      %74 = vector.broadcast %cst_49 : f32 to vector<8x512xf32>
      %75 = arith.addf %74, %73 : vector<8x512xf32>
      %76 = arith.mulf %70, %75 : vector<8x512xf32>
      %c0_50 = arith.constant 0 : index
      %c0_51 = arith.constant 0 : index
      %77 = vector.load %arg15[%c0_50, %c0_51] : memref<8x512xf32, #tpu.memory_space<vmem>>, vector<8x512xf32>
      tpu.vector_store %arg15[%c0_50, %c0_51], %76 {strides = array<i32>} : memref<8x512xf32, #tpu.memory_space<vmem>>, vector<8x512xf32>,
    } else {
    }
    %c3_i32_45 = arith.constant 3 : i32
    %66 = arith.cmpi eq, %arg1, %c3_i32_45 : i32
    %67 = arith.extui %66 : i1 to i32
    %c0_i32_46 = arith.constant 0 : i32
    %68 = arith.cmpi ne, %67, %c0_i32_46 : i32
    scf.if %68 {
      %c0_47 = arith.constant 0 : index
      %c0_48 = arith.constant 0 : index
      %c0_49 = arith.constant 0 : index
      %69 = vector.load %arg14[%c0_47, %c0_48, %c0_49] : memref<1x8x512xf32, #tpu.memory_space<vmem>>, vector<1x8x512xf32>
      %70 = vector.shape_cast %69 : vector<1x8x512xf32> to vector<8x512xf32>
      %71 = vector.shape_cast %62 : vector<8x512xf32> to vector<1x8x512xf32>
      tpu.vector_store %arg14[%c0_47, %c0_48, %c0_49], %71 {strides = array<i32>} : memref<1x8x512xf32, #tpu.memory_space<vmem>>, vector<1x8x512xf32>,
    } else {
    }
    return
  }
  func.func @transform_0(%arg0: i32, %arg1: i32) -> (i32, i32, i32) {
    %c0_i32 = arith.constant 0 : i32
    %c0_i32_0 = arith.constant 0 : i32
    %c0_i32_1 = arith.constant 0 : i32
    return %arg0, %c0_i32, %c0_i32_0 : i32, i32, i32
  }
  func.func @transform_1(%arg0: i32, %arg1: i32) -> (i32, i32) {
    %c0_i32 = arith.constant 0 : i32
    %c0_i32_0 = arith.constant 0 : i32
    %c0_i32_1 = arith.constant 0 : i32
    return %c0_i32, %c0_i32_0 : i32, i32
  }
  func.func @transform_2(%arg0: i32, %arg1: i32) -> (i32, i32) {
    %c0_i32 = arith.constant 0 : i32
    %c0_i32_0 = arith.constant 0 : i32
    %c0_i32_1 = arith.constant 0 : i32
    return %c0_i32, %c0_i32_0 : i32, i32
  }
  func.func @transform_3(%arg0: i32, %arg1: i32) -> (i32, i32) {
    %c0_i32 = arith.constant 0 : i32
    %c0_i32_0 = arith.constant 0 : i32
    %c0_i32_1 = arith.constant 0 : i32
    return %c0_i32, %c0_i32_0 : i32, i32
  }
  func.func @transform_4(%arg0: i32, %arg1: i32) -> (i32, i32, i32, i32) {
    %c0_i32 = arith.constant 0 : i32
    %c0_i32_0 = arith.constant 0 : i32
    %c0_i32_1 = arith.constant 0 : i32
    %c0_i32_2 = arith.constant 0 : i32
    return %arg1, %c0_i32, %c0_i32_0, %c0_i32_1 : i32, i32, i32, i32
  }
  func.func @transform_5(%arg0: i32, %arg1: i32) -> (i32, i32, i32, i32) {
    %c0_i32 = arith.constant 0 : i32
    %c0_i32_0 = arith.constant 0 : i32
    %c0_i32_1 = arith.constant 0 : i32
    %c0_i32_2 = arith.constant 0 : i32
    return %arg1, %c0_i32, %c0_i32_0, %c0_i32_1 : i32, i32, i32, i32
  }
  func.func @transform_6(%arg0: i32, %arg1: i32) -> (i32, i32, i32) {
    %c0_i32 = arith.constant 0 : i32
    %c0_i32_0 = arith.constant 0 : i32
    %c0_i32_1 = arith.constant 0 : i32
    return %arg1, %c0_i32, %c0_i32_0 : i32, i32, i32
  }
  func.func @transform_7(%arg0: i32, %arg1: i32) -> (i32, i32, i32) {
    %c0_i32 = arith.constant 0 : i32
    %c0_i32_0 = arith.constant 0 : i32
    %c0_i32_1 = arith.constant 0 : i32
    return %arg1, %c0_i32, %c0_i32_0 : i32, i32, i32
  }
  func.func @transform_8(%arg0: i32, %arg1: i32) -> (i32, i32, i32) {
    %c0_i32 = arith.constant 0 : i32
    %c0_i32_0 = arith.constant 0 : i32
    %c0_i32_1 = arith.constant 0 : i32
    return %arg1, %c0_i32, %c0_i32_0 : i32, i32, i32
  }
  func.func @transform_9(%arg0: i32, %arg1: i32) -> (i32, i32, i32) {
    %c0_i32 = arith.constant 0 : i32
    %c0_i32_0 = arith.constant 0 : i32
    %c0_i32_1 = arith.constant 0 : i32
    return %arg1, %c0_i32, %c0_i32_0 : i32, i32, i32
  }
  func.func @transform_10(%arg0: i32, %arg1: i32) -> (i32, i32, i32) {
    %c0_i32 = arith.constant 0 : i32
    %c0_i32_0 = arith.constant 0 : i32
    %c0_i32_1 = arith.constant 0 : i32
    return %arg1, %c0_i32, %c0_i32_0 : i32, i32, i32
  }
  func.func @transform_11(%arg0: i32, %arg1: i32) -> (i32, i32, i32) {
    %c0_i32 = arith.constant 0 : i32
    %c0_i32_0 = arith.constant 0 : i32
    %c0_i32_1 = arith.constant 0 : i32
    return %arg1, %c0_i32, %c0_i32_0 : i32, i32, i32
  }
  func.func @transform_12(%arg0: i32, %arg1: i32) -> (i32, i32, i32) {
    %c0_i32 = arith.constant 0 : i32
    %c0_i32_0 = arith.constant 0 : i32
    %c0_i32_1 = arith.constant 0 : i32
    return %arg0, %c0_i32, %c0_i32_0 : i32, i32, i32
  }
}

module attributes {stable_mosaic.version = 11 : i64} {
  func.func @_mlp_kernel(%arg0: i32, %arg1: memref<1x8x384xf32, #tpu.memory_space<vmem>>, %arg2: memref<32x8xf32, #tpu.memory_space<vmem>>, %arg3: memref<32x1xf32, #tpu.memory_space<vmem>>, %arg4: memref<1x32xf32, #tpu.memory_space<vmem>>, %arg5: memref<1x1xf32, #tpu.memory_space<vmem>>, %arg6: memref<1x1x384xf32, #tpu.memory_space<vmem>>) attributes {dimension_semantics = [#tpu.dimension_semantics<parallel>], iteration_bounds = array<i64: 2>, scalar_prefetch = 0 : i64, scratch_operands = 0 : i64, tpu.core_type = #tpu.core_type<tc>, window_params = [{transform_indices = @transform_0, window_bounds = array<i64: 1, 8, 384>}, {pipeline_mode = #tpu.pipeline_mode<synchronous>, transform_indices = @transform_1, window_bounds = array<i64: 32, 8>}, {pipeline_mode = #tpu.pipeline_mode<synchronous>, transform_indices = @transform_2, window_bounds = array<i64: 32, 1>}, {pipeline_mode = #tpu.pipeline_mode<synchronous>, transform_indices = @transform_3, window_bounds = array<i64: 1, 32>}, {pipeline_mode = #tpu.pipeline_mode<synchronous>, transform_indices = @transform_4, window_bounds = array<i64: 1, 1>}, {transform_indices = @transform_5, window_bounds = array<i64: 1, 1, 384>}]} {
    %c0 = arith.constant 0 : index
    %c0_0 = arith.constant 0 : index
    %0 = vector.load %arg2[%c0, %c0_0] : memref<32x8xf32, #tpu.memory_space<vmem>>, vector<32x8xf32>
    %c0_1 = arith.constant 0 : index
    %c0_2 = arith.constant 0 : index
    %c0_3 = arith.constant 0 : index
    %1 = vector.load %arg1[%c0_1, %c0_2, %c0_3] : memref<1x8x384xf32, #tpu.memory_space<vmem>>, vector<1x8x384xf32>
    %2 = vector.shape_cast %1 : vector<1x8x384xf32> to vector<8x384xf32>
    %cst = arith.constant dense<0.000000e+00> : vector<32x384xf32>
    %3 = tpu.matmul %0, %2, %cst {dimension_numbers = #tpu.dot_dimension_numbers<[1], [0], [0], [1], [0, 0, 1, 1], [], []>} : vector<32x8xf32>, vector<8x384xf32>, vector<32x384xf32> -> vector<32x384xf32>
    %c0_4 = arith.constant 0 : index
    %c0_5 = arith.constant 0 : index
    %4 = vector.load %arg3[%c0_4, %c0_5] : memref<32x1xf32, #tpu.memory_space<vmem>>, vector<32x1xf32>
    %5 = vector.broadcast %4 : vector<32x1xf32> to vector<32x384xf32>
    %6 = arith.addf %3, %5 : vector<32x384xf32>
    %cst_6 = arith.constant 5.000000e-01 : f32
    %7 = vector.broadcast %cst_6 : f32 to vector<32x384xf32>
    %8 = arith.mulf %7, %6 : vector<32x384xf32>
    %cst_7 = arith.constant 0.707106769 : f32
    %9 = vector.broadcast %cst_7 : f32 to vector<32x384xf32>
    %10 = arith.mulf %6, %9 : vector<32x384xf32>
    %11 = math.erf %10 : vector<32x384xf32>
    %cst_8 = arith.constant 1.000000e+00 : f32
    %12 = vector.broadcast %cst_8 : f32 to vector<32x384xf32>
    %13 = arith.addf %12, %11 : vector<32x384xf32>
    %14 = arith.mulf %8, %13 : vector<32x384xf32>
    %c0_9 = arith.constant 0 : index
    %c0_10 = arith.constant 0 : index
    %15 = vector.load %arg4[%c0_9, %c0_10] : memref<1x32xf32, #tpu.memory_space<vmem>>, vector<1x32xf32>
    %cst_11 = arith.constant dense<0.000000e+00> : vector<1x384xf32>
    %16 = tpu.matmul %15, %14, %cst_11 {dimension_numbers = #tpu.dot_dimension_numbers<[1], [0], [0], [1], [0, 0, 1, 1], [], []>} : vector<1x32xf32>, vector<32x384xf32>, vector<1x384xf32> -> vector<1x384xf32>
    %c0_12 = arith.constant 0 : index
    %c0_13 = arith.constant 0 : index
    %17 = vector.load %arg5[%c0_12, %c0_13] : memref<1x1xf32, #tpu.memory_space<vmem>>, vector<1x1xf32>
    %18 = vector.broadcast %17 : vector<1x1xf32> to vector<1x384xf32>
    %19 = arith.addf %16, %18 : vector<1x384xf32>
    %c0_14 = arith.constant 0 : index
    %c0_15 = arith.constant 0 : index
    %c0_16 = arith.constant 0 : index
    %20 = vector.load %arg6[%c0_14, %c0_15, %c0_16] : memref<1x1x384xf32, #tpu.memory_space<vmem>>, vector<1x1x384xf32>
    %21 = vector.shape_cast %20 : vector<1x1x384xf32> to vector<1x384xf32>
    %22 = vector.shape_cast %19 : vector<1x384xf32> to vector<1x1x384xf32>
    tpu.vector_store %arg6[%c0_14, %c0_15, %c0_16], %22 {strides = array<i32>} : memref<1x1x384xf32, #tpu.memory_space<vmem>>, vector<1x1x384xf32>,
    return
  }
  func.func @transform_0(%arg0: i32) -> (i32, i32, i32) {
    %c0_i32 = arith.constant 0 : i32
    %c0_i32_0 = arith.constant 0 : i32
    %c0_i32_1 = arith.constant 0 : i32
    return %arg0, %c0_i32, %c0_i32_0 : i32, i32, i32
  }
  func.func @transform_1(%arg0: i32) -> (i32, i32) {
    %c0_i32 = arith.constant 0 : i32
    %c0_i32_0 = arith.constant 0 : i32
    %c0_i32_1 = arith.constant 0 : i32
    return %c0_i32, %c0_i32_0 : i32, i32
  }
  func.func @transform_2(%arg0: i32) -> (i32, i32) {
    %c0_i32 = arith.constant 0 : i32
    %c0_i32_0 = arith.constant 0 : i32
    %c0_i32_1 = arith.constant 0 : i32
    return %c0_i32, %c0_i32_0 : i32, i32
  }
  func.func @transform_3(%arg0: i32) -> (i32, i32) {
    %c0_i32 = arith.constant 0 : i32
    %c0_i32_0 = arith.constant 0 : i32
    %c0_i32_1 = arith.constant 0 : i32
    return %c0_i32, %c0_i32_0 : i32, i32
  }
  func.func @transform_4(%arg0: i32) -> (i32, i32) {
    %c0_i32 = arith.constant 0 : i32
    %c0_i32_0 = arith.constant 0 : i32
    %c0_i32_1 = arith.constant 0 : i32
    return %c0_i32, %c0_i32_0 : i32, i32
  }
  func.func @transform_5(%arg0: i32) -> (i32, i32, i32) {
    %c0_i32 = arith.constant 0 : i32
    %c0_i32_0 = arith.constant 0 : i32
    %c0_i32_1 = arith.constant 0 : i32
    return %arg0, %c0_i32, %c0_i32_0 : i32, i32, i32
  }
}

</mosaic_0001>

<llo_original>
// kernel: fno_forward.3
$region0: #{fno_forward.3}
  #allocation0 [shape = 'u32[]', space=smem, size = 0x4, offset = 0x4, fixed_abs, tag = 'smem constant byte address 0x4 - core index']
  #allocation1 [shape = 'u32[72,128]{1,0:T(1,128)}', space=vmem, size = 0x9000, scoped, tag = 'internal scratch']
  %s0 = inlined_call_operand.vmem [shape: f32[2,4,384], index: 0, kind: input, shape index: {}]
  %s1 = inlined_call_operand.vmem [shape: f32[8,4], index: 1, kind: input, shape index: {}]
  %s2 = inlined_call_operand.vmem [shape: f32[8,1], index: 2, kind: input, shape index: {}]
  %s3 = inlined_call_operand.vmem [shape: f32[2,8,384], index: 3, kind: output, shape index: {}]
  %s4 = sld [smem:[#allocation0]]
  $region45: #{fno_forward.3} parent=0
    _
  %s6 = ssub.s32 1, %s4
  %s7 = scalar_select 0, %s6, %s4
  loop: start=0, step=1, limit=4
  $region2: #{fno_forward.3} parent=0 // loop_pre_header
    _
  $region3: #{fno_forward.3} parent=0 // loop_header
    %s9 = sphi 0, %s13
    %p10 = scmp.ge.s32.totalorder %s9, 4
    %s19 = sphi 0, %s21
    %s22 = sphi 0, %s19
    %s23 = sphi 0, %s22
    %s39 = sphi 0, %s23
    %s43 = sphi 0, %s43
    %s45 = sphi 0, %s43
    %s46 = sphi 0, %s45
    %s60 = sphi 0, %s46
    %s64 = sphi 0, %s64
    %s66 = sphi 0, %s64
    %s67 = sphi 0, %s66
    %s81 = sphi 0, %s67
    %s87 = sphi 0, %s89
    %s90 = sphi 0, %s87
    %s91 = sphi 0, %s90
    %s107 = sphi 0, %s91
  $region4: #{fno_forward.3} parent=0 // loop_header_branch
    %12 = sbr.rel (%p10) target = $region8
  $region5: #{fno_forward.3} parent=0 // loop_body
    %s14 = ssub.s32 %s9, 1
    %s15 = ssub.s32 %s9, 2
    %s16 = sadd.s32 %s9, 1
    %s17 = ssub.s32 %s9, %s16
    %p18 = scmp.eq.s32.totalorder %s17, 0
    %s20 = sadd.s32 %s19, 1
    %s21 = scalar_select %p18, %s19, %s20
    %p24 = pneg %p18
    %p25 = scmp.eq.s32.totalorder %s9, 1
    %p26 = por %p24, %p25
    %p27 = scmp.ne.s32.totalorder %s19, %s22
    %p28 = scmp.eq.s32.totalorder %s9, 0
    %p29 = por %p27, %p28
    %p30 = scmp.ne.s32.totalorder %s19, %s22
    %p31 = scmp.eq.s32.totalorder %s14, 1
    %p32 = por %p30, %p31
    %p33 = scmp.ne.s32.totalorder %s22, %s23
    %p34 = scmp.eq.s32.totalorder %s14, 0
    %p35 = por %p33, %p34
    %p36 = scmp.ne.s32.totalorder %s22, %s23
    %p37 = scmp.eq.s32.totalorder %s15, 1
    %p38 = por %p36, %p37
    %p40 = scmp.ne.s32.totalorder %s23, %s39
    %p41 = scmp.eq.s32.totalorder %s15, 0
    %p42 = por %p40, %p41
    %s44 = sadd.s32 %s43, 1
    %p47 = scmp.eq.s32.totalorder %s9, 1
    %p48 = scmp.ne.s32.totalorder %s43, %s45
    %p49 = scmp.eq.s32.totalorder %s9, 0
    %p50 = por %p48, %p49
    %p51 = scmp.ne.s32.totalorder %s43, %s45
    %p52 = scmp.eq.s32.totalorder %s14, 1
    %p53 = por %p51, %p52
    %p54 = scmp.ne.s32.totalorder %s45, %s46
    %p55 = scmp.eq.s32.totalorder %s14, 0
    %p56 = por %p54, %p55
    %p57 = scmp.ne.s32.totalorder %s45, %s46
    %p58 = scmp.eq.s32.totalorder %s15, 1
    %p59 = por %p57, %p58
    %p61 = scmp.ne.s32.totalorder %s46, %s60
    %p62 = scmp.eq.s32.totalorder %s15, 0
    %p63 = por %p61, %p62
    %s65 = sadd.s32 %s64, 1
    %p68 = scmp.eq.s32.totalorder %s9, 1
    %p69 = scmp.ne.s32.totalorder %s64, %s66
    %p70 = scmp.eq.s32.totalorder %s9, 0
    %p71 = por %p69, %p70
    %p72 = scmp.ne.s32.totalorder %s64, %s66
    %p73 = scmp.eq.s32.totalorder %s14, 1
    %p74 = por %p72, %p73
    %p75 = scmp.ne.s32.totalorder %s66, %s67
    %p76 = scmp.eq.s32.totalorder %s14, 0
    %p77 = por %p75, %p76
    %p78 = scmp.ne.s32.totalorder %s66, %s67
    %p79 = scmp.eq.s32.totalorder %s15, 1
    %p80 = por %p78, %p79
    %p82 = scmp.ne.s32.totalorder %s67, %s81
    %p83 = scmp.eq.s32.totalorder %s15, 0
    %p84 = por %p82, %p83
    %s85 = ssub.s32 %s9, %s16
    %p86 = scmp.eq.s32.totalorder %s85, 0
    %s88 = sadd.s32 %s87, 1
    %s89 = scalar_select %p86, %s87, %s88
    %p92 = pneg %p86
    %p93 = scmp.eq.s32.totalorder %s9, 1
    %p94 = por %p92, %p93
    %p95 = scmp.ne.s32.totalorder %s87, %s90
    %p96 = scmp.eq.s32.totalorder %s9, 0
    %p97 = por %p95, %p96
    %p98 = scmp.ne.s32.totalorder %s87, %s90
    %p99 = scmp.eq.s32.totalorder %s14, 1
    %p100 = por %p98, %p99
    %p101 = scmp.ne.s32.totalorder %s90, %s91
    %p102 = scmp.eq.s32.totalorder %s14, 0
    %p103 = por %p101, %p102
    %p104 = scmp.ne.s32.totalorder %s90, %s91
    %p105 = scmp.eq.s32.totalorder %s15, 1
    %p106 = por %p104, %p105
    %p108 = scmp.ne.s32.totalorder %s91, %s107
    %p109 = scmp.eq.s32.totalorder %s15, 0
    %p110 = por %p108, %p109
    %p111 = scmp.le.s32.totalorder 1, %s9
    %p112 = scmp.lt.s32.totalorder %s9, 3
    %p113 = pnand %p111, %p112
    %p114 = pneg %p113
    // Predicated region
    $region9: #{fno_forward.3} parent=5 // pred_check
      _
    $region10: #{fno_forward.3} parent=5 // pred_check_branch
      %116 = sbr.rel (%p113) target = $region12
    $region11: #{fno_forward.3} parent=5 // pred_region
      %s117 = ssub.s32 %s9, 1
      // Predicated region
      $region13: #{fno_forward.3} parent=11 // pred_check
        %p118 = pneg %p56
      $region14: #{fno_forward.3} parent=11 // pred_check_branch
        %120 = sbr.rel (%p118) target = $region16
      $region15: #{fno_forward.3} parent=11 // pred_region
        _
      $region16: #{fno_forward.3} parent=11 // pred_fallthru
        _
      // Predicated region
      $region17: #{fno_forward.3} parent=11 // pred_check
        %p121 = pneg %p77
      $region18: #{fno_forward.3} parent=11 // pred_check_branch
        %123 = sbr.rel (%p121) target = $region20
      $region19: #{fno_forward.3} parent=11 // pred_region
        _
      $region20: #{fno_forward.3} parent=11 // pred_fallthru
        _
    $region12: #{fno_forward.3} parent=5 // pred_fallthru
      _
    %p124 = scmp.lt.s32.totalorder %s9, 2
    // Predicated region
    $region21: #{fno_forward.3} parent=5 // pred_check
      %p125 = pneg %p124
    $region22: #{fno_forward.3} parent=5 // pred_check_branch
      %127 = sbr.rel (%p125) target = $region24
    $region23: #{fno_forward.3} parent=5 // pred_region
      // Predicated region
      $region25: #{fno_forward.3} parent=23 // pred_check
        %p128 = pneg %p29
      $region26: #{fno_forward.3} parent=23 // pred_check_branch
        %130 = sbr.rel (%p128) target = $region28
      $region27: #{fno_forward.3} parent=23 // pred_region
        %p131 = scmp.lt.s32.totalorder %s9, 1
        %s132 = scalar_select %p131, %s9, 1
        %s133 = smul.addr %s132, 3
        %s134 = smul.addr %s133, 4
        %s135 = scalar_lea.vmem %s0, %s134
      $region28: #{fno_forward.3} parent=23 // pred_fallthru
        _
    $region24: #{fno_forward.3} parent=5 // pred_fallthru
      _
    %p136 = scmp.le.s32.totalorder 1, %s9
    %p137 = scmp.lt.s32.totalorder %s9, 3
    %p138 = pnand %p136, %p137
    %p139 = pneg %p138
    // Predicated region
    $region29: #{fno_forward.3} parent=5 // pred_check
      _
    $region30: #{fno_forward.3} parent=5 // pred_check_branch
      %141 = sbr.rel (%p138) target = $region32
    $region31: #{fno_forward.3} parent=5 // pred_region
      %s142 = ssub.s32 %s9, 1
      %p143 = scmp.lt.s32.totalorder %s14, 1
      %s144 = scalar_select %p143, %s14, 1
      %s145 = smul.addr %s144, 3
      %s146 = smul.addr %s145, 4
      %s147 = scalar_lea.vmem %s0, %s146
      %p148 = pneg %p35
      %p149 = pneg %p32
      %p150 = pneg %p56
      %p151 = pneg %p53
      %p152 = pneg %p77
      %p153 = pneg %p74
      %p154 = pneg %p103
      %p155 = pneg %p100
      %p156 = scmp.lt.s32.totalorder %s14, 1
      %s157 = scalar_select %p156, %s14, 1
      %s158 = smul.addr %s157, 3
      %s159 = smul.addr %s158, 8
      %s160 = scalar_lea.vmem %s3, %s159
      %p161 = scmp.lt.s32.totalorder %s14, 1
      %s162 = scalar_select %p161, %s14, 1
      %s163 = smul.addr %s162, 3
      %s164 = smul.addr %s163, 4
      %s165 = scalar_lea.vmem %s0, %s164
      %p166 = scmp.lt.s32.totalorder %s14, 1
      %s167 = scalar_select %p166, %s14, 1
      %s168 = smul.addr %s167, 3
      %s169 = smul.addr %s168, 8
      %s170 = scalar_lea.vmem %s3, %s169
      %v171 = vld [vmem:[%s1] sm:$0xff]
      %v172 = vld [vmem:[%s165] sm:$0xff]
      %v173 = vld [vmem:[%s165 + $0x8] sm:$0xf]
      %v174 = vld [vmem:[%s2] sm:$0xff]
      %176 = vset.pattern.permute.xlu0 0
      %177 = vperm.xlu0 %176, %v174
      %v178 = vpop.permute.xlu0 %177
      %182 = vst [vmem:[#allocation1] ss:$2 sm:$0xff] %v172
      %s183 = scalar_lea.vmem [#allocation1], 16
      %184 = vst [vmem:[%s183] ss:$2 sm:$0xff] %v173
      %v185 = vld.sshfl [vmem:[#allocation1] sm:$0xff pattern:$0x75316420]
      %v186 = vld.sshfl [vmem:[#allocation1 + $0x8] sm:$0xff pattern:$0x75316420]
      %v187 = vld.sshfl [vmem:[#allocation1 + $0x10] sm:$0xff pattern:$0x75316420]
      %vm188 = vcmask 31744
      %v190 = vsel %vm188, %v171, 0
      %vm192 = vcmask 1043456
      %v193 = vsel %vm192, %v185, 0
      %v195 = vsel %vm192, %v186, 0
      %v197 = vsel %vm192, %v187, 0
      %199 = vmatpush.msra.mxu0 0.0
      %200 = vmatpush.msra.mxu0 0.0
      %201 = vmatpush.msra.mxu0 0.0
      %202 = vmatpush.msra.mxu0 0.0
      %203 = vmatpush.msra.mxu0 0.0
      %204 = vmatpush.msra.mxu0 0.0
      %205 = vmatpush.msra.mxu0 0.0
      %206 = vmatpush.msra.mxu0 0.0
      %207 = vmatpush.msra.mxu0 0.0
      %208 = vmatpush.msra.mxu0 0.0
      %209 = vmatpush.msra.mxu0 0.0
      %210 = vmatpush.msra.mxu0 0.0
      %211 = vmatpush.msra.mxu0 0.0
      %212 = vmatpush.msra.mxu0 0.0
      %213 = vmatpush.msra.mxu0 0.0
      %214 = vmatpush.msra.mxu0 %v193
      %215 = vmatmul.f32.gmra.mxu0 %v190
      %v216 = vpop.f32.mrf.mxu0
      %v217 = vadd.f32 %v178, %v216
      %218 = vdwg.mxu0
      %219 = vmatpush.msra.mxu0 0.0
      %220 = vmatpush.msra.mxu0 0.0
      %221 = vmatpush.msra.mxu0 0.0
      %222 = vmatpush.msra.mxu0 0.0
      %223 = vmatpush.msra.mxu0 0.0
      %224 = vmatpush.msra.mxu0 0.0
      %225 = vmatpush.msra.mxu0 0.0
      %226 = vmatpush.msra.mxu0 0.0
      %227 = vmatpush.msra.mxu0 0.0
      %228 = vmatpush.msra.mxu0 0.0
      %229 = vmatpush.msra.mxu0 0.0
      %230 = vmatpush.msra.mxu0 0.0
      %231 = vmatpush.msra.mxu0 0.0
      %232 = vmatpush.msra.mxu0 0.0
      %233 = vmatpush.msra.mxu0 0.0
      %234 = vmatpush.msra.mxu0 %v195
      %235 = vmatmul.f32.gmra.mxu0 %v190
      %v236 = vpop.f32.mrf.mxu0
      %v237 = vadd.f32 %v178, %v236
      %238 = vdwg.mxu0
      %239 = vmatpush.msra.mxu0 0.0
      %240 = vmatpush.msra.mxu0 0.0
      %241 = vmatpush.msra.mxu0 0.0
      %242 = vmatpush.msra.mxu0 0.0
      %243 = vmatpush.msra.mxu0 0.0
      %244 = vmatpush.msra.mxu0 0.0
      %245 = vmatpush.msra.mxu0 0.0
      %246 = vmatpush.msra.mxu0 0.0
      %247 = vmatpush.msra.mxu0 0.0
      %248 = vmatpush.msra.mxu0 0.0
      %249 = vmatpush.msra.mxu0 0.0
      %250 = vmatpush.msra.mxu0 0.0
      %251 = vmatpush.msra.mxu0 0.0
      %252 = vmatpush.msra.mxu0 0.0
      %253 = vmatpush.msra.mxu0 0.0
      %254 = vmatpush.msra.mxu0 %v197
      %255 = vmatmul.f32.gmra.mxu0 %v190
      %v256 = vpop.f32.mrf.mxu0
      %v257 = vadd.f32 %v178, %v256
      %258 = vdwg.mxu0
      %259 = vst [vmem:[%s170] sm:$0xff] %v217
      %260 = vst [vmem:[%s170 + $0x8] sm:$0xff] %v237
      %261 = vst [vmem:[%s170 + $0x10] sm:$0xff] %v257
      %p262 = scmp.lt.s32.totalorder %s14, 1
      %s263 = scalar_select %p262, %s14, 1
      %s264 = smul.addr %s263, 3
      %s265 = smul.addr %s264, 8
      %s266 = scalar_lea.vmem %s3, %s265
      // Predicated region
      $region33: #{fno_forward.3} parent=31 // pred_check
        %p267 = pneg %p100
      $region34: #{fno_forward.3} parent=31 // pred_check_branch
        %269 = sbr.rel (%p267) target = $region36
      $region35: #{fno_forward.3} parent=31 // pred_region
        _
      $region36: #{fno_forward.3} parent=31 // pred_fallthru
        _
    $region32: #{fno_forward.3} parent=5 // pred_fallthru
      _
    %p270 = scmp.le.s32.totalorder 2, %s9
    // Predicated region
    $region37: #{fno_forward.3} parent=5 // pred_check
      %p271 = pneg %p270
    $region38: #{fno_forward.3} parent=5 // pred_check_branch
      %273 = sbr.rel (%p271) target = $region40
    $region39: #{fno_forward.3} parent=5 // pred_region
      %s274 = ssub.s32 %s9, 2
      // Predicated region
      $region41: #{fno_forward.3} parent=39 // pred_check
        %p275 = pneg %p106
      $region42: #{fno_forward.3} parent=39 // pred_check_branch
        %277 = sbr.rel (%p275) target = $region44
      $region43: #{fno_forward.3} parent=39 // pred_region
        %p278 = scmp.lt.s32.totalorder %s15, 1
        %s279 = scalar_select %p278, %s15, 1
        %s280 = smul.addr %s279, 3
        %s281 = smul.addr %s280, 8
        %s282 = scalar_lea.vmem %s3, %s281
      $region44: #{fno_forward.3} parent=39 // pred_fallthru
        _
    $region40: #{fno_forward.3} parent=5 // pred_fallthru
      _
  $region6: #{fno_forward.3} parent=0 // loop_footer
    %s13 = sadd.s32 1, %s9
  $region7: #{fno_forward.3} parent=0 // loop_footer_branch
    %8 = sbr.rel target = $region3
  $region8: #{fno_forward.3} parent=0 // loop_exit
    _

// kernel: fno_forward.4
$region0: #{fno_forward.4}
  #allocation0 [shape = 'u32[]', space=smem, size = 0x4, offset = 0x4, fixed_abs, tag = 'smem constant byte address 0x4 - core index']
  #allocation1 [shape = 'u32[72,128]{1,0:T(1,128)}', space=vmem, size = 0x9000, scoped, tag = 'internal scratch']
  #allocation2 [shape = 'f32[8,512]{1,0:T(8,128)}', space=vmem, size = 0x4000, scoped, tag = 'scratch operand']
  %s0 = inlined_call_operand.vmem [shape: f32[2,8,512], index: 0, kind: input, shape index: {}]
  %s1 = inlined_call_operand.vmem [shape: f32[512,256], index: 1, kind: input, shape index: {}]
  %s2 = inlined_call_operand.vmem [shape: f32[128,512], index: 2, kind: input, shape index: {}]
  %s3 = inlined_call_operand.vmem [shape: f32[128,512], index: 3, kind: input, shape index: {}]
  %s4 = inlined_call_operand.vmem [shape: f32[4,8,8,128], index: 4, kind: input, shape index: {}]
  %s5 = inlined_call_operand.vmem [shape: f32[4,8,8,128], index: 5, kind: input, shape index: {}]
  %s6 = inlined_call_operand.vmem [shape: f32[4,8,8], index: 6, kind: input, shape index: {}]
  %s7 = inlined_call_operand.vmem [shape: f32[4,8,1], index: 7, kind: input, shape index: {}]
  %s8 = inlined_call_operand.vmem [shape: f32[4,8,8], index: 8, kind: input, shape index: {}]
  %s9 = inlined_call_operand.vmem [shape: f32[4,8,1], index: 9, kind: input, shape index: {}]
  %s10 = inlined_call_operand.vmem [shape: f32[4,8,8], index: 10, kind: input, shape index: {}]
  %s11 = inlined_call_operand.vmem [shape: f32[4,8,1], index: 11, kind: input, shape index: {}]
  %s12 = inlined_call_operand.vmem [shape: f32[2,8,512], index: 12, kind: output, shape index: {}]
  %s13 = sld [smem:[#allocation0]]
  $region93: #{fno_forward.4} parent=0
    _
  %s15 = ssub.s32 1, %s13
  %s16 = scalar_select 0, %s15, %s13
  loop: start=0, step=1, limit=10
  $region2: #{fno_forward.4} parent=0 // loop_pre_header
    _
  $region3: #{fno_forward.4} parent=0 // loop_header
    %s18 = sphi 0, %s22
    %p19 = scmp.ge.s32.totalorder %s18, 10
    %s25 = sphi 0, %s37
    %s26 = sphi 0, %s33
    %s27 = sphi 0, %s25
    %s28 = sphi 0, %s26
    %s29 = sphi 0, %s27
    %s30 = sphi 0, %s28
    %s40 = sphi 0, %s42
    %s43 = sphi 0, %s40
    %s44 = sphi 0, %s43
    %s60 = sphi 0, %s44
    %s64 = sphi 0, %s64
    %s66 = sphi 0, %s64
    %s67 = sphi 0, %s66
    %s81 = sphi 0, %s67
    %s85 = sphi 0, %s85
    %s87 = sphi 0, %s85
    %s88 = sphi 0, %s87
    %s102 = sphi 0, %s88
    %s106 = sphi 0, %s106
    %s108 = sphi 0, %s106
    %s109 = sphi 0, %s108
    %s123 = sphi 0, %s109
    %s129 = sphi 0, %s131
    %s132 = sphi 0, %s129
    %s133 = sphi 0, %s132
    %s149 = sphi 0, %s133
    %s155 = sphi 0, %s157
    %s158 = sphi 0, %s155
    %s159 = sphi 0, %s158
    %s175 = sphi 0, %s159
    %s181 = sphi 0, %s183
    %s184 = sphi 0, %s181
    %s185 = sphi 0, %s184
    %s201 = sphi 0, %s185
    %s207 = sphi 0, %s209
    %s210 = sphi 0, %s207
    %s211 = sphi 0, %s210
    %s227 = sphi 0, %s211
    %s233 = sphi 0, %s235
    %s236 = sphi 0, %s233
    %s237 = sphi 0, %s236
    %s253 = sphi 0, %s237
    %s259 = sphi 0, %s261
    %s262 = sphi 0, %s259
    %s263 = sphi 0, %s262
    %s279 = sphi 0, %s263
    %s285 = sphi 0, %s287
    %s288 = sphi 0, %s285
    %s289 = sphi 0, %s288
    %s305 = sphi 0, %s289
    %s311 = sphi 0, %s313
    %s314 = sphi 0, %s311
    %s315 = sphi 0, %s314
    %s331 = sphi 0, %s315
    %s337 = sphi 0, %s339
    %s340 = sphi 0, %s337
    %s341 = sphi 0, %s340
    %s357 = sphi 0, %s341
  $region4: #{fno_forward.4} parent=0 // loop_header_branch
    %21 = sbr.rel (%p19) target = $region8
  $region5: #{fno_forward.4} parent=0 // loop_body
    %s23 = ssub.s32 %s18, 1
    %s24 = ssub.s32 %s18, 2
    %s31 = sadd.s32 1, %s26
    %p32 = scmp.ge.s32.totalorder %s31, 4
    %s33 = scalar_select %p32, 0, %s31
    %s34 = sadd.s32 1, %s25
    %s35 = scalar_select %p32, %s34, %s25
    %p36 = scmp.ge.s32.totalorder %s35, 2
    %s37 = scalar_select %p36, 0, %s35
    %s38 = ssub.s32 %s25, %s37
    %p39 = scmp.eq.s32.totalorder %s38, 0
    %s41 = sadd.s32 %s40, 1
    %s42 = scalar_select %p39, %s40, %s41
    %p45 = pneg %p39
    %p46 = scmp.eq.s32.totalorder %s18, 7
    %p47 = por %p45, %p46
    %p48 = scmp.ne.s32.totalorder %s40, %s43
    %p49 = scmp.eq.s32.totalorder %s18, 0
    %p50 = por %p48, %p49
    %p51 = scmp.ne.s32.totalorder %s40, %s43
    %p52 = scmp.eq.s32.totalorder %s23, 7
    %p53 = por %p51, %p52
    %p54 = scmp.ne.s32.totalorder %s43, %s44
    %p55 = scmp.eq.s32.totalorder %s23, 0
    %p56 = por %p54, %p55
    %p57 = scmp.ne.s32.totalorder %s43, %s44
    %p58 = scmp.eq.s32.totalorder %s24, 7
    %p59 = por %p57, %p58
    %p61 = scmp.ne.s32.totalorder %s44, %s60
    %p62 = scmp.eq.s32.totalorder %s24, 0
    %p63 = por %p61, %p62
    %s65 = sadd.s32 %s64, 1
    %p68 = scmp.eq.s32.totalorder %s18, 7
    %p69 = scmp.ne.s32.totalorder %s64, %s66
    %p70 = scmp.eq.s32.totalorder %s18, 0
    %p71 = por %p69, %p70
    %p72 = scmp.ne.s32.totalorder %s64, %s66
    %p73 = scmp.eq.s32.totalorder %s23, 7
    %p74 = por %p72, %p73
    %p75 = scmp.ne.s32.totalorder %s66, %s67
    %p76 = scmp.eq.s32.totalorder %s23, 0
    %p77 = por %p75, %p76
    %p78 = scmp.ne.s32.totalorder %s66, %s67
    %p79 = scmp.eq.s32.totalorder %s24, 7
    %p80 = por %p78, %p79
    %p82 = scmp.ne.s32.totalorder %s67, %s81
    %p83 = scmp.eq.s32.totalorder %s24, 0
    %p84 = por %p82, %p83
    %s86 = sadd.s32 %s85, 1
    %p89 = scmp.eq.s32.totalorder %s18, 7
    %p90 = scmp.ne.s32.totalorder %s85, %s87
    %p91 = scmp.eq.s32.totalorder %s18, 0
    %p92 = por %p90, %p91
    %p93 = scmp.ne.s32.totalorder %s85, %s87
    %p94 = scmp.eq.s32.totalorder %s23, 7
    %p95 = por %p93, %p94
    %p96 = scmp.ne.s32.totalorder %s87, %s88
    %p97 = scmp.eq.s32.totalorder %s23, 0
    %p98 = por %p96, %p97
    %p99 = scmp.ne.s32.totalorder %s87, %s88
    %p100 = scmp.eq.s32.totalorder %s24, 7
    %p101 = por %p99, %p100
    %p103 = scmp.ne.s32.totalorder %s88, %s102
    %p104 = scmp.eq.s32.totalorder %s24, 0
    %p105 = por %p103, %p104
    %s107 = sadd.s32 %s106, 1
    %p110 = scmp.eq.s32.totalorder %s18, 7
    %p111 = scmp.ne.s32.totalorder %s106, %s108
    %p112 = scmp.eq.s32.totalorder %s18, 0
    %p113 = por %p111, %p112
    %p114 = scmp.ne.s32.totalorder %s106, %s108
    %p115 = scmp.eq.s32.totalorder %s23, 7
    %p116 = por %p114, %p115
    %p117 = scmp.ne.s32.totalorder %s108, %s109
    %p118 = scmp.eq.s32.totalorder %s23, 0
    %p119 = por %p117, %p118
    %p120 = scmp.ne.s32.totalorder %s108, %s109
    %p121 = scmp.eq.s32.totalorder %s24, 7
    %p122 = por %p120, %p121
    %p124 = scmp.ne.s32.totalorder %s109, %s123
    %p125 = scmp.eq.s32.totalorder %s24, 0
    %p126 = por %p124, %p125
    %s127 = ssub.s32 %s26, %s33
    %p128 = scmp.eq.s32.totalorder %s127, 0
    %s130 = sadd.s32 %s129, 1
    %s131 = scalar_select %p128, %s129, %s130
    %p134 = pneg %p128
    %p135 = scmp.eq.s32.totalorder %s18, 7
    %p136 = por %p134, %p135
    %p137 = scmp.ne.s32.totalorder %s129, %s132
    %p138 = scmp.eq.s32.totalorder %s18, 0
    %p139 = por %p137, %p138
    %p140 = scmp.ne.s32.totalorder %s129, %s132
    %p141 = scmp.eq.s32.totalorder %s23, 7
    %p142 = por %p140, %p141
    %p143 = scmp.ne.s32.totalorder %s132, %s133
    %p144 = scmp.eq.s32.totalorder %s23, 0
    %p145 = por %p143, %p144
    %p146 = scmp.ne.s32.totalorder %s132, %s133
    %p147 = scmp.eq.s32.totalorder %s24, 7
    %p148 = por %p146, %p147
    %p150 = scmp.ne.s32.totalorder %s133, %s149
    %p151 = scmp.eq.s32.totalorder %s24, 0
    %p152 = por %p150, %p151
    %s153 = ssub.s32 %s26, %s33
    %p154 = scmp.eq.s32.totalorder %s153, 0
    %s156 = sadd.s32 %s155, 1
    %s157 = scalar_select %p154, %s155, %s156
    %p160 = pneg %p154
    %p161 = scmp.eq.s32.totalorder %s18, 7
    %p162 = por %p160, %p161
    %p163 = scmp.ne.s32.totalorder %s155, %s158
    %p164 = scmp.eq.s32.totalorder %s18, 0
    %p165 = por %p163, %p164
    %p166 = scmp.ne.s32.totalorder %s155, %s158
    %p167 = scmp.eq.s32.totalorder %s23, 7
    %p168 = por %p166, %p167
    %p169 = scmp.ne.s32.totalorder %s158, %s159
    %p170 = scmp.eq.s32.totalorder %s23, 0
    %p171 = por %p169, %p170
    %p172 = scmp.ne.s32.totalorder %s158, %s159
    %p173 = scmp.eq.s32.totalorder %s24, 7
    %p174 = por %p172, %p173
    %p176 = scmp.ne.s32.totalorder %s159, %s175
    %p177 = scmp.eq.s32.totalorder %s24, 0
    %p178 = por %p176, %p177
    %s179 = ssub.s32 %s26, %s33
    %p180 = scmp.eq.s32.totalorder %s179, 0
    %s182 = sadd.s32 %s181, 1
    %s183 = scalar_select %p180, %s181, %s182
    %p186 = pneg %p180
    %p187 = scmp.eq.s32.totalorder %s18, 7
    %p188 = por %p186, %p187
    %p189 = scmp.ne.s32.totalorder %s181, %s184
    %p190 = scmp.eq.s32.totalorder %s18, 0
    %p191 = por %p189, %p190
    %p192 = scmp.ne.s32.totalorder %s181, %s184
    %p193 = scmp.eq.s32.totalorder %s23, 7
    %p194 = por %p192, %p193
    %p195 = scmp.ne.s32.totalorder %s184, %s185
    %p196 = scmp.eq.s32.totalorder %s23, 0
    %p197 = por %p195, %p196
    %p198 = scmp.ne.s32.totalorder %s184, %s185
    %p199 = scmp.eq.s32.totalorder %s24, 7
    %p200 = por %p198, %p199
    %p202 = scmp.ne.s32.totalorder %s185, %s201
    %p203 = scmp.eq.s32.totalorder %s24, 0
    %p204 = por %p202, %p203
    %s205 = ssub.s32 %s26, %s33
    %p206 = scmp.eq.s32.totalorder %s205, 0
    %s208 = sadd.s32 %s207, 1
    %s209 = scalar_select %p206, %s207, %s208
    %p212 = pneg %p206
    %p213 = scmp.eq.s32.totalorder %s18, 7
    %p214 = por %p212, %p213
    %p215 = scmp.ne.s32.totalorder %s207, %s210
    %p216 = scmp.eq.s32.totalorder %s18, 0
    %p217 = por %p215, %p216
    %p218 = scmp.ne.s32.totalorder %s207, %s210
    %p219 = scmp.eq.s32.totalorder %s23, 7
    %p220 = por %p218, %p219
    %p221 = scmp.ne.s32.totalorder %s210, %s211
    %p222 = scmp.eq.s32.totalorder %s23, 0
    %p223 = por %p221, %p222
    %p224 = scmp.ne.s32.totalorder %s210, %s211
    %p225 = scmp.eq.s32.totalorder %s24, 7
    %p226 = por %p224, %p225
    %p228 = scmp.ne.s32.totalorder %s211, %s227
    %p229 = scmp.eq.s32.totalorder %s24, 0
    %p230 = por %p228, %p229
    %s231 = ssub.s32 %s26, %s33
    %p232 = scmp.eq.s32.totalorder %s231, 0
    %s234 = sadd.s32 %s233, 1
    %s235 = scalar_select %p232, %s233, %s234
    %p238 = pneg %p232
    %p239 = scmp.eq.s32.totalorder %s18, 7
    %p240 = por %p238, %p239
    %p241 = scmp.ne.s32.totalorder %s233, %s236
    %p242 = scmp.eq.s32.totalorder %s18, 0
    %p243 = por %p241, %p242
    %p244 = scmp.ne.s32.totalorder %s233, %s236
    %p245 = scmp.eq.s32.totalorder %s23, 7
    %p246 = por %p244, %p245
    %p247 = scmp.ne.s32.totalorder %s236, %s237
    %p248 = scmp.eq.s32.totalorder %s23, 0
    %p249 = por %p247, %p248
    %p250 = scmp.ne.s32.totalorder %s236, %s237
    %p251 = scmp.eq.s32.totalorder %s24, 7
    %p252 = por %p250, %p251
    %p254 = scmp.ne.s32.totalorder %s237, %s253
    %p255 = scmp.eq.s32.totalorder %s24, 0
    %p256 = por %p254, %p255
    %s257 = ssub.s32 %s26, %s33
    %p258 = scmp.eq.s32.totalorder %s257, 0
    %s260 = sadd.s32 %s259, 1
    %s261 = scalar_select %p258, %s259, %s260
    %p264 = pneg %p258
    %p265 = scmp.eq.s32.totalorder %s18, 7
    %p266 = por %p264, %p265
    %p267 = scmp.ne.s32.totalorder %s259, %s262
    %p268 = scmp.eq.s32.totalorder %s18, 0
    %p269 = por %p267, %p268
    %p270 = scmp.ne.s32.totalorder %s259, %s262
    %p271 = scmp.eq.s32.totalorder %s23, 7
    %p272 = por %p270, %p271
    %p273 = scmp.ne.s32.totalorder %s262, %s263
    %p274 = scmp.eq.s32.totalorder %s23, 0
    %p275 = por %p273, %p274
    %p276 = scmp.ne.s32.totalorder %s262, %s263
    %p277 = scmp.eq.s32.totalorder %s24, 7
    %p278 = por %p276, %p277
    %p280 = scmp.ne.s32.totalorder %s263, %s279
    %p281 = scmp.eq.s32.totalorder %s24, 0
    %p282 = por %p280, %p281
    %s283 = ssub.s32 %s26, %s33
    %p284 = scmp.eq.s32.totalorder %s283, 0
    %s286 = sadd.s32 %s285, 1
    %s287 = scalar_select %p284, %s285, %s286
    %p290 = pneg %p284
    %p291 = scmp.eq.s32.totalorder %s18, 7
    %p292 = por %p290, %p291
    %p293 = scmp.ne.s32.totalorder %s285, %s288
    %p294 = scmp.eq.s32.totalorder %s18, 0
    %p295 = por %p293, %p294
    %p296 = scmp.ne.s32.totalorder %s285, %s288
    %p297 = scmp.eq.s32.totalorder %s23, 7
    %p298 = por %p296, %p297
    %p299 = scmp.ne.s32.totalorder %s288, %s289
    %p300 = scmp.eq.s32.totalorder %s23, 0
    %p301 = por %p299, %p300
    %p302 = scmp.ne.s32.totalorder %s288, %s289
    %p303 = scmp.eq.s32.totalorder %s24, 7
    %p304 = por %p302, %p303
    %p306 = scmp.ne.s32.totalorder %s289, %s305
    %p307 = scmp.eq.s32.totalorder %s24, 0
    %p308 = por %p306, %p307
    %s309 = ssub.s32 %s26, %s33
    %p310 = scmp.eq.s32.totalorder %s309, 0
    %s312 = sadd.s32 %s311, 1
    %s313 = scalar_select %p310, %s311, %s312
    %p316 = pneg %p310
    %p317 = scmp.eq.s32.totalorder %s18, 7
    %p318 = por %p316, %p317
    %p319 = scmp.ne.s32.totalorder %s311, %s314
    %p320 = scmp.eq.s32.totalorder %s18, 0
    %p321 = por %p319, %p320
    %p322 = scmp.ne.s32.totalorder %s311, %s314
    %p323 = scmp.eq.s32.totalorder %s23, 7
    %p324 = por %p322, %p323
    %p325 = scmp.ne.s32.totalorder %s314, %s315
    %p326 = scmp.eq.s32.totalorder %s23, 0
    %p327 = por %p325, %p326
    %p328 = scmp.ne.s32.totalorder %s314, %s315
    %p329 = scmp.eq.s32.totalorder %s24, 7
    %p330 = por %p328, %p329
    %p332 = scmp.ne.s32.totalorder %s315, %s331
    %p333 = scmp.eq.s32.totalorder %s24, 0
    %p334 = por %p332, %p333
    %s335 = ssub.s32 %s25, %s37
    %p336 = scmp.eq.s32.totalorder %s335, 0
    %s338 = sadd.s32 %s337, 1
    %s339 = scalar_select %p336, %s337, %s338
    %p342 = pneg %p336
    %p343 = scmp.eq.s32.totalorder %s18, 7
    %p344 = por %p342, %p343
    %p345 = scmp.ne.s32.totalorder %s337, %s340
    %p346 = scmp.eq.s32.totalorder %s18, 0
    %p347 = por %p345, %p346
    %p348 = scmp.ne.s32.totalorder %s337, %s340
    %p349 = scmp.eq.s32.totalorder %s23, 7
    %p350 = por %p348, %p349
    %p351 = scmp.ne.s32.totalorder %s340, %s341
    %p352 = scmp.eq.s32.totalorder %s23, 0
    %p353 = por %p351, %p352
    %p354 = scmp.ne.s32.totalorder %s340, %s341
    %p355 = scmp.eq.s32.totalorder %s24, 7
    %p356 = por %p354, %p355
    %p358 = scmp.ne.s32.totalorder %s341, %s357
    %p359 = scmp.eq.s32.totalorder %s24, 0
    %p360 = por %p358, %p359
    %p361 = scmp.le.s32.totalorder 1, %s18
    %p362 = scmp.lt.s32.totalorder %s18, 9
    %p363 = pnand %p361, %p362
    %p364 = pneg %p363
    // Predicated region
    $region9: #{fno_forward.4} parent=5 // pred_check
      _
    $region10: #{fno_forward.4} parent=5 // pred_check_branch
      %366 = sbr.rel (%p363) target = $region12
    $region11: #{fno_forward.4} parent=5 // pred_region
      %s367 = ssub.s32 %s18, 1
      // Predicated region
      $region13: #{fno_forward.4} parent=11 // pred_check
        %p368 = pneg %p77
      $region14: #{fno_forward.4} parent=11 // pred_check_branch
        %370 = sbr.rel (%p368) target = $region16
      $region15: #{fno_forward.4} parent=11 // pred_region
        _
      $region16: #{fno_forward.4} parent=11 // pred_fallthru
        _
      // Predicated region
      $region17: #{fno_forward.4} parent=11 // pred_check
        %p371 = pneg %p98
      $region18: #{fno_forward.4} parent=11 // pred_check_branch
        %373 = sbr.rel (%p371) target = $region20
      $region19: #{fno_forward.4} parent=11 // pred_region
        _
      $region20: #{fno_forward.4} parent=11 // pred_fallthru
        _
      // Predicated region
      $region21: #{fno_forward.4} parent=11 // pred_check
        %p374 = pneg %p119
      $region22: #{fno_forward.4} parent=11 // pred_check_branch
        %376 = sbr.rel (%p374) target = $region24
      $region23: #{fno_forward.4} parent=11 // pred_region
        _
      $region24: #{fno_forward.4} parent=11 // pred_fallthru
        _
    $region12: #{fno_forward.4} parent=5 // pred_fallthru
      _
    %p377 = scmp.lt.s32.totalorder %s18, 8
    // Predicated region
    $region25: #{fno_forward.4} parent=5 // pred_check
      %p378 = pneg %p377
    $region26: #{fno_forward.4} parent=5 // pred_check_branch
      %380 = sbr.rel (%p378) target = $region28
    $region27: #{fno_forward.4} parent=5 // pred_region
      // Predicated region
      $region29: #{fno_forward.4} parent=27 // pred_check
        %p381 = pneg %p50
      $region30: #{fno_forward.4} parent=27 // pred_check_branch
        %383 = sbr.rel (%p381) target = $region32
      $region31: #{fno_forward.4} parent=27 // pred_region
        %p384 = scmp.lt.s32.totalorder %s25, 1
        %s385 = scalar_select %p384, %s25, 1
        %s386 = smul.addr %s385, 4
        %s387 = smul.addr %s386, 8
        %s388 = scalar_lea.vmem %s0, %s387
      $region32: #{fno_forward.4} parent=27 // pred_fallthru
        _
      // Predicated region
      $region33: #{fno_forward.4} parent=27 // pred_check
        %p389 = pneg %p139
      $region34: #{fno_forward.4} parent=27 // pred_check_branch
        %391 = sbr.rel (%p389) target = $region36
      $region35: #{fno_forward.4} parent=27 // pred_region
        %p392 = scmp.lt.s32.totalorder %s26, 3
        %s393 = scalar_select %p392, %s26, 3
        %s394 = smul.addr %s393, 8
        %s395 = smul.addr %s394, 8
        %s396 = scalar_lea.vmem %s4, %s395
      $region36: #{fno_forward.4} parent=27 // pred_fallthru
        _
      // Predicated region
      $region37: #{fno_forward.4} parent=27 // pred_check
        %p397 = pneg %p165
      $region38: #{fno_forward.4} parent=27 // pred_check_branch
        %399 = sbr.rel (%p397) target = $region40
      $region39: #{fno_forward.4} parent=27 // pred_region
        %p400 = scmp.lt.s32.totalorder %s26, 3
        %s401 = scalar_select %p400, %s26, 3
        %s402 = smul.addr %s401, 8
        %s403 = smul.addr %s402, 8
        %s404 = scalar_lea.vmem %s5, %s403
      $region40: #{fno_forward.4} parent=27 // pred_fallthru
        _
      // Predicated region
      $region41: #{fno_forward.4} parent=27 // pred_check
        %p405 = pneg %p191
      $region42: #{fno_forward.4} parent=27 // pred_check_branch
        %407 = sbr.rel (%p405) target = $region44
      $region43: #{fno_forward.4} parent=27 // pred_region
        %p408 = scmp.lt.s32.totalorder %s26, 3
        %s409 = scalar_select %p408, %s26, 3
        %s410 = smul.addr %s409, 8
        %s411 = scalar_lea.vmem %s6, %s410
      $region44: #{fno_forward.4} parent=27 // pred_fallthru
        _
      // Predicated region
      $region45: #{fno_forward.4} parent=27 // pred_check
        %p412 = pneg %p217
      $region46: #{fno_forward.4} parent=27 // pred_check_branch
        %414 = sbr.rel (%p412) target = $region48
      $region47: #{fno_forward.4} parent=27 // pred_region
        %p415 = scmp.lt.s32.totalorder %s26, 3
        %s416 = scalar_select %p415, %s26, 3
        %s417 = smul.addr %s416, 8
        %s418 = scalar_lea.vmem %s7, %s417
      $region48: #{fno_forward.4} parent=27 // pred_fallthru
        _
      // Predicated region
      $region49: #{fno_forward.4} parent=27 // pred_check
        %p419 = pneg %p243
      $region50: #{fno_forward.4} parent=27 // pred_check_branch
        %421 = sbr.rel (%p419) target = $region52
      $region51: #{fno_forward.4} parent=27 // pred_region
        %p422 = scmp.lt.s32.totalorder %s26, 3
        %s423 = scalar_select %p422, %s26, 3
        %s424 = smul.addr %s423, 8
        %s425 = scalar_lea.vmem %s8, %s424
      $region52: #{fno_forward.4} parent=27 // pred_fallthru
        _
      // Predicated region
      $region53: #{fno_forward.4} parent=27 // pred_check
        %p426 = pneg %p269
      $region54: #{fno_forward.4} parent=27 // pred_check_branch
        %428 = sbr.rel (%p426) target = $region56
      $region55: #{fno_forward.4} parent=27 // pred_region
        %p429 = scmp.lt.s32.totalorder %s26, 3
        %s430 = scalar_select %p429, %s26, 3
        %s431 = smul.addr %s430, 8
        %s432 = scalar_lea.vmem %s9, %s431
      $region56: #{fno_forward.4} parent=27 // pred_fallthru
        _
      // Predicated region
      $region57: #{fno_forward.4} parent=27 // pred_check
        %p433 = pneg %p295
      $region58: #{fno_forward.4} parent=27 // pred_check_branch
        %435 = sbr.rel (%p433) target = $region60
      $region59: #{fno_forward.4} parent=27 // pred_region
        %p436 = scmp.lt.s32.totalorder %s26, 3
        %s437 = scalar_select %p436, %s26, 3
        %s438 = smul.addr %s437, 8
        %s439 = scalar_lea.vmem %s10, %s438
      $region60: #{fno_forward.4} parent=27 // pred_fallthru
        _
      // Predicated region
      $region61: #{fno_forward.4} parent=27 // pred_check
        %p440 = pneg %p321
      $region62: #{fno_forward.4} parent=27 // pred_check_branch
        %442 = sbr.rel (%p440) target = $region64
      $region63: #{fno_forward.4} parent=27 // pred_region
        %p443 = scmp.lt.s32.totalorder %s26, 3
        %s444 = scalar_select %p443, %s26, 3
        %s445 = smul.addr %s444, 8
        %s446 = scalar_lea.vmem %s11, %s445
      $region64: #{fno_forward.4} parent=27 // pred_fallthru
        _
    $region28: #{fno_forward.4} parent=5 // pred_fallthru
      _
    %p447 = scmp.le.s32.totalorder 1, %s18
    %p448 = scmp.lt.s32.totalorder %s18, 9
    %p449 = pnand %p447, %p448
    %p450 = pneg %p449
    // Predicated region
    $region65: #{fno_forward.4} parent=5 // pred_check
      _
    $region66: #{fno_forward.4} parent=5 // pred_check_branch
      %452 = sbr.rel (%p449) target = $region68
    $region67: #{fno_forward.4} parent=5 // pred_region
      %s453 = ssub.s32 %s18, 1
      %p454 = scmp.lt.s32.totalorder %s27, 1
      %s455 = scalar_select %p454, %s27, 1
      %s456 = smul.addr %s455, 4
      %s457 = smul.addr %s456, 8
      %s458 = scalar_lea.vmem %s0, %s457
      %p459 = pneg %p56
      %p460 = pneg %p53
      %p461 = pneg %p77
      %p462 = pneg %p74
      %p463 = pneg %p98
      %p464 = pneg %p95
      %p465 = pneg %p119
      %p466 = pneg %p116
      %p467 = scmp.lt.s32.totalorder %s28, 3
      %s468 = scalar_select %p467, %s28, 3
      %s469 = smul.addr %s468, 8
      %s470 = smul.addr %s469, 8
      %s471 = scalar_lea.vmem %s4, %s470
      %p472 = pneg %p145
      %p473 = pneg %p142
      %p474 = scmp.lt.s32.totalorder %s28, 3
      %s475 = scalar_select %p474, %s28, 3
      %s476 = smul.addr %s475, 8
      %s477 = smul.addr %s476, 8
      %s478 = scalar_lea.vmem %s5, %s477
      %p479 = pneg %p171
      %p480 = pneg %p168
      %p481 = scmp.lt.s32.totalorder %s28, 3
      %s482 = scalar_select %p481, %s28, 3
      %s483 = smul.addr %s482, 8
      %s484 = scalar_lea.vmem %s6, %s483
      %p485 = pneg %p197
      %p486 = pneg %p194
      %p487 = scmp.lt.s32.totalorder %s28, 3
      %s488 = scalar_select %p487, %s28, 3
      %s489 = smul.addr %s488, 8
      %s490 = scalar_lea.vmem %s7, %s489
      %p491 = pneg %p223
      %p492 = pneg %p220
      %p493 = scmp.lt.s32.totalorder %s28, 3
      %s494 = scalar_select %p493, %s28, 3
      %s495 = smul.addr %s494, 8
      %s496 = scalar_lea.vmem %s8, %s495
      %p497 = pneg %p249
      %p498 = pneg %p246
      %p499 = scmp.lt.s32.totalorder %s28, 3
      %s500 = scalar_select %p499, %s28, 3
      %s501 = smul.addr %s500, 8
      %s502 = scalar_lea.vmem %s9, %s501
      %p503 = pneg %p275
      %p504 = pneg %p272
      %p505 = scmp.lt.s32.totalorder %s28, 3
      %s506 = scalar_select %p505, %s28, 3
      %s507 = smul.addr %s506, 8
      %s508 = scalar_lea.vmem %s10, %s507
      %p509 = pneg %p301
      %p510 = pneg %p298
      %p511 = scmp.lt.s32.totalorder %s28, 3
      %s512 = scalar_select %p511, %s28, 3
      %s513 = smul.addr %s512, 8
      %s514 = scalar_lea.vmem %s11, %s513
      %p515 = pneg %p327
      %p516 = pneg %p324
      %p517 = pneg %p353
      %p518 = pneg %p350
      %p519 = scmp.lt.s32.totalorder %s27, 1
      %s520 = scalar_select %p519, %s27, 1
      %s521 = smul.addr %s520, 4
      %s522 = smul.addr %s521, 8
      %s523 = scalar_lea.vmem %s12, %s522
      %p524 = scmp.lt.s32.totalorder %s27, 1
      %s525 = scalar_select %p524, %s27, 1
      %s526 = smul.addr %s525, 4
      %s527 = smul.addr %s526, 8
      %s528 = scalar_lea.vmem %s0, %s527
      %p529 = scmp.lt.s32.totalorder %s28, 3
      %s530 = scalar_select %p529, %s28, 3
      %s531 = smul.addr %s530, 8
      %s532 = smul.addr %s531, 8
      %s533 = scalar_lea.vmem %s4, %s532
      %p534 = scmp.lt.s32.totalorder %s28, 3
      %s535 = scalar_select %p534, %s28, 3
      %s536 = smul.addr %s535, 8
      %s537 = smul.addr %s536, 8
      %s538 = scalar_lea.vmem %s5, %s537
      %p539 = scmp.lt.s32.totalorder %s28, 3
      %s540 = scalar_select %p539, %s28, 3
      %s541 = smul.addr %s540, 8
      %s542 = scalar_lea.vmem %s6, %s541
      %p543 = scmp.lt.s32.totalorder %s28, 3
      %s544 = scalar_select %p543, %s28, 3
      %s545 = smul.addr %s544, 8
      %s546 = scalar_lea.vmem %s7, %s545
      %p547 = scmp.lt.s32.totalorder %s28, 3
      %s548 = scalar_select %p547, %s28, 3
      %s549 = smul.addr %s548, 8
      %s550 = scalar_lea.vmem %s8, %s549
      %p551 = scmp.lt.s32.totalorder %s28, 3
      %s552 = scalar_select %p551, %s28, 3
      %s553 = smul.addr %s552, 8
      %s554 = scalar_lea.vmem %s9, %s553
      %p555 = scmp.lt.s32.totalorder %s28, 3
      %s556 = scalar_select %p555, %s28, 3
      %s557 = smul.addr %s556, 8
      %s558 = scalar_lea.vmem %s10, %s557
      %p559 = scmp.lt.s32.totalorder %s28, 3
      %s560 = scalar_select %p559, %s28, 3
      %s561 = smul.addr %s560, 8
      %s562 = scalar_lea.vmem %s11, %s561
      %p563 = scmp.lt.s32.totalorder %s27, 1
      %s564 = scalar_select %p563, %s27, 1
      %s565 = smul.addr %s564, 4
      %s566 = smul.addr %s565, 8
      %s567 = scalar_lea.vmem %s12, %s566
      %p568 = scmp.eq.s32.totalorder %s28, 0
      // Predicated region
      $region69: #{fno_forward.4} parent=67 // pred_check
        %p569 = pneg %p568
      $region70: #{fno_forward.4} parent=67 // pred_check_branch
        %571 = sbr.rel (%p569) target = $region72
      $region71: #{fno_forward.4} parent=67 // pred_region
        %v572 = vld [vmem:[%s528] sm:$0xff]
        %v573 = vld [vmem:[%s528 + $0x8] sm:$0xff]
        %v574 = vld [vmem:[%s528 + $0x10] sm:$0xff]
        %v575 = vld [vmem:[%s528 + $0x18] sm:$0xff]
        %576 = vst [vmem:[#allocation2] sm:$0xff] %v572
        %577 = vst [vmem:[#allocation2 + $0x8] sm:$0xff] %v573
        %578 = vst [vmem:[#allocation2 + $0x10] sm:$0xff] %v574
        %579 = vst [vmem:[#allocation2 + $0x18] sm:$0xff] %v575
      $region72: #{fno_forward.4} parent=67 // pred_fallthru
        _
      %v580 = vld [vmem:[#allocation2] sm:$0xff]
      %v581 = vld [vmem:[#allocation2 + $0x8] sm:$0xff]
      %v582 = vld [vmem:[#allocation2 + $0x10] sm:$0xff]
      %v583 = vld [vmem:[#allocation2 + $0x18] sm:$0xff]
      %v584 = vld [vmem:[%s1] sm:$0xff]
      %v585 = vld [vmem:[%s1 + $0x8] sm:$0xff]
      %v586 = vld [vmem:[%s1 + $0x10] sm:$0xff]
      %v587 = vld [vmem:[%s1 + $0x18] sm:$0xff]
      %v588 = vld [vmem:[%s1 + $0x20] sm:$0xff]
      %v589 = vld [vmem:[%s1 + $0x28] sm:$0xff]
      %v590 = vld [vmem:[%s1 + $0x30] sm:$0xff]
      %v591 = vld [vmem:[%s1 + $0x38] sm:$0xff]
      %v592 = vld [vmem:[%s1 + $0x40] sm:$0xff]
      %v593 = vld [vmem:[%s1 + $0x48] sm:$0xff]
      %v594 = vld [vmem:[%s1 + $0x50] sm:$0xff]
      %v595 = vld [vmem:[%s1 + $0x58] sm:$0xff]
      %v596 = vld [vmem:[%s1 + $0x60] sm:$0xff]
      %v597 = vld [vmem:[%s1 + $0x68] sm:$0xff]
      %v598 = vld [vmem:[%s1 + $0x70] sm:$0xff]
      %v599 = vld [vmem:[%s1 + $0x78] sm:$0xff]
      %v600 = vld [vmem:[%s1 + $0x80] sm:$0xff]
      %v601 = vld [vmem:[%s1 + $0x88] sm:$0xff]
      %v602 = vld [vmem:[%s1 + $0x90] sm:$0xff]
      %v603 = vld [vmem:[%s1 + $0x98] sm:$0xff]
      %v604 = vld [vmem:[%s1 + $0xa0] sm:$0xff]
      %v605 = vld [vmem:[%s1 + $0xa8] sm:$0xff]
      %v606 = vld [vmem:[%s1 + $0xb0] sm:$0xff]
      %v607 = vld [vmem:[%s1 + $0xb8] sm:$0xff]
      %v608 = vld [vmem:[%s1 + $0xc0] sm:$0xff]
      %v609 = vld [vmem:[%s1 + $0xc8] sm:$0xff]
      %v610 = vld [vmem:[%s1 + $0xd0] sm:$0xff]
      %v611 = vld [vmem:[%s1 + $0xd8] sm:$0xff]
      %v612 = vld [vmem:[%s1 + $0xe0] sm:$0xff]
      %v613 = vld [vmem:[%s1 + $0xe8] sm:$0xff]
      %v614 = vld [vmem:[%s1 + $0xf0] sm:$0xff]
      %v615 = vld [vmem:[%s1 + $0xf8] sm:$0xff]
      %v616 = vld [vmem:[%s1 + $0x100] sm:$0xff]
      %v617 = vld [vmem:[%s1 + $0x108] sm:$0xff]
      %v618 = vld [vmem:[%s1 + $0x110] sm:$0xff]
      %v619 = vld [vmem:[%s1 + $0x118] sm:$0xff]
      %v620 = vld [vmem:[%s1 + $0x120] sm:$0xff]
      %v621 = vld [vmem:[%s1 + $0x128] sm:$0xff]
      %v622 = vld [vmem:[%s1 + $0x130] sm:$0xff]
      %v623 = vld [vmem:[%s1 + $0x138] sm:$0xff]
      %v624 = vld [vmem:[%s1 + $0x140] sm:$0xff]
      %v625 = vld [vmem:[%s1 + $0x148] sm:$0xff]
      %v626 = vld [vmem:[%s1 + $0x150] sm:$0xff]
      %v627 = vld [vmem:[%s1 + $0x158] sm:$0xff]
      %v628 = vld [vmem:[%s1 + $0x160] sm:$0xff]
      %v629 = vld [vmem:[%s1 + $0x168] sm:$0xff]
      %v630 = vld [vmem:[%s1 + $0x170] sm:$0xff]
      %v631 = vld [vmem:[%s1 + $0x178] sm:$0xff]
      %v632 = vld [vmem:[%s1 + $0x180] sm:$0xff]
      %v633 = vld [vmem:[%s1 + $0x188] sm:$0xff]
      %v634 = vld [vmem:[%s1 + $0x190] sm:$0xff]
      %v635 = vld [vmem:[%s1 + $0x198] sm:$0xff]
      %v636 = vld [vmem:[%s1 + $0x1a0] sm:$0xff]
      %v637 = vld [vmem:[%s1 + $0x1a8] sm:$0xff]
      %v638 = vld [vmem:[%s1 + $0x1b0] sm:$0xff]
      %v639 = vld [vmem:[%s1 + $0x1b8] sm:$0xff]
      %v640 = vld [vmem:[%s1 + $0x1c0] sm:$0xff]
      %v641 = vld [vmem:[%s1 + $0x1c8] sm:$0xff]
      %v642 = vld [vmem:[%s1 + $0x1d0] sm:$0xff]
      %v643 = vld [vmem:[%s1 + $0x1d8] sm:$0xff]
      %v644 = vld [vmem:[%s1 + $0x1e0] sm:$0xff]
      %v645 = vld [vmem:[%s1 + $0x1e8] sm:$0xff]
      %v646 = vld [vmem:[%s1 + $0x1f0] sm:$0xff]
      %v647 = vld [vmem:[%s1 + $0x1f8] sm:$0xff]
      %v648 = vld [vmem:[%s1 + $0x200] sm:$0xff]
      %v649 = vld [vmem:[%s1 + $0x208] sm:$0xff]
      %v650 = vld [vmem:[%s1 + $0x210] sm:$0xff]
      %v651 = vld [vmem:[%s1 + $0x218] sm:$0xff]
      %v652 = vld [vmem:[%s1 + $0x220] sm:$0xff]
      %v653 = vld [vmem:[%s1 + $0x228] sm:$0xff]
      %v654 = vld [vmem:[%s1 + $0x230] sm:$0xff]
      %v655 = vld [vmem:[%s1 + $0x238] sm:$0xff]
      %v656 = vld [vmem:[%s1 + $0x240] sm:$0xff]
      %v657 = vld [vmem:[%s1 + $0x248] sm:$0xff]
      %v658 = vld [vmem:[%s1 + $0x250] sm:$0xff]
      %v659 = vld [vmem:[%s1 + $0x258] sm:$0xff]
      %v660 = vld [vmem:[%s1 + $0x260] sm:$0xff]
      %v661 = vld [vmem:[%s1 + $0x268] sm:$0xff]
      %v662 = vld [vmem:[%s1 + $0x270] sm:$0xff]
      %v663 = vld [vmem:[%s1 + $0x278] sm:$0xff]
      %v664 = vld [vmem:[%s1 + $0x280] sm:$0xff]
      %v665 = vld [vmem:[%s1 + $0x288] sm:$0xff]
      %v666 = vld [vmem:[%s1 + $0x290] sm:$0xff]
      %v667 = vld [vmem:[%s1 + $0x298] sm:$0xff]
      %v668 = vld [vmem:[%s1 + $0x2a0] sm:$0xff]
      %v669 = vld [vmem:[%s1 + $0x2a8] sm:$0xff]
      %v670 = vld [vmem:[%s1 + $0x2b0] sm:$0xff]
      %v671 = vld [vmem:[%s1 + $0x2b8] sm:$0xff]
      %v672 = vld [vmem:[%s1 + $0x2c0] sm:$0xff]
      %v673 = vld [vmem:[%s1 + $0x2c8] sm:$0xff]
      %v674 = vld [vmem:[%s1 + $0x2d0] sm:$0xff]
      %v675 = vld [vmem:[%s1 + $0x2d8] sm:$0xff]
      %v676 = vld [vmem:[%s1 + $0x2e0] sm:$0xff]
      %v677 = vld [vmem:[%s1 + $0x2e8] sm:$0xff]
      %v678 = vld [vmem:[%s1 + $0x2f0] sm:$0xff]
      %v679 = vld [vmem:[%s1 + $0x2f8] sm:$0xff]
      %v680 = vld [vmem:[%s1 + $0x300] sm:$0xff]
      %v681 = vld [vmem:[%s1 + $0x308] sm:$0xff]
      %v682 = vld [vmem:[%s1 + $0x310] sm:$0xff]
      %v683 = vld [vmem:[%s1 + $0x318] sm:$0xff]
      %v684 = vld [vmem:[%s1 + $0x320] sm:$0xff]
      %v685 = vld [vmem:[%s1 + $0x328] sm:$0xff]
      %v686 = vld [vmem:[%s1 + $0x330] sm:$0xff]
      %v687 = vld [vmem:[%s1 + $0x338] sm:$0xff]
      %v688 = vld [vmem:[%s1 + $0x340] sm:$0xff]
      %v689 = vld [vmem:[%s1 + $0x348] sm:$0xff]
      %v690 = vld [vmem:[%s1 + $0x350] sm:$0xff]
      %v691 = vld [vmem:[%s1 + $0x358] sm:$0xff]
      %v692 = vld [vmem:[%s1 + $0x360] sm:$0xff]
      %v693 = vld [vmem:[%s1 + $0x368] sm:$0xff]
      %v694 = vld [vmem:[%s1 + $0x370] sm:$0xff]
      %v695 = vld [vmem:[%s1 + $0x378] sm:$0xff]
      %v696 = vld [vmem:[%s1 + $0x380] sm:$0xff]
      %v697 = vld [vmem:[%s1 + $0x388] sm:$0xff]
      %v698 = vld [vmem:[%s1 + $0x390] sm:$0xff]
      %v699 = vld [vmem:[%s1 + $0x398] sm:$0xff]
      %v700 = vld [vmem:[%s1 + $0x3a0] sm:$0xff]
      %v701 = vld [vmem:[%s1 + $0x3a8] sm:$0xff]
      %v702 = vld [vmem:[%s1 + $0x3b0] sm:$0xff]
      %v703 = vld [vmem:[%s1 + $0x3b8] sm:$0xff]
      %v704 = vld [vmem:[%s1 + $0x3c0] sm:$0xff]
      %v705 = vld [vmem:[%s1 + $0x3c8] sm:$0xff]
      %v706 = vld [vmem:[%s1 + $0x3d0] sm:$0xff]
      %v707 = vld [vmem:[%s1 + $0x3d8] sm:$0xff]
      %v708 = vld [vmem:[%s1 + $0x3e0] sm:$0xff]
      %v709 = vld [vmem:[%s1 + $0x3e8] sm:$0xff]
      %v710 = vld [vmem:[%s1 + $0x3f0] sm:$0xff]
      %v711 = vld [vmem:[%s1 + $0x3f8] sm:$0xff]
      %712 = vmatpush.msra.mxu0 %v614
      %713 = vmatpush.msra.mxu0 %v612
      %714 = vmatpush.msra.mxu0 %v610
      %715 = vmatpush.msra.mxu0 %v608
      %716 = vmatpush.msra.mxu0 %v606
      %717 = vmatpush.msra.mxu0 %v604
      %718 = vmatpush.msra.mxu0 %v602
      %719 = vmatpush.msra.mxu0 %v600
      %720 = vmatpush.msra.mxu0 %v598
      %721 = vmatpush.msra.mxu0 %v596
      %722 = vmatpush.msra.mxu0 %v594
      %723 = vmatpush.msra.mxu0 %v592
      %724 = vmatpush.msra.mxu0 %v590
      %725 = vmatpush.msra.mxu0 %v588
      %726 = vmatpush.msra.mxu0 %v586
      %727 = vmatpush.msra.mxu0 %v584
      %728 = vmatmul.f32.gmra.mxu0 %v580
      %v729 = vpop.f32.mrf.mxu0
      %v730 = vadd.f32 0.0, %v729
      %731 = vdwg.mxu0
      %732 = vmatpush.msra.mxu0 %v646
      %733 = vmatpush.msra.mxu0 %v644
      %734 = vmatpush.msra.mxu0 %v642
      %735 = vmatpush.msra.mxu0 %v640
      %736 = vmatpush.msra.mxu0 %v638
      %737 = vmatpush.msra.mxu0 %v636
      %738 = vmatpush.msra.mxu0 %v634
      %739 = vmatpush.msra.mxu0 %v632
      %740 = vmatpush.msra.mxu0 %v630
      %741 = vmatpush.msra.mxu0 %v628
      %742 = vmatpush.msra.mxu0 %v626
      %743 = vmatpush.msra.mxu0 %v624
      %744 = vmatpush.msra.mxu0 %v622
      %745 = vmatpush.msra.mxu0 %v620
      %746 = vmatpush.msra.mxu0 %v618
      %747 = vmatpush.msra.mxu0 %v616
      %748 = vmatmul.f32.gmra.mxu0 %v581
      %v749 = vpop.f32.mrf.mxu0
      %v750 = vadd.f32 %v730, %v749
      %751 = vdwg.mxu0
      %752 = vmatpush.msra.mxu0 %v678
      %753 = vmatpush.msra.mxu0 %v676
      %754 = vmatpush.msra.mxu0 %v674
      %755 = vmatpush.msra.mxu0 %v672
      %756 = vmatpush.msra.mxu0 %v670
      %757 = vmatpush.msra.mxu0 %v668
      %758 = vmatpush.msra.mxu0 %v666
      %759 = vmatpush.msra.mxu0 %v664
      %760 = vmatpush.msra.mxu0 %v662
      %761 = vmatpush.msra.mxu0 %v660
      %762 = vmatpush.msra.mxu0 %v658
      %763 = vmatpush.msra.mxu0 %v656
      %764 = vmatpush.msra.mxu0 %v654
      %765 = vmatpush.msra.mxu0 %v652
      %766 = vmatpush.msra.mxu0 %v650
      %767 = vmatpush.msra.mxu0 %v648
      %768 = vmatmul.f32.gmra.mxu0 %v582
      %v769 = vpop.f32.mrf.mxu0
      %v770 = vadd.f32 %v750, %v769
      %771 = vdwg.mxu0
      %772 = vmatpush.msra.mxu0 %v710
      %773 = vmatpush.msra.mxu0 %v708
      %774 = vmatpush.msra.mxu0 %v706
      %775 = vmatpush.msra.mxu0 %v704
      %776 = vmatpush.msra.mxu0 %v702
      %777 = vmatpush.msra.mxu0 %v700
      %778 = vmatpush.msra.mxu0 %v698
      %779 = vmatpush.msra.mxu0 %v696
      %780 = vmatpush.msra.mxu0 %v694
      %781 = vmatpush.msra.mxu0 %v692
      %782 = vmatpush.msra.mxu0 %v690
      %783 = vmatpush.msra.mxu0 %v688
      %784 = vmatpush.msra.mxu0 %v686
      %785 = vmatpush.msra.mxu0 %v684
      %786 = vmatpush.msra.mxu0 %v682
      %787 = vmatpush.msra.mxu0 %v680
      %788 = vmatmul.f32.gmra.mxu0 %v583
      %v789 = vpop.f32.mrf.mxu0
      %v790 = vadd.f32 %v770, %v789
      %791 = vdwg.mxu0
      %792 = vmatpush.msra.mxu0 %v615
      %793 = vmatpush.msra.mxu0 %v613
      %794 = vmatpush.msra.mxu0 %v611
      %795 = vmatpush.msra.mxu0 %v609
      %796 = vmatpush.msra.mxu0 %v607
      %797 = vmatpush.msra.mxu0 %v605
      %798 = vmatpush.msra.mxu0 %v603
      %799 = vmatpush.msra.mxu0 %v601
      %800 = vmatpush.msra.mxu0 %v599
      %801 = vmatpush.msra.mxu0 %v597
      %802 = vmatpush.msra.mxu0 %v595
      %803 = vmatpush.msra.mxu0 %v593
      %804 = vmatpush.msra.mxu0 %v591
      %805 = vmatpush.msra.mxu0 %v589
      %806 = vmatpush.msra.mxu0 %v587
      %807 = vmatpush.msra.mxu0 %v585
      %808 = vmatmul.f32.gmra.mxu0 %v580
      %v809 = vpop.f32.mrf.mxu0
      %v810 = vadd.f32 0.0, %v809
      %811 = vdwg.mxu0
      %812 = vmatpush.msra.mxu0 %v647
      %813 = vmatpush.msra.mxu0 %v645
      %814 = vmatpush.msra.mxu0 %v643
      %815 = vmatpush.msra.mxu0 %v641
      %816 = vmatpush.msra.mxu0 %v639
      %817 = vmatpush.msra.mxu0 %v637
      %818 = vmatpush.msra.mxu0 %v635
      %819 = vmatpush.msra.mxu0 %v633
      %820 = vmatpush.msra.mxu0 %v631
      %821 = vmatpush.msra.mxu0 %v629
      %822 = vmatpush.msra.mxu0 %v627
      %823 = vmatpush.msra.mxu0 %v625
      %824 = vmatpush.msra.mxu0 %v623
      %825 = vmatpush.msra.mxu0 %v621
      %826 = vmatpush.msra.mxu0 %v619
      %827 = vmatpush.msra.mxu0 %v617
      %828 = vmatmul.f32.gmra.mxu0 %v581
      %v829 = vpop.f32.mrf.mxu0
      %v830 = vadd.f32 %v810, %v829
      %831 = vdwg.mxu0
      %832 = vmatpush.msra.mxu0 %v679
      %833 = vmatpush.msra.mxu0 %v677
      %834 = vmatpush.msra.mxu0 %v675
      %835 = vmatpush.msra.mxu0 %v673
      %836 = vmatpush.msra.mxu0 %v671
      %837 = vmatpush.msra.mxu0 %v669
      %838 = vmatpush.msra.mxu0 %v667
      %839 = vmatpush.msra.mxu0 %v665
      %840 = vmatpush.msra.mxu0 %v663
      %841 = vmatpush.msra.mxu0 %v661
      %842 = vmatpush.msra.mxu0 %v659
      %843 = vmatpush.msra.mxu0 %v657
      %844 = vmatpush.msra.mxu0 %v655
      %845 = vmatpush.msra.mxu0 %v653
      %846 = vmatpush.msra.mxu0 %v651
      %847 = vmatpush.msra.mxu0 %v649
      %848 = vmatmul.f32.gmra.mxu0 %v582
      %v849 = vpop.f32.mrf.mxu0
      %v850 = vadd.f32 %v830, %v849
      %851 = vdwg.mxu0
      %852 = vmatpush.msra.mxu0 %v711
      %853 = vmatpush.msra.mxu0 %v709
      %854 = vmatpush.msra.mxu0 %v707
      %855 = vmatpush.msra.mxu0 %v705
      %856 = vmatpush.msra.mxu0 %v703
      %857 = vmatpush.msra.mxu0 %v701
      %858 = vmatpush.msra.mxu0 %v699
      %859 = vmatpush.msra.mxu0 %v697
      %860 = vmatpush.msra.mxu0 %v695
      %861 = vmatpush.msra.mxu0 %v693
      %862 = vmatpush.msra.mxu0 %v691
      %863 = vmatpush.msra.mxu0 %v689
      %864 = vmatpush.msra.mxu0 %v687
      %865 = vmatpush.msra.mxu0 %v685
      %866 = vmatpush.msra.mxu0 %v683
      %867 = vmatpush.msra.mxu0 %v681
      %868 = vmatmul.f32.gmra.mxu0 %v583
      %v869 = vpop.f32.mrf.mxu0
      %v870 = vadd.f32 %v850, %v869
      %871 = vdwg.mxu0
      %v872 = vld [vmem:[%s533] sm:$0xff]
      %v873 = vld [vmem:[%s533 + $0x8] sm:$0xff]
      %v874 = vld [vmem:[%s533 + $0x10] sm:$0xff]
      %v875 = vld [vmem:[%s533 + $0x18] sm:$0xff]
      %v876 = vld [vmem:[%s533 + $0x20] sm:$0xff]
      %v877 = vld [vmem:[%s533 + $0x28] sm:$0xff]
      %v878 = vld [vmem:[%s533 + $0x30] sm:$0xff]
      %v879 = vld [vmem:[%s533 + $0x38] sm:$0xff]
      %v880 = vld [vmem:[%s538] sm:$0xff]
      %v881 = vld [vmem:[%s538 + $0x8] sm:$0xff]
      %v882 = vld [vmem:[%s538 + $0x10] sm:$0xff]
      %v883 = vld [vmem:[%s538 + $0x18] sm:$0xff]
      %v884 = vld [vmem:[%s538 + $0x20] sm:$0xff]
      %v885 = vld [vmem:[%s538 + $0x28] sm:$0xff]
      %v886 = vld [vmem:[%s538 + $0x30] sm:$0xff]
      %v887 = vld [vmem:[%s538 + $0x38] sm:$0xff]
      %v888 = vmul.f32 %v790, %v872
      %v889 = vmul.f32 %v790, %v873
      %v890 = vmul.f32 %v790, %v874
      %v891 = vmul.f32 %v790, %v875
      %v892 = vmul.f32 %v790, %v876
      %v893 = vmul.f32 %v790, %v877
      %v894 = vmul.f32 %v790, %v878
      %v895 = vmul.f32 %v790, %v879
      %v896 = vmul.f32 %v870, %v880
      %v897 = vmul.f32 %v870, %v881
      %v898 = vmul.f32 %v870, %v882
      %v899 = vmul.f32 %v870, %v883
      %v900 = vmul.f32 %v870, %v884
      %v901 = vmul.f32 %v870, %v885
      %v902 = vmul.f32 %v870, %v886
      %v903 = vmul.f32 %v870, %v887
      %v904 = vsub.f32 %v888, %v896
      %v905 = vsub.f32 %v889, %v897
      %v906 = vsub.f32 %v890, %v898
      %v907 = vsub.f32 %v891, %v899
      %v908 = vsub.f32 %v892, %v900
      %v909 = vsub.f32 %v893, %v901
      %v910 = vsub.f32 %v894, %v902
      %v911 = vsub.f32 %v895, %v903
      %v912 = vrot.slane %v904, 4
      %v913 = vadd.f32 %v904, %v912
      %v914 = vrot.slane %v913, 2
      %v915 = vadd.f32 %v913, %v914
      %v916 = vrot.slane %v915, 1
      %v917 = vadd.f32 %v915, %v916
      %v918 = vrot.slane %v905, 4
      %v919 = vadd.f32 %v905, %v918
      %v920 = vrot.slane %v919, 2
      %v921 = vadd.f32 %v919, %v920
      %v922 = vrot.slane %v921, 1
      %v923 = vadd.f32 %v921, %v922
      %v924 = vrot.slane %v906, 4
      %v925 = vadd.f32 %v906, %v924
      %v926 = vrot.slane %v925, 2
      %v927 = vadd.f32 %v925, %v926
      %v928 = vrot.slane %v927, 1
      %v929 = vadd.f32 %v927, %v928
      %v930 = vrot.slane %v907, 4
      %v931 = vadd.f32 %v907, %v930
      %v932 = vrot.slane %v931, 2
      %v933 = vadd.f32 %v931, %v932
      %v934 = vrot.slane %v933, 1
      %v935 = vadd.f32 %v933, %v934
      %v936 = vrot.slane %v908, 4
      %v937 = vadd.f32 %v908, %v936
      %v938 = vrot.slane %v937, 2
      %v939 = vadd.f32 %v937, %v938
      %v940 = vrot.slane %v939, 1
      %v941 = vadd.f32 %v939, %v940
      %v942 = vrot.slane %v909, 4
      %v943 = vadd.f32 %v909, %v942
      %v944 = vrot.slane %v943, 2
      %v945 = vadd.f32 %v943, %v944
      %v946 = vrot.slane %v945, 1
      %v947 = vadd.f32 %v945, %v946
      %v948 = vrot.slane %v910, 4
      %v949 = vadd.f32 %v910, %v948
      %v950 = vrot.slane %v949, 2
      %v951 = vadd.f32 %v949, %v950
      %v952 = vrot.slane %v951, 1
      %v953 = vadd.f32 %v951, %v952
      %v954 = vrot.slane %v911, 4
      %v955 = vadd.f32 %v911, %v954
      %v956 = vrot.slane %v955, 2
      %v957 = vadd.f32 %v955, %v956
      %v958 = vrot.slane %v957, 1
      %v959 = vadd.f32 %v957, %v958
      %v960 = vmul.f32 %v790, %v880
      %v961 = vmul.f32 %v790, %v881
      %v962 = vmul.f32 %v790, %v882
      %v963 = vmul.f32 %v790, %v883
      %v964 = vmul.f32 %v790, %v884
      %v965 = vmul.f32 %v790, %v885
      %v966 = vmul.f32 %v790, %v886
      %v967 = vmul.f32 %v790, %v887
      %v968 = vmul.f32 %v870, %v872
      %v969 = vmul.f32 %v870, %v873
      %v970 = vmul.f32 %v870, %v874
      %v971 = vmul.f32 %v870, %v875
      %v972 = vmul.f32 %v870, %v876
      %v973 = vmul.f32 %v870, %v877
      %v974 = vmul.f32 %v870, %v878
      %v975 = vmul.f32 %v870, %v879
      %v976 = vadd.f32 %v960, %v968
      %v977 = vadd.f32 %v961, %v969
      %v978 = vadd.f32 %v962, %v970
      %v979 = vadd.f32 %v963, %v971
      %v980 = vadd.f32 %v964, %v972
      %v981 = vadd.f32 %v965, %v973
      %v982 = vadd.f32 %v966, %v974
      %v983 = vadd.f32 %v967, %v975
      %v984 = vrot.slane %v976, 4
      %v985 = vadd.f32 %v976, %v984
      %v986 = vrot.slane %v985, 2
      %v987 = vadd.f32 %v985, %v986
      %v988 = vrot.slane %v987, 1
      %v989 = vadd.f32 %v987, %v988
      %v990 = vrot.slane %v977, 4
      %v991 = vadd.f32 %v977, %v990
      %v992 = vrot.slane %v991, 2
      %v993 = vadd.f32 %v991, %v992
      %v994 = vrot.slane %v993, 1
      %v995 = vadd.f32 %v993, %v994
      %v996 = vrot.slane %v978, 4
      %v997 = vadd.f32 %v978, %v996
      %v998 = vrot.slane %v997, 2
      %v999 = vadd.f32 %v997, %v998
      %v1000 = vrot.slane %v999, 1
      %v1001 = vadd.f32 %v999, %v1000
      %v1002 = vrot.slane %v979, 4
      %v1003 = vadd.f32 %v979, %v1002
      %v1004 = vrot.slane %v1003, 2
      %v1005 = vadd.f32 %v1003, %v1004
      %v1006 = vrot.slane %v1005, 1
      %v1007 = vadd.f32 %v1005, %v1006
      %v1008 = vrot.slane %v980, 4
      %v1009 = vadd.f32 %v980, %v1008
      %v1010 = vrot.slane %v1009, 2
      %v1011 = vadd.f32 %v1009, %v1010
      %v1012 = vrot.slane %v1011, 1
      %v1013 = vadd.f32 %v1011, %v1012
      %v1014 = vrot.slane %v981, 4
      %v1015 = vadd.f32 %v981, %v1014
      %v1016 = vrot.slane %v1015, 2
      %v1017 = vadd.f32 %v1015, %v1016
      %v1018 = vrot.slane %v1017, 1
      %v1019 = vadd.f32 %v1017, %v1018
      %v1020 = vrot.slane %v982, 4
      %v1021 = vadd.f32 %v982, %v1020
      %v1022 = vrot.slane %v1021, 2
      %v1023 = vadd.f32 %v1021, %v1022
      %v1024 = vrot.slane %v1023, 1
      %v1025 = vadd.f32 %v1023, %v1024
      %v1026 = vrot.slane %v983, 4
      %v1027 = vadd.f32 %v983, %v1026
      %v1028 = vrot.slane %v1027, 2
      %v1029 = vadd.f32 %v1027, %v1028
      %v1030 = vrot.slane %v1029, 1
      %v1031 = vadd.f32 %v1029, %v1030
      %v1032 = vld [vmem:[%s2] sm:$0xff]
      %v1033 = vld [vmem:[%s2 + $0x8] sm:$0xff]
      %v1034 = vld [vmem:[%s2 + $0x10] sm:$0xff]
      %v1035 = vld [vmem:[%s2 + $0x18] sm:$0xff]
      %v1036 = vld [vmem:[%s2 + $0x20] sm:$0xff]
      %v1037 = vld [vmem:[%s2 + $0x28] sm:$0xff]
      %v1038 = vld [vmem:[%s2 + $0x30] sm:$0xff]
      %v1039 = vld [vmem:[%s2 + $0x38] sm:$0xff]
      %v1040 = vld [vmem:[%s2 + $0x40] sm:$0xff]
      %v1041 = vld [vmem:[%s2 + $0x48] sm:$0xff]
      %v1042 = vld [vmem:[%s2 + $0x50] sm:$0xff]
      %v1043 = vld [vmem:[%s2 + $0x58] sm:$0xff]
      %v1044 = vld [vmem:[%s2 + $0x60] sm:$0xff]
      %v1045 = vld [vmem:[%s2 + $0x68] sm:$0xff]
      %v1046 = vld [vmem:[%s2 + $0x70] sm:$0xff]
      %v1047 = vld [vmem:[%s2 + $0x78] sm:$0xff]
      %v1048 = vld [vmem:[%s2 + $0x80] sm:$0xff]
      %v1049 = vld [vmem:[%s2 + $0x88] sm:$0xff]
      %v1050 = vld [vmem:[%s2 + $0x90] sm:$0xff]
      %v1051 = vld [vmem:[%s2 + $0x98] sm:$0xff]
      %v1052 = vld [vmem:[%s2 + $0xa0] sm:$0xff]
      %v1053 = vld [vmem:[%s2 + $0xa8] sm:$0xff]
      %v1054 = vld [vmem:[%s2 + $0xb0] sm:$0xff]
      %v1055 = vld [vmem:[%s2 + $0xb8] sm:$0xff]
      %v1056 = vld [vmem:[%s2 + $0xc0] sm:$0xff]
      %v1057 = vld [vmem:[%s2 + $0xc8] sm:$0xff]
      %v1058 = vld [vmem:[%s2 + $0xd0] sm:$0xff]
      %v1059 = vld [vmem:[%s2 + $0xd8] sm:$0xff]
      %v1060 = vld [vmem:[%s2 + $0xe0] sm:$0xff]
      %v1061 = vld [vmem:[%s2 + $0xe8] sm:$0xff]
      %v1062 = vld [vmem:[%s2 + $0xf0] sm:$0xff]
      %v1063 = vld [vmem:[%s2 + $0xf8] sm:$0xff]
      %v1064 = vld [vmem:[%s2 + $0x100] sm:$0xff]
      %v1065 = vld [vmem:[%s2 + $0x108] sm:$0xff]
      %v1066 = vld [vmem:[%s2 + $0x110] sm:$0xff]
      %v1067 = vld [vmem:[%s2 + $0x118] sm:$0xff]
      %v1068 = vld [vmem:[%s2 + $0x120] sm:$0xff]
      %v1069 = vld [vmem:[%s2 + $0x128] sm:$0xff]
      %v1070 = vld [vmem:[%s2 + $0x130] sm:$0xff]
      %v1071 = vld [vmem:[%s2 + $0x138] sm:$0xff]
      %v1072 = vld [vmem:[%s2 + $0x140] sm:$0xff]
      %v1073 = vld [vmem:[%s2 + $0x148] sm:$0xff]
      %v1074 = vld [vmem:[%s2 + $0x150] sm:$0xff]
      %v1075 = vld [vmem:[%s2 + $0x158] sm:$0xff]
      %v1076 = vld [vmem:[%s2 + $0x160] sm:$0xff]
      %v1077 = vld [vmem:[%s2 + $0x168] sm:$0xff]
      %v1078 = vld [vmem:[%s2 + $0x170] sm:$0xff]
      %v1079 = vld [vmem:[%s2 + $0x178] sm:$0xff]
      %v1080 = vld [vmem:[%s2 + $0x180] sm:$0xff]
      %v1081 = vld [vmem:[%s2 + $0x188] sm:$0xff]
      %v1082 = vld [vmem:[%s2 + $0x190] sm:$0xff]
      %v1083 = vld [vmem:[%s2 + $0x198] sm:$0xff]
      %v1084 = vld [vmem:[%s2 + $0x1a0] sm:$0xff]
      %v1085 = vld [vmem:[%s2 + $0x1a8] sm:$0xff]
      %v1086 = vld [vmem:[%s2 + $0x1b0] sm:$0xff]
      %v1087 = vld [vmem:[%s2 + $0x1b8] sm:$0xff]
      %v1088 = vld [vmem:[%s2 + $0x1c0] sm:$0xff]
      %v1089 = vld [vmem:[%s2 + $0x1c8] sm:$0xff]
      %v1090 = vld [vmem:[%s2 + $0x1d0] sm:$0xff]
      %v1091 = vld [vmem:[%s2 + $0x1d8] sm:$0xff]
      %v1092 = vld [vmem:[%s2 + $0x1e0] sm:$0xff]
      %v1093 = vld [vmem:[%s2 + $0x1e8] sm:$0xff]
      %v1094 = vld [vmem:[%s2 + $0x1f0] sm:$0xff]
      %v1095 = vld [vmem:[%s2 + $0x1f8] sm:$0xff]
      %v1096 = vld [vmem:[%s3] sm:$0xff]
      %v1097 = vld [vmem:[%s3 + $0x8] sm:$0xff]
      %v1098 = vld [vmem:[%s3 + $0x10] sm:$0xff]
      %v1099 = vld [vmem:[%s3 + $0x18] sm:$0xff]
      %v1100 = vld [vmem:[%s3 + $0x20] sm:$0xff]
      %v1101 = vld [vmem:[%s3 + $0x28] sm:$0xff]
      %v1102 = vld [vmem:[%s3 + $0x30] sm:$0xff]
      %v1103 = vld [vmem:[%s3 + $0x38] sm:$0xff]
      %v1104 = vld [vmem:[%s3 + $0x40] sm:$0xff]
      %v1105 = vld [vmem:[%s3 + $0x48] sm:$0xff]
      %v1106 = vld [vmem:[%s3 + $0x50] sm:$0xff]
      %v1107 = vld [vmem:[%s3 + $0x58] sm:$0xff]
      %v1108 = vld [vmem:[%s3 + $0x60] sm:$0xff]
      %v1109 = vld [vmem:[%s3 + $0x68] sm:$0xff]
      %v1110 = vld [vmem:[%s3 + $0x70] sm:$0xff]
      %v1111 = vld [vmem:[%s3 + $0x78] sm:$0xff]
      %v1112 = vld [vmem:[%s3 + $0x80] sm:$0xff]
      %v1113 = vld [vmem:[%s3 + $0x88] sm:$0xff]
      %v1114 = vld [vmem:[%s3 + $0x90] sm:$0xff]
      %v1115 = vld [vmem:[%s3 + $0x98] sm:$0xff]
      %v1116 = vld [vmem:[%s3 + $0xa0] sm:$0xff]
      %v1117 = vld [vmem:[%s3 + $0xa8] sm:$0xff]
      %v1118 = vld [vmem:[%s3 + $0xb0] sm:$0xff]
      %v1119 = vld [vmem:[%s3 + $0xb8] sm:$0xff]
      %v1120 = vld [vmem:[%s3 + $0xc0] sm:$0xff]
      %v1121 = vld [vmem:[%s3 + $0xc8] sm:$0xff]
      %v1122 = vld [vmem:[%s3 + $0xd0] sm:$0xff]
      %v1123 = vld [vmem:[%s3 + $0xd8] sm:$0xff]
      %v1124 = vld [vmem:[%s3 + $0xe0] sm:$0xff]
      %v1125 = vld [vmem:[%s3 + $0xe8] sm:$0xff]
      %v1126 = vld [vmem:[%s3 + $0xf0] sm:$0xff]
      %v1127 = vld [vmem:[%s3 + $0xf8] sm:$0xff]
      %v1128 = vld [vmem:[%s3 + $0x100] sm:$0xff]
      %v1129 = vld [vmem:[%s3 + $0x108] sm:$0xff]
      %v1130 = vld [vmem:[%s3 + $0x110] sm:$0xff]
      %v1131 = vld [vmem:[%s3 + $0x118] sm:$0xff]
      %v1132 = vld [vmem:[%s3 + $0x120] sm:$0xff]
      %v1133 = vld [vmem:[%s3 + $0x128] sm:$0xff]
      %v1134 = vld [vmem:[%s3 + $0x130] sm:$0xff]
      %v1135 = vld [vmem:[%s3 + $0x138] sm:$0xff]
      %v1136 = vld [vmem:[%s3 + $0x140] sm:$0xff]
      %v1137 = vld [vmem:[%s3 + $0x148] sm:$0xff]
      %v1138 = vld [vmem:[%s3 + $0x150] sm:$0xff]
      %v1139 = vld [vmem:[%s3 + $0x158] sm:$0xff]
      %v1140 = vld [vmem:[%s3 + $0x160] sm:$0xff]
      %v1141 = vld [vmem:[%s3 + $0x168] sm:$0xff]
      %v1142 = vld [vmem:[%s3 + $0x170] sm:$0xff]
      %v1143 = vld [vmem:[%s3 + $0x178] sm:$0xff]
      %v1144 = vld [vmem:[%s3 + $0x180] sm:$0xff]
      %v1145 = vld [vmem:[%s3 + $0x188] sm:$0xff]
      %v1146 = vld [vmem:[%s3 + $0x190] sm:$0xff]
      %v1147 = vld [vmem:[%s3 + $0x198] sm:$0xff]
      %v1148 = vld [vmem:[%s3 + $0x1a0] sm:$0xff]
      %v1149 = vld [vmem:[%s3 + $0x1a8] sm:$0xff]
      %v1150 = vld [vmem:[%s3 + $0x1b0] sm:$0xff]
      %v1151 = vld [vmem:[%s3 + $0x1b8] sm:$0xff]
      %v1152 = vld [vmem:[%s3 + $0x1c0] sm:$0xff]
      %v1153 = vld [vmem:[%s3 + $0x1c8] sm:$0xff]
      %v1154 = vld [vmem:[%s3 + $0x1d0] sm:$0xff]
      %v1155 = vld [vmem:[%s3 + $0x1d8] sm:$0xff]
      %v1156 = vld [vmem:[%s3 + $0x1e0] sm:$0xff]
      %v1157 = vld [vmem:[%s3 + $0x1e8] sm:$0xff]
      %v1158 = vld [vmem:[%s3 + $0x1f0] sm:$0xff]
      %v1159 = vld [vmem:[%s3 + $0x1f8] sm:$0xff]
      %vm1168 = vcmask 1041409
      %v1169 = vsel %vm1168, %v995, %v989
      %vm1170 = vcmask 1042434
      %v1171 = vsel %vm1170, %v1001, %v1169
      %vm1172 = vcmask 1043459
      %v1173 = vsel %vm1172, %v1007, %v1171
      %vm1174 = vcmask 1044484
      %v1175 = vsel %vm1174, %v1013, %v1173
      %vm1176 = vcmask 1045509
      %v1177 = vsel %vm1176, %v1019, %v1175
      %vm1178 = vcmask 1046534
      %v1179 = vsel %vm1178, %v1025, %v1177
      %vm1180 = vcmask 1047559
      %v1181 = vsel %vm1180, %v1031, %v1179
      %1183 = vmatpush.msra.mxu0 %v1156
      %1184 = vmatpush.msra.mxu0 %v1152
      %1185 = vmatpush.msra.mxu0 %v1148
      %1186 = vmatpush.msra.mxu0 %v1144
      %1187 = vmatpush.msra.mxu0 %v1140
      %1188 = vmatpush.msra.mxu0 %v1136
      %1189 = vmatpush.msra.mxu0 %v1132
      %1190 = vmatpush.msra.mxu0 %v1128
      %1191 = vmatpush.msra.mxu0 %v1124
      %1192 = vmatpush.msra.mxu0 %v1120
      %1193 = vmatpush.msra.mxu0 %v1116
      %1194 = vmatpush.msra.mxu0 %v1112
      %1195 = vmatpush.msra.mxu0 %v1108
      %1196 = vmatpush.msra.mxu0 %v1104
      %1197 = vmatpush.msra.mxu0 %v1100
      %1198 = vmatpush.msra.mxu0 %v1096
      %1199 = vmatmul.f32.gmra.mxu0 %v1181
      %v1200 = vpop.f32.mrf.mxu0
      %v1201 = vadd.f32 0.0, %v1200
      %1202 = vdwg.mxu0
      %1203 = vmatpush.msra.mxu0 %v1157
      %1204 = vmatpush.msra.mxu0 %v1153
      %1205 = vmatpush.msra.mxu0 %v1149
      %1206 = vmatpush.msra.mxu0 %v1145
      %1207 = vmatpush.msra.mxu0 %v1141
      %1208 = vmatpush.msra.mxu0 %v1137
      %1209 = vmatpush.msra.mxu0 %v1133
      %1210 = vmatpush.msra.mxu0 %v1129
      %1211 = vmatpush.msra.mxu0 %v1125
      %1212 = vmatpush.msra.mxu0 %v1121
      %1213 = vmatpush.msra.mxu0 %v1117
      %1214 = vmatpush.msra.mxu0 %v1113
      %1215 = vmatpush.msra.mxu0 %v1109
      %1216 = vmatpush.msra.mxu0 %v1105
      %1217 = vmatpush.msra.mxu0 %v1101
      %1218 = vmatpush.msra.mxu0 %v1097
      %1219 = vmatmul.f32.gmra.mxu0 %v1181
      %v1220 = vpop.f32.mrf.mxu0
      %v1221 = vadd.f32 0.0, %v1220
      %1222 = vdwg.mxu0
      %1223 = vmatpush.msra.mxu0 %v1158
      %1224 = vmatpush.msra.mxu0 %v1154
      %1225 = vmatpush.msra.mxu0 %v1150
      %1226 = vmatpush.msra.mxu0 %v1146
      %1227 = vmatpush.msra.mxu0 %v1142
      %1228 = vmatpush.msra.mxu0 %v1138
      %1229 = vmatpush.msra.mxu0 %v1134
      %1230 = vmatpush.msra.mxu0 %v1130
      %1231 = vmatpush.msra.mxu0 %v1126
      %1232 = vmatpush.msra.mxu0 %v1122
      %1233 = vmatpush.msra.mxu0 %v1118
      %1234 = vmatpush.msra.mxu0 %v1114
      %1235 = vmatpush.msra.mxu0 %v1110
      %1236 = vmatpush.msra.mxu0 %v1106
      %1237 = vmatpush.msra.mxu0 %v1102
      %1238 = vmatpush.msra.mxu0 %v1098
      %1239 = vmatmul.f32.gmra.mxu0 %v1181
      %v1240 = vpop.f32.mrf.mxu0
      %v1241 = vadd.f32 0.0, %v1240
      %1242 = vdwg.mxu0
      %1243 = vmatpush.msra.mxu0 %v1159
      %1244 = vmatpush.msra.mxu0 %v1155
      %1245 = vmatpush.msra.mxu0 %v1151
      %1246 = vmatpush.msra.mxu0 %v1147
      %1247 = vmatpush.msra.mxu0 %v1143
      %1248 = vmatpush.msra.mxu0 %v1139
      %1249 = vmatpush.msra.mxu0 %v1135
      %1250 = vmatpush.msra.mxu0 %v1131
      %1251 = vmatpush.msra.mxu0 %v1127
      %1252 = vmatpush.msra.mxu0 %v1123
      %1253 = vmatpush.msra.mxu0 %v1119
      %1254 = vmatpush.msra.mxu0 %v1115
      %1255 = vmatpush.msra.mxu0 %v1111
      %1256 = vmatpush.msra.mxu0 %v1107
      %1257 = vmatpush.msra.mxu0 %v1103
      %1258 = vmatpush.msra.mxu0 %v1099
      %1259 = vmatmul.f32.gmra.mxu0 %v1181
      %v1260 = vpop.f32.mrf.mxu0
      %v1261 = vadd.f32 0.0, %v1260
      %1262 = vdwg.mxu0
      %v1271 = vsel %vm1168, %v923, %v917
      %v1272 = vsel %vm1170, %v929, %v1271
      %v1273 = vsel %vm1172, %v935, %v1272
      %v1274 = vsel %vm1174, %v941, %v1273
      %v1275 = vsel %vm1176, %v947, %v1274
      %v1276 = vsel %vm1178, %v953, %v1275
      %v1277 = vsel %vm1180, %v959, %v1276
      %1279 = vmatpush.msra.mxu0 %v1092
      %1280 = vmatpush.msra.mxu0 %v1088
      %1281 = vmatpush.msra.mxu0 %v1084
      %1282 = vmatpush.msra.mxu0 %v1080
      %1283 = vmatpush.msra.mxu0 %v1076
      %1284 = vmatpush.msra.mxu0 %v1072
      %1285 = vmatpush.msra.mxu0 %v1068
      %1286 = vmatpush.msra.mxu0 %v1064
      %1287 = vmatpush.msra.mxu0 %v1060
      %1288 = vmatpush.msra.mxu0 %v1056
      %1289 = vmatpush.msra.mxu0 %v1052
      %1290 = vmatpush.msra.mxu0 %v1048
      %1291 = vmatpush.msra.mxu0 %v1044
      %1292 = vmatpush.msra.mxu0 %v1040
      %1293 = vmatpush.msra.mxu0 %v1036
      %1294 = vmatpush.msra.mxu0 %v1032
      %1295 = vmatmul.f32.gmra.mxu0 %v1277
      %v1296 = vpop.f32.mrf.mxu0
      %v1297 = vadd.f32 %v1201, %v1296
      %1298 = vdwg.mxu0
      %1299 = vmatpush.msra.mxu0 %v1093
      %1300 = vmatpush.msra.mxu0 %v1089
      %1301 = vmatpush.msra.mxu0 %v1085
      %1302 = vmatpush.msra.mxu0 %v1081
      %1303 = vmatpush.msra.mxu0 %v1077
      %1304 = vmatpush.msra.mxu0 %v1073
      %1305 = vmatpush.msra.mxu0 %v1069
      %1306 = vmatpush.msra.mxu0 %v1065
      %1307 = vmatpush.msra.mxu0 %v1061
      %1308 = vmatpush.msra.mxu0 %v1057
      %1309 = vmatpush.msra.mxu0 %v1053
      %1310 = vmatpush.msra.mxu0 %v1049
      %1311 = vmatpush.msra.mxu0 %v1045
      %1312 = vmatpush.msra.mxu0 %v1041
      %1313 = vmatpush.msra.mxu0 %v1037
      %1314 = vmatpush.msra.mxu0 %v1033
      %1315 = vmatmul.f32.gmra.mxu0 %v1277
      %v1316 = vpop.f32.mrf.mxu0
      %v1317 = vadd.f32 %v1221, %v1316
      %1318 = vdwg.mxu0
      %1319 = vmatpush.msra.mxu0 %v1094
      %1320 = vmatpush.msra.mxu0 %v1090
      %1321 = vmatpush.msra.mxu0 %v1086
      %1322 = vmatpush.msra.mxu0 %v1082
      %1323 = vmatpush.msra.mxu0 %v1078
      %1324 = vmatpush.msra.mxu0 %v1074
      %1325 = vmatpush.msra.mxu0 %v1070
      %1326 = vmatpush.msra.mxu0 %v1066
      %1327 = vmatpush.msra.mxu0 %v1062
      %1328 = vmatpush.msra.mxu0 %v1058
      %1329 = vmatpush.msra.mxu0 %v1054
      %1330 = vmatpush.msra.mxu0 %v1050
      %1331 = vmatpush.msra.mxu0 %v1046
      %1332 = vmatpush.msra.mxu0 %v1042
      %1333 = vmatpush.msra.mxu0 %v1038
      %1334 = vmatpush.msra.mxu0 %v1034
      %1335 = vmatmul.f32.gmra.mxu0 %v1277
      %v1336 = vpop.f32.mrf.mxu0
      %v1337 = vadd.f32 %v1241, %v1336
      %1338 = vdwg.mxu0
      %1339 = vmatpush.msra.mxu0 %v1095
      %1340 = vmatpush.msra.mxu0 %v1091
      %1341 = vmatpush.msra.mxu0 %v1087
      %1342 = vmatpush.msra.mxu0 %v1083
      %1343 = vmatpush.msra.mxu0 %v1079
      %1344 = vmatpush.msra.mxu0 %v1075
      %1345 = vmatpush.msra.mxu0 %v1071
      %1346 = vmatpush.msra.mxu0 %v1067
      %1347 = vmatpush.msra.mxu0 %v1063
      %1348 = vmatpush.msra.mxu0 %v1059
      %1349 = vmatpush.msra.mxu0 %v1055
      %1350 = vmatpush.msra.mxu0 %v1051
      %1351 = vmatpush.msra.mxu0 %v1047
      %1352 = vmatpush.msra.mxu0 %v1043
      %1353 = vmatpush.msra.mxu0 %v1039
      %1354 = vmatpush.msra.mxu0 %v1035
      %1355 = vmatmul.f32.gmra.mxu0 %v1277
      %v1356 = vpop.f32.mrf.mxu0
      %v1357 = vadd.f32 %v1261, %v1356
      %1358 = vdwg.mxu0
      %v1359 = vld [vmem:[%s542] sm:$0xff]
      %v1360 = vld [vmem:[%s546] sm:$0xff]
      %1362 = vset.pattern.permute.xlu0 0
      %1363 = vperm.xlu0 %1362, %v1360
      %v1364 = vpop.permute.xlu0 %1363
      %vm1366 = vcmask 64512
      %v1368 = vsel %vm1366, %v1359, 0
      %1370 = vmatpush.msra.mxu0 0.0
      %1371 = vmatpush.msra.mxu0 0.0
      %1372 = vmatpush.msra.mxu0 0.0
      %1373 = vmatpush.msra.mxu0 0.0
      %1374 = vmatpush.msra.mxu0 0.0
      %1375 = vmatpush.msra.mxu0 0.0
      %1376 = vmatpush.msra.mxu0 0.0
      %1377 = vmatpush.msra.mxu0 0.0
      %1378 = vmatpush.msra.mxu0 0.0
      %1379 = vmatpush.msra.mxu0 0.0
      %1380 = vmatpush.msra.mxu0 0.0
      %1381 = vmatpush.msra.mxu0 0.0
      %1382 = vmatpush.msra.mxu0 0.0
      %1383 = vmatpush.msra.mxu0 0.0
      %1384 = vmatpush.msra.mxu0 0.0
      %1385 = vmatpush.msra.mxu0 %v1297
      %1386 = vmatmul.f32.gmra.mxu0 %v1368
      %v1387 = vpop.f32.mrf.mxu0
      %v1388 = vadd.f32 %v1364, %v1387
      %1389 = vdwg.mxu0
      %1390 = vmatpush.msra.mxu0 0.0
      %1391 = vmatpush.msra.mxu0 0.0
      %1392 = vmatpush.msra.mxu0 0.0
      %1393 = vmatpush.msra.mxu0 0.0
      %1394 = vmatpush.msra.mxu0 0.0
      %1395 = vmatpush.msra.mxu0 0.0
      %1396 = vmatpush.msra.mxu0 0.0
      %1397 = vmatpush.msra.mxu0 0.0
      %1398 = vmatpush.msra.mxu0 0.0
      %1399 = vmatpush.msra.mxu0 0.0
      %1400 = vmatpush.msra.mxu0 0.0
      %1401 = vmatpush.msra.mxu0 0.0
      %1402 = vmatpush.msra.mxu0 0.0
      %1403 = vmatpush.msra.mxu0 0.0
      %1404 = vmatpush.msra.mxu0 0.0
      %1405 = vmatpush.msra.mxu0 %v1317
      %1406 = vmatmul.f32.gmra.mxu0 %v1368
      %v1407 = vpop.f32.mrf.mxu0
      %v1408 = vadd.f32 %v1364, %v1407
      %1409 = vdwg.mxu0
      %1410 = vmatpush.msra.mxu0 0.0
      %1411 = vmatpush.msra.mxu0 0.0
      %1412 = vmatpush.msra.mxu0 0.0
      %1413 = vmatpush.msra.mxu0 0.0
      %1414 = vmatpush.msra.mxu0 0.0
      %1415 = vmatpush.msra.mxu0 0.0
      %1416 = vmatpush.msra.mxu0 0.0
      %1417 = vmatpush.msra.mxu0 0.0
      %1418 = vmatpush.msra.mxu0 0.0
      %1419 = vmatpush.msra.mxu0 0.0
      %1420 = vmatpush.msra.mxu0 0.0
      %1421 = vmatpush.msra.mxu0 0.0
      %1422 = vmatpush.msra.mxu0 0.0
      %1423 = vmatpush.msra.mxu0 0.0
      %1424 = vmatpush.msra.mxu0 0.0
      %1425 = vmatpush.msra.mxu0 %v1337
      %1426 = vmatmul.f32.gmra.mxu0 %v1368
      %v1427 = vpop.f32.mrf.mxu0
      %v1428 = vadd.f32 %v1364, %v1427
      %1429 = vdwg.mxu0
      %1430 = vmatpush.msra.mxu0 0.0
      %1431 = vmatpush.msra.mxu0 0.0
      %1432 = vmatpush.msra.mxu0 0.0
      %1433 = vmatpush.msra.mxu0 0.0
      %1434 = vmatpush.msra.mxu0 0.0
      %1435 = vmatpush.msra.mxu0 0.0
      %1436 = vmatpush.msra.mxu0 0.0
      %1437 = vmatpush.msra.mxu0 0.0
      %1438 = vmatpush.msra.mxu0 0.0
      %1439 = vmatpush.msra.mxu0 0.0
      %1440 = vmatpush.msra.mxu0 0.0
      %1441 = vmatpush.msra.mxu0 0.0
      %1442 = vmatpush.msra.mxu0 0.0
      %1443 = vmatpush.msra.mxu0 0.0
      %1444 = vmatpush.msra.mxu0 0.0
      %1445 = vmatpush.msra.mxu0 %v1357
      %1446 = vmatmul.f32.gmra.mxu0 %v1368
      %v1447 = vpop.f32.mrf.mxu0
      %v1448 = vadd.f32 %v1364, %v1447
      %1449 = vdwg.mxu0
      %v1450 = vmul.f32 %v1388, 0.5
      %v1451 = vmul.f32 %v1408, 0.5
      %v1452 = vmul.f32 %v1428, 0.5
      %v1453 = vmul.f32 %v1448, 0.5
      %v1454 = vmul.f32 %v1388, 0.70710677
      %v1455 = vmul.f32 %v1408, 0.70710677
      %v1456 = vmul.f32 %v1428, 0.70710677
      %v1457 = vmul.f32 %v1448, 0.70710677
      %v1458 = vmul.f32 %v1454, %v1454
      %v1459 = vmin.f32 16.0, %v1458
      %v1460 = vmul.f32 %v1459, 2.1237322e-06
      %v1461 = vadd.f32 %v1460, 0.00028619796
      %v1462 = vmul.f32 %v1459, %v1461
      %v1463 = vadd.f32 %v1462, 0.0036580483
      %v1464 = vmul.f32 %v1459, %v1463
      %v1465 = vadd.f32 %v1464, 0.05243302
      %v1466 = vmul.f32 %v1459, %v1465
      %v1467 = vadd.f32 %v1466, 0.18741608
      %v1468 = vmul.f32 %v1459, %v1467
      %v1469 = vadd.f32 %v1468, 1.1283791
      %v1470 = vmul.f32 %v1454, %v1469
      %v1471 = vmul.f32 %v1459, 3.8918573e-05
      %v1472 = vadd.f32 %v1471, 0.001143296
      %v1473 = vmul.f32 %v1459, %v1472
      %v1474 = vadd.f32 %v1473, 0.014752088
      %v1475 = vmul.f32 %v1459, %v1474
      %v1476 = vadd.f32 %v1475, 0.112945676
      %v1477 = vmul.f32 %v1459, %v1476
      %v1478 = vadd.f32 %v1477, 0.4994258
      %v1479 = vmul.f32 %v1459, %v1478
      %v1480 = vadd.f32 %v1479, 1.0
      %v1481 = vrcp.pop %v1480
      %v1482 = vmul.f32 %v1480, %v1481
      %v1483 = vsub.f32 1.0, %v1482
      %v1484 = vmul.f32 %v1481, %v1483
      %v1485 = vadd.f32 %v1481, %v1484
      %vm1486 = vweird.f32 %v1480
      %vm1487 = vweird.f32 %v1481
      %vm1488 = vmor %vm1486, %vm1487
      %v1489 = vsel %vm1488, %v1481, %v1485
      %v1490 = vand.u32 2147483647, %v1480
      %vm1491 = vcmp.eq.f32.partialorder %v1490, 8.507059e+37
      %v1492 = vand.u32 %v1480, 2147483648
      %v1493 = vor.u32 1.1754944e-38, %v1492
      %v1494 = vsel %vm1491, %v1493, %v1489
      %v1495 = vmul.f32 %v1470, %v1494
      %v1496 = vmin.f32 %v1495, 1.0
      %v1497 = vmax.f32 %v1496, -1.0
      %v1498 = vmul.f32 %v1455, %v1455
      %v1499 = vmin.f32 16.0, %v1498
      %v1500 = vmul.f32 %v1499, 2.1237322e-06
      %v1501 = vadd.f32 %v1500, 0.00028619796
      %v1502 = vmul.f32 %v1499, %v1501
      %v1503 = vadd.f32 %v1502, 0.0036580483
      %v1504 = vmul.f32 %v1499, %v1503
      %v1505 = vadd.f32 %v1504, 0.05243302
      %v1506 = vmul.f32 %v1499, %v1505
      %v1507 = vadd.f32 %v1506, 0.18741608
      %v1508 = vmul.f32 %v1499, %v1507
      %v1509 = vadd.f32 %v1508, 1.1283791
      %v1510 = vmul.f32 %v1455, %v1509
      %v1511 = vmul.f32 %v1499, 3.8918573e-05
      %v1512 = vadd.f32 %v1511, 0.001143296
      %v1513 = vmul.f32 %v1499, %v1512
      %v1514 = vadd.f32 %v1513, 0.014752088
      %v1515 = vmul.f32 %v1499, %v1514
      %v1516 = vadd.f32 %v1515, 0.112945676
      %v1517 = vmul.f32 %v1499, %v1516
      %v1518 = vadd.f32 %v1517, 0.4994258
      %v1519 = vmul.f32 %v1499, %v1518
      %v1520 = vadd.f32 %v1519, 1.0
      %v1521 = vrcp.pop %v1520
      %v1522 = vmul.f32 %v1520, %v1521
      %v1523 = vsub.f32 1.0, %v1522
      %v1524 = vmul.f32 %v1521, %v1523
      %v1525 = vadd.f32 %v1521, %v1524
      %vm1526 = vweird.f32 %v1520
      %vm1527 = vweird.f32 %v1521
      %vm1528 = vmor %vm1526, %vm1527
      %v1529 = vsel %vm1528, %v1521, %v1525
      %v1530 = vand.u32 2147483647, %v1520
      %vm1531 = vcmp.eq.f32.partialorder %v1530, 8.507059e+37
      %v1532 = vand.u32 %v1520, 2147483648
      %v1533 = vor.u32 1.1754944e-38, %v1532
      %v1534 = vsel %vm1531, %v1533, %v1529
      %v1535 = vmul.f32 %v1510, %v1534
      %v1536 = vmin.f32 %v1535, 1.0
      %v1537 = vmax.f32 %v1536, -1.0
      %v1538 = vmul.f32 %v1456, %v1456
      %v1539 = vmin.f32 16.0, %v1538
      %v1540 = vmul.f32 %v1539, 2.1237322e-06
      %v1541 = vadd.f32 %v1540, 0.00028619796
      %v1542 = vmul.f32 %v1539, %v1541
      %v1543 = vadd.f32 %v1542, 0.0036580483
      %v1544 = vmul.f32 %v1539, %v1543
      %v1545 = vadd.f32 %v1544, 0.05243302
      %v1546 = vmul.f32 %v1539, %v1545
      %v1547 = vadd.f32 %v1546, 0.18741608
      %v1548 = vmul.f32 %v1539, %v1547
      %v1549 = vadd.f32 %v1548, 1.1283791
      %v1550 = vmul.f32 %v1456, %v1549
      %v1551 = vmul.f32 %v1539, 3.8918573e-05
      %v1552 = vadd.f32 %v1551, 0.001143296
      %v1553 = vmul.f32 %v1539, %v1552
      %v1554 = vadd.f32 %v1553, 0.014752088
      %v1555 = vmul.f32 %v1539, %v1554
      %v1556 = vadd.f32 %v1555, 0.112945676
      %v1557 = vmul.f32 %v1539, %v1556
      %v1558 = vadd.f32 %v1557, 0.4994258
      %v1559 = vmul.f32 %v1539, %v1558
      %v1560 = vadd.f32 %v1559, 1.0
      %v1561 = vrcp.pop %v1560
      %v1562 = vmul.f32 %v1560, %v1561
      %v1563 = vsub.f32 1.0, %v1562
      %v1564 = vmul.f32 %v1561, %v1563
      %v1565 = vadd.f32 %v1561, %v1564
      %vm1566 = vweird.f32 %v1560
      %vm1567 = vweird.f32 %v1561
      %vm1568 = vmor %vm1566, %vm1567
      %v1569 = vsel %vm1568, %v1561, %v1565
      %v1570 = vand.u32 2147483647, %v1560
      %vm1571 = vcmp.eq.f32.partialorder %v1570, 8.507059e+37
      %v1572 = vand.u32 %v1560, 2147483648
      %v1573 = vor.u32 1.1754944e-38, %v1572
      %v1574 = vsel %vm1571, %v1573, %v1569
      %v1575 = vmul.f32 %v1550, %v1574
      %v1576 = vmin.f32 %v1575, 1.0
      %v1577 = vmax.f32 %v1576, -1.0
      %v1578 = vmul.f32 %v1457, %v1457
      %v1579 = vmin.f32 16.0, %v1578
      %v1580 = vmul.f32 %v1579, 2.1237322e-06
      %v1581 = vadd.f32 %v1580, 0.00028619796
      %v1582 = vmul.f32 %v1579, %v1581
      %v1583 = vadd.f32 %v1582, 0.0036580483
      %v1584 = vmul.f32 %v1579, %v1583
      %v1585 = vadd.f32 %v1584, 0.05243302
      %v1586 = vmul.f32 %v1579, %v1585
      %v1587 = vadd.f32 %v1586, 0.18741608
      %v1588 = vmul.f32 %v1579, %v1587
      %v1589 = vadd.f32 %v1588, 1.1283791
      %v1590 = vmul.f32 %v1457, %v1589
      %v1591 = vmul.f32 %v1579, 3.8918573e-05
      %v1592 = vadd.f32 %v1591, 0.001143296
      %v1593 = vmul.f32 %v1579, %v1592
      %v1594 = vadd.f32 %v1593, 0.014752088
      %v1595 = vmul.f32 %v1579, %v1594
      %v1596 = vadd.f32 %v1595, 0.112945676
      %v1597 = vmul.f32 %v1579, %v1596
      %v1598 = vadd.f32 %v1597, 0.4994258
      %v1599 = vmul.f32 %v1579, %v1598
      %v1600 = vadd.f32 %v1599, 1.0
      %v1601 = vrcp.pop %v1600
      %v1602 = vmul.f32 %v1600, %v1601
      %v1603 = vsub.f32 1.0, %v1602
      %v1604 = vmul.f32 %v1601, %v1603
      %v1605 = vadd.f32 %v1601, %v1604
      %vm1606 = vweird.f32 %v1600
      %vm1607 = vweird.f32 %v1601
      %vm1608 = vmor %vm1606, %vm1607
      %v1609 = vsel %vm1608, %v1601, %v1605
      %v1610 = vand.u32 2147483647, %v1600
      %vm1611 = vcmp.eq.f32.partialorder %v1610, 8.507059e+37
      %v1612 = vand.u32 %v1600, 2147483648
      %v1613 = vor.u32 1.1754944e-38, %v1612
      %v1614 = vsel %vm1611, %v1613, %v1609
      %v1615 = vmul.f32 %v1590, %v1614
      %v1616 = vmin.f32 %v1615, 1.0
      %v1617 = vmax.f32 %v1616, -1.0
      %v1618 = vadd.f32 %v1497, 1.0
      %v1619 = vadd.f32 %v1537, 1.0
      %v1620 = vadd.f32 %v1577, 1.0
      %v1621 = vadd.f32 %v1617, 1.0
      %v1622 = vmul.f32 %v1450, %v1618
      %v1623 = vmul.f32 %v1451, %v1619
      %v1624 = vmul.f32 %v1452, %v1620
      %v1625 = vmul.f32 %v1453, %v1621
      %v1626 = vld [vmem:[%s550] sm:$0xff]
      %v1627 = vld [vmem:[%s554] sm:$0xff]
      %1629 = vset.pattern.permute.xlu0 0
      %1630 = vperm.xlu0 %1629, %v1627
      %v1631 = vpop.permute.xlu0 %1630
      %v1634 = vsel %vm1366, %v1626, 0
      %1636 = vmatpush.msra.mxu0 0.0
      %1637 = vmatpush.msra.mxu0 0.0
      %1638 = vmatpush.msra.mxu0 0.0
      %1639 = vmatpush.msra.mxu0 0.0
      %1640 = vmatpush.msra.mxu0 0.0
      %1641 = vmatpush.msra.mxu0 0.0
      %1642 = vmatpush.msra.mxu0 0.0
      %1643 = vmatpush.msra.mxu0 0.0
      %1644 = vmatpush.msra.mxu0 0.0
      %1645 = vmatpush.msra.mxu0 0.0
      %1646 = vmatpush.msra.mxu0 0.0
      %1647 = vmatpush.msra.mxu0 0.0
      %1648 = vmatpush.msra.mxu0 0.0
      %1649 = vmatpush.msra.mxu0 0.0
      %1650 = vmatpush.msra.mxu0 0.0
      %1651 = vmatpush.msra.mxu0 %v1622
      %1652 = vmatmul.f32.gmra.mxu0 %v1634
      %v1653 = vpop.f32.mrf.mxu0
      %v1654 = vadd.f32 %v1631, %v1653
      %1655 = vdwg.mxu0
      %1656 = vmatpush.msra.mxu0 0.0
      %1657 = vmatpush.msra.mxu0 0.0
      %1658 = vmatpush.msra.mxu0 0.0
      %1659 = vmatpush.msra.mxu0 0.0
      %1660 = vmatpush.msra.mxu0 0.0
      %1661 = vmatpush.msra.mxu0 0.0
      %1662 = vmatpush.msra.mxu0 0.0
      %1663 = vmatpush.msra.mxu0 0.0
      %1664 = vmatpush.msra.mxu0 0.0
      %1665 = vmatpush.msra.mxu0 0.0
      %1666 = vmatpush.msra.mxu0 0.0
      %1667 = vmatpush.msra.mxu0 0.0
      %1668 = vmatpush.msra.mxu0 0.0
      %1669 = vmatpush.msra.mxu0 0.0
      %1670 = vmatpush.msra.mxu0 0.0
      %1671 = vmatpush.msra.mxu0 %v1623
      %1672 = vmatmul.f32.gmra.mxu0 %v1634
      %v1673 = vpop.f32.mrf.mxu0
      %v1674 = vadd.f32 %v1631, %v1673
      %1675 = vdwg.mxu0
      %1676 = vmatpush.msra.mxu0 0.0
      %1677 = vmatpush.msra.mxu0 0.0
      %1678 = vmatpush.msra.mxu0 0.0
      %1679 = vmatpush.msra.mxu0 0.0
      %1680 = vmatpush.msra.mxu0 0.0
      %1681 = vmatpush.msra.mxu0 0.0
      %1682 = vmatpush.msra.mxu0 0.0
      %1683 = vmatpush.msra.mxu0 0.0
      %1684 = vmatpush.msra.mxu0 0.0
      %1685 = vmatpush.msra.mxu0 0.0
      %1686 = vmatpush.msra.mxu0 0.0
      %1687 = vmatpush.msra.mxu0 0.0
      %1688 = vmatpush.msra.mxu0 0.0
      %1689 = vmatpush.msra.mxu0 0.0
      %1690 = vmatpush.msra.mxu0 0.0
      %1691 = vmatpush.msra.mxu0 %v1624
      %1692 = vmatmul.f32.gmra.mxu0 %v1634
      %v1693 = vpop.f32.mrf.mxu0
      %v1694 = vadd.f32 %v1631, %v1693
      %1695 = vdwg.mxu0
      %1696 = vmatpush.msra.mxu0 0.0
      %1697 = vmatpush.msra.mxu0 0.0
      %1698 = vmatpush.msra.mxu0 0.0
      %1699 = vmatpush.msra.mxu0 0.0
      %1700 = vmatpush.msra.mxu0 0.0
      %1701 = vmatpush.msra.mxu0 0.0
      %1702 = vmatpush.msra.mxu0 0.0
      %1703 = vmatpush.msra.mxu0 0.0
      %1704 = vmatpush.msra.mxu0 0.0
      %1705 = vmatpush.msra.mxu0 0.0
      %1706 = vmatpush.msra.mxu0 0.0
      %1707 = vmatpush.msra.mxu0 0.0
      %1708 = vmatpush.msra.mxu0 0.0
      %1709 = vmatpush.msra.mxu0 0.0
      %1710 = vmatpush.msra.mxu0 0.0
      %1711 = vmatpush.msra.mxu0 %v1625
      %1712 = vmatmul.f32.gmra.mxu0 %v1634
      %v1713 = vpop.f32.mrf.mxu0
      %v1714 = vadd.f32 %v1631, %v1713
      %1715 = vdwg.mxu0
      %v1716 = vld [vmem:[%s558] sm:$0xff]
      %v1718 = vsel %vm1366, %v1716, 0
      %1720 = vmatpush.msra.mxu0 0.0
      %1721 = vmatpush.msra.mxu0 0.0
      %1722 = vmatpush.msra.mxu0 0.0
      %1723 = vmatpush.msra.mxu0 0.0
      %1724 = vmatpush.msra.mxu0 0.0
      %1725 = vmatpush.msra.mxu0 0.0
      %1726 = vmatpush.msra.mxu0 0.0
      %1727 = vmatpush.msra.mxu0 0.0
      %1728 = vmatpush.msra.mxu0 0.0
      %1729 = vmatpush.msra.mxu0 0.0
      %1730 = vmatpush.msra.mxu0 0.0
      %1731 = vmatpush.msra.mxu0 0.0
      %1732 = vmatpush.msra.mxu0 0.0
      %1733 = vmatpush.msra.mxu0 0.0
      %1734 = vmatpush.msra.mxu0 0.0
      %1735 = vmatpush.msra.mxu0 %v580
      %1736 = vmatmul.f32.gmra.mxu0 %v1718
      %v1737 = vpop.f32.mrf.mxu0
      %v1738 = vadd.f32 0.0, %v1737
      %1739 = vdwg.mxu0
      %1740 = vmatpush.msra.mxu0 0.0
      %1741 = vmatpush.msra.mxu0 0.0
      %1742 = vmatpush.msra.mxu0 0.0
      %1743 = vmatpush.msra.mxu0 0.0
      %1744 = vmatpush.msra.mxu0 0.0
      %1745 = vmatpush.msra.mxu0 0.0
      %1746 = vmatpush.msra.mxu0 0.0
      %1747 = vmatpush.msra.mxu0 0.0
      %1748 = vmatpush.msra.mxu0 0.0
      %1749 = vmatpush.msra.mxu0 0.0
      %1750 = vmatpush.msra.mxu0 0.0
      %1751 = vmatpush.msra.mxu0 0.0
      %1752 = vmatpush.msra.mxu0 0.0
      %1753 = vmatpush.msra.mxu0 0.0
      %1754 = vmatpush.msra.mxu0 0.0
      %1755 = vmatpush.msra.mxu0 %v581
      %1756 = vmatmul.f32.gmra.mxu0 %v1718
      %v1757 = vpop.f32.mrf.mxu0
      %v1758 = vadd.f32 0.0, %v1757
      %1759 = vdwg.mxu0
      %1760 = vmatpush.msra.mxu0 0.0
      %1761 = vmatpush.msra.mxu0 0.0
      %1762 = vmatpush.msra.mxu0 0.0
      %1763 = vmatpush.msra.mxu0 0.0
      %1764 = vmatpush.msra.mxu0 0.0
      %1765 = vmatpush.msra.mxu0 0.0
      %1766 = vmatpush.msra.mxu0 0.0
      %1767 = vmatpush.msra.mxu0 0.0
      %1768 = vmatpush.msra.mxu0 0.0
      %1769 = vmatpush.msra.mxu0 0.0
      %1770 = vmatpush.msra.mxu0 0.0
      %1771 = vmatpush.msra.mxu0 0.0
      %1772 = vmatpush.msra.mxu0 0.0
      %1773 = vmatpush.msra.mxu0 0.0
      %1774 = vmatpush.msra.mxu0 0.0
      %1775 = vmatpush.msra.mxu0 %v582
      %1776 = vmatmul.f32.gmra.mxu0 %v1718
      %v1777 = vpop.f32.mrf.mxu0
      %v1778 = vadd.f32 0.0, %v1777
      %1779 = vdwg.mxu0
      %1780 = vmatpush.msra.mxu0 0.0
      %1781 = vmatpush.msra.mxu0 0.0
      %1782 = vmatpush.msra.mxu0 0.0
      %1783 = vmatpush.msra.mxu0 0.0
      %1784 = vmatpush.msra.mxu0 0.0
      %1785 = vmatpush.msra.mxu0 0.0
      %1786 = vmatpush.msra.mxu0 0.0
      %1787 = vmatpush.msra.mxu0 0.0
      %1788 = vmatpush.msra.mxu0 0.0
      %1789 = vmatpush.msra.mxu0 0.0
      %1790 = vmatpush.msra.mxu0 0.0
      %1791 = vmatpush.msra.mxu0 0.0
      %1792 = vmatpush.msra.mxu0 0.0
      %1793 = vmatpush.msra.mxu0 0.0
      %1794 = vmatpush.msra.mxu0 0.0
      %1795 = vmatpush.msra.mxu0 %v583
      %1796 = vmatmul.f32.gmra.mxu0 %v1718
      %v1797 = vpop.f32.mrf.mxu0
      %v1798 = vadd.f32 0.0, %v1797
      %1799 = vdwg.mxu0
      %v1800 = vadd.f32 %v1654, %v1738
      %v1801 = vadd.f32 %v1674, %v1758
      %v1802 = vadd.f32 %v1694, %v1778
      %v1803 = vadd.f32 %v1714, %v1798
      %v1804 = vld [vmem:[%s562] sm:$0xff]
      %1806 = vset.pattern.permute.xlu0 0
      %1807 = vperm.xlu0 %1806, %v1804
      %v1808 = vpop.permute.xlu0 %1807
      %v1810 = vadd.f32 %v1800, %v1808
      %v1811 = vadd.f32 %v1801, %v1808
      %v1812 = vadd.f32 %v1802, %v1808
      %v1813 = vadd.f32 %v1803, %v1808
      %p1814 = scmp.lt.s32.totalorder %s28, 3
      // Predicated region
      $region73: #{fno_forward.4} parent=67 // pred_check
        %p1815 = pneg %p1814
      $region74: #{fno_forward.4} parent=67 // pred_check_branch
        %1817 = sbr.rel (%p1815) target = $region76
      $region75: #{fno_forward.4} parent=67 // pred_region
        %v1818 = vmul.f32 %v1810, 0.5
        %v1819 = vmul.f32 %v1811, 0.5
        %v1820 = vmul.f32 %v1812, 0.5
        %v1821 = vmul.f32 %v1813, 0.5
        %v1822 = vmul.f32 %v1810, 0.70710677
        %v1823 = vmul.f32 %v1811, 0.70710677
        %v1824 = vmul.f32 %v1812, 0.70710677
        %v1825 = vmul.f32 %v1813, 0.70710677
        %v1826 = vmul.f32 %v1822, %v1822
        %v1827 = vmin.f32 16.0, %v1826
        %v1828 = vmul.f32 %v1827, 2.1237322e-06
        %v1829 = vadd.f32 %v1828, 0.00028619796
        %v1830 = vmul.f32 %v1827, %v1829
        %v1831 = vadd.f32 %v1830, 0.0036580483
        %v1832 = vmul.f32 %v1827, %v1831
        %v1833 = vadd.f32 %v1832, 0.05243302
        %v1834 = vmul.f32 %v1827, %v1833
        %v1835 = vadd.f32 %v1834, 0.18741608
        %v1836 = vmul.f32 %v1827, %v1835
        %v1837 = vadd.f32 %v1836, 1.1283791
        %v1838 = vmul.f32 %v1822, %v1837
        %v1839 = vmul.f32 %v1827, 3.8918573e-05
        %v1840 = vadd.f32 %v1839, 0.001143296
        %v1841 = vmul.f32 %v1827, %v1840
        %v1842 = vadd.f32 %v1841, 0.014752088
        %v1843 = vmul.f32 %v1827, %v1842
        %v1844 = vadd.f32 %v1843, 0.112945676
        %v1845 = vmul.f32 %v1827, %v1844
        %v1846 = vadd.f32 %v1845, 0.4994258
        %v1847 = vmul.f32 %v1827, %v1846
        %v1848 = vadd.f32 %v1847, 1.0
        %v1849 = vrcp.pop %v1848
        %v1850 = vmul.f32 %v1848, %v1849
        %v1851 = vsub.f32 1.0, %v1850
        %v1852 = vmul.f32 %v1849, %v1851
        %v1853 = vadd.f32 %v1849, %v1852
        %vm1854 = vweird.f32 %v1848
        %vm1855 = vweird.f32 %v1849
        %vm1856 = vmor %vm1854, %vm1855
        %v1857 = vsel %vm1856, %v1849, %v1853
        %v1858 = vand.u32 2147483647, %v1848
        %vm1859 = vcmp.eq.f32.partialorder %v1858, 8.507059e+37
        %v1860 = vand.u32 %v1848, 2147483648
        %v1861 = vor.u32 1.1754944e-38, %v1860
        %v1862 = vsel %vm1859, %v1861, %v1857
        %v1863 = vmul.f32 %v1838, %v1862
        %v1864 = vmin.f32 %v1863, 1.0
        %v1865 = vmax.f32 %v1864, -1.0
        %v1866 = vmul.f32 %v1823, %v1823
        %v1867 = vmin.f32 16.0, %v1866
        %v1868 = vmul.f32 %v1867, 2.1237322e-06
        %v1869 = vadd.f32 %v1868, 0.00028619796
        %v1870 = vmul.f32 %v1867, %v1869
        %v1871 = vadd.f32 %v1870, 0.0036580483
        %v1872 = vmul.f32 %v1867, %v1871
        %v1873 = vadd.f32 %v1872, 0.05243302
        %v1874 = vmul.f32 %v1867, %v1873
        %v1875 = vadd.f32 %v1874, 0.18741608
        %v1876 = vmul.f32 %v1867, %v1875
        %v1877 = vadd.f32 %v1876, 1.1283791
        %v1878 = vmul.f32 %v1823, %v1877
        %v1879 = vmul.f32 %v1867, 3.8918573e-05
        %v1880 = vadd.f32 %v1879, 0.001143296
        %v1881 = vmul.f32 %v1867, %v1880
        %v1882 = vadd.f32 %v1881, 0.014752088
        %v1883 = vmul.f32 %v1867, %v1882
        %v1884 = vadd.f32 %v1883, 0.112945676
        %v1885 = vmul.f32 %v1867, %v1884
        %v1886 = vadd.f32 %v1885, 0.4994258
        %v1887 = vmul.f32 %v1867, %v1886
        %v1888 = vadd.f32 %v1887, 1.0
        %v1889 = vrcp.pop %v1888
        %v1890 = vmul.f32 %v1888, %v1889
        %v1891 = vsub.f32 1.0, %v1890
        %v1892 = vmul.f32 %v1889, %v1891
        %v1893 = vadd.f32 %v1889, %v1892
        %vm1894 = vweird.f32 %v1888
        %vm1895 = vweird.f32 %v1889
        %vm1896 = vmor %vm1894, %vm1895
        %v1897 = vsel %vm1896, %v1889, %v1893
        %v1898 = vand.u32 2147483647, %v1888
        %vm1899 = vcmp.eq.f32.partialorder %v1898, 8.507059e+37
        %v1900 = vand.u32 %v1888, 2147483648
        %v1901 = vor.u32 1.1754944e-38, %v1900
        %v1902 = vsel %vm1899, %v1901, %v1897
        %v1903 = vmul.f32 %v1878, %v1902
        %v1904 = vmin.f32 %v1903, 1.0
        %v1905 = vmax.f32 %v1904, -1.0
        %v1906 = vmul.f32 %v1824, %v1824
        %v1907 = vmin.f32 16.0, %v1906
        %v1908 = vmul.f32 %v1907, 2.1237322e-06
        %v1909 = vadd.f32 %v1908, 0.00028619796
        %v1910 = vmul.f32 %v1907, %v1909
        %v1911 = vadd.f32 %v1910, 0.0036580483
        %v1912 = vmul.f32 %v1907, %v1911
        %v1913 = vadd.f32 %v1912, 0.05243302
        %v1914 = vmul.f32 %v1907, %v1913
        %v1915 = vadd.f32 %v1914, 0.18741608
        %v1916 = vmul.f32 %v1907, %v1915
        %v1917 = vadd.f32 %v1916, 1.1283791
        %v1918 = vmul.f32 %v1824, %v1917
        %v1919 = vmul.f32 %v1907, 3.8918573e-05
        %v1920 = vadd.f32 %v1919, 0.001143296
        %v1921 = vmul.f32 %v1907, %v1920
        %v1922 = vadd.f32 %v1921, 0.014752088
        %v1923 = vmul.f32 %v1907, %v1922
        %v1924 = vadd.f32 %v1923, 0.112945676
        %v1925 = vmul.f32 %v1907, %v1924
        %v1926 = vadd.f32 %v1925, 0.4994258
        %v1927 = vmul.f32 %v1907, %v1926
        %v1928 = vadd.f32 %v1927, 1.0
        %v1929 = vrcp.pop %v1928
        %v1930 = vmul.f32 %v1928, %v1929
        %v1931 = vsub.f32 1.0, %v1930
        %v1932 = vmul.f32 %v1929, %v1931
        %v1933 = vadd.f32 %v1929, %v1932
        %vm1934 = vweird.f32 %v1928
        %vm1935 = vweird.f32 %v1929
        %vm1936 = vmor %vm1934, %vm1935
        %v1937 = vsel %vm1936, %v1929, %v1933
        %v1938 = vand.u32 2147483647, %v1928
        %vm1939 = vcmp.eq.f32.partialorder %v1938, 8.507059e+37
        %v1940 = vand.u32 %v1928, 2147483648
        %v1941 = vor.u32 1.1754944e-38, %v1940
        %v1942 = vsel %vm1939, %v1941, %v1937
        %v1943 = vmul.f32 %v1918, %v1942
        %v1944 = vmin.f32 %v1943, 1.0
        %v1945 = vmax.f32 %v1944, -1.0
        %v1946 = vmul.f32 %v1825, %v1825
        %v1947 = vmin.f32 16.0, %v1946
        %v1948 = vmul.f32 %v1947, 2.1237322e-06
        %v1949 = vadd.f32 %v1948, 0.00028619796
        %v1950 = vmul.f32 %v1947, %v1949
        %v1951 = vadd.f32 %v1950, 0.0036580483
        %v1952 = vmul.f32 %v1947, %v1951
        %v1953 = vadd.f32 %v1952, 0.05243302
        %v1954 = vmul.f32 %v1947, %v1953
        %v1955 = vadd.f32 %v1954, 0.18741608
        %v1956 = vmul.f32 %v1947, %v1955
        %v1957 = vadd.f32 %v1956, 1.1283791
        %v1958 = vmul.f32 %v1825, %v1957
        %v1959 = vmul.f32 %v1947, 3.8918573e-05
        %v1960 = vadd.f32 %v1959, 0.001143296
        %v1961 = vmul.f32 %v1947, %v1960
        %v1962 = vadd.f32 %v1961, 0.014752088
        %v1963 = vmul.f32 %v1947, %v1962
        %v1964 = vadd.f32 %v1963, 0.112945676
        %v1965 = vmul.f32 %v1947, %v1964
        %v1966 = vadd.f32 %v1965, 0.4994258
        %v1967 = vmul.f32 %v1947, %v1966
        %v1968 = vadd.f32 %v1967, 1.0
        %v1969 = vrcp.pop %v1968
        %v1970 = vmul.f32 %v1968, %v1969
        %v1971 = vsub.f32 1.0, %v1970
        %v1972 = vmul.f32 %v1969, %v1971
        %v1973 = vadd.f32 %v1969, %v1972
        %vm1974 = vweird.f32 %v1968
        %vm1975 = vweird.f32 %v1969
        %vm1976 = vmor %vm1974, %vm1975
        %v1977 = vsel %vm1976, %v1969, %v1973
        %v1978 = vand.u32 2147483647, %v1968
        %vm1979 = vcmp.eq.f32.partialorder %v1978, 8.507059e+37
        %v1980 = vand.u32 %v1968, 2147483648
        %v1981 = vor.u32 1.1754944e-38, %v1980
        %v1982 = vsel %vm1979, %v1981, %v1977
        %v1983 = vmul.f32 %v1958, %v1982
        %v1984 = vmin.f32 %v1983, 1.0
        %v1985 = vmax.f32 %v1984, -1.0
        %v1986 = vadd.f32 %v1865, 1.0
        %v1987 = vadd.f32 %v1905, 1.0
        %v1988 = vadd.f32 %v1945, 1.0
        %v1989 = vadd.f32 %v1985, 1.0
        %v1990 = vmul.f32 %v1818, %v1986
        %v1991 = vmul.f32 %v1819, %v1987
        %v1992 = vmul.f32 %v1820, %v1988
        %v1993 = vmul.f32 %v1821, %v1989
        %1994 = vst [vmem:[#allocation2] sm:$0xff] %v1990
        %1995 = vst [vmem:[#allocation2 + $0x8] sm:$0xff] %v1991
        %1996 = vst [vmem:[#allocation2 + $0x10] sm:$0xff] %v1992
        %1997 = vst [vmem:[#allocation2 + $0x18] sm:$0xff] %v1993
      $region76: #{fno_forward.4} parent=67 // pred_fallthru
        _
      %p1998 = scmp.eq.s32.totalorder %s28, 3
      // Predicated region
      $region77: #{fno_forward.4} parent=67 // pred_check
        %p1999 = pneg %p1998
      $region78: #{fno_forward.4} parent=67 // pred_check_branch
        %2001 = sbr.rel (%p1999) target = $region80
      $region79: #{fno_forward.4} parent=67 // pred_region
        %2002 = vst [vmem:[%s567] sm:$0xff] %v1810
        %2003 = vst [vmem:[%s567 + $0x8] sm:$0xff] %v1811
        %2004 = vst [vmem:[%s567 + $0x10] sm:$0xff] %v1812
        %2005 = vst [vmem:[%s567 + $0x18] sm:$0xff] %v1813
      $region80: #{fno_forward.4} parent=67 // pred_fallthru
        _
      %p2006 = scmp.lt.s32.totalorder %s27, 1
      %s2007 = scalar_select %p2006, %s27, 1
      %s2008 = smul.addr %s2007, 4
      %s2009 = smul.addr %s2008, 8
      %s2010 = scalar_lea.vmem %s12, %s2009
      // Predicated region
      $region81: #{fno_forward.4} parent=67 // pred_check
        %p2011 = pneg %p350
      $region82: #{fno_forward.4} parent=67 // pred_check_branch
        %2013 = sbr.rel (%p2011) target = $region84
      $region83: #{fno_forward.4} parent=67 // pred_region
        _
      $region84: #{fno_forward.4} parent=67 // pred_fallthru
        _
    $region68: #{fno_forward.4} parent=5 // pred_fallthru
      _
    %p2014 = scmp.le.s32.totalorder 2, %s18
    // Predicated region
    $region85: #{fno_forward.4} parent=5 // pred_check
      %p2015 = pneg %p2014
    $region86: #{fno_forward.4} parent=5 // pred_check_branch
      %2017 = sbr.rel (%p2015) target = $region88
    $region87: #{fno_forward.4} parent=5 // pred_region
      %s2018 = ssub.s32 %s18, 2
      // Predicated region
      $region89: #{fno_forward.4} parent=87 // pred_check
        %p2019 = pneg %p356
      $region90: #{fno_forward.4} parent=87 // pred_check_branch
        %2021 = sbr.rel (%p2019) target = $region92
      $region91: #{fno_forward.4} parent=87 // pred_region
        %p2022 = scmp.lt.s32.totalorder %s29, 1
        %s2023 = scalar_select %p2022, %s29, 1
        %s2024 = smul.addr %s2023, 4
        %s2025 = smul.addr %s2024, 8
        %s2026 = scalar_lea.vmem %s12, %s2025
      $region92: #{fno_forward.4} parent=87 // pred_fallthru
        _
    $region88: #{fno_forward.4} parent=5 // pred_fallthru
      _
  $region6: #{fno_forward.4} parent=0 // loop_footer
    %s22 = sadd.s32 1, %s18
  $region7: #{fno_forward.4} parent=0 // loop_footer_branch
    %17 = sbr.rel target = $region3
  $region8: #{fno_forward.4} parent=0 // loop_exit
    _

// kernel: fno_forward.5
$region0: #{fno_forward.5}
  #allocation0 [shape = 'u32[]', space=smem, size = 0x4, offset = 0x4, fixed_abs, tag = 'smem constant byte address 0x4 - core index']
  #allocation1 [shape = 'u32[72,128]{1,0:T(1,128)}', space=vmem, size = 0x9000, scoped, tag = 'internal scratch']
  #allocation2 [shape = 'f32[1,1]{1,0:T(1,128)S(1)}', space=vmem, size = 0x200, scoped, tag = 'scoped memory for fno_forward.5']
  %s0 = inlined_call_operand.vmem [shape: f32[2,8,384], index: 0, kind: input, shape index: {}]
  %s1 = inlined_call_operand.vmem [shape: f32[32,8], index: 1, kind: input, shape index: {}]
  %s2 = inlined_call_operand.vmem [shape: f32[32,1], index: 2, kind: input, shape index: {}]
  %s3 = inlined_call_operand.vmem [shape: f32[1,32], index: 3, kind: input, shape index: {}]
  %s4 = inlined_call_operand.<no memory space> [shape: f32[1,1], index: 4, kind: input, shape index: {}]
  %s5 = inlined_call_operand.vmem [shape: f32[2,1,384], index: 5, kind: output, shape index: {}]
  %s6 = sld [smem:[#allocation0]]
  $region53: #{fno_forward.5} parent=0
    _
  %s8 = ssub.s32 1, %s6
  %s9 = scalar_select 0, %s8, %s6
  %v10 = vstv %s4
  %11 = vst [vmem:[#allocation2] sm:$0x1] %v10
  loop: start=0, step=1, limit=4
  $region2: #{fno_forward.5} parent=0 // loop_pre_header
    _
  $region3: #{fno_forward.5} parent=0 // loop_header
    %s13 = sphi 0, %s17
    %p14 = scmp.ge.s32.totalorder %s13, 4
    %s23 = sphi 0, %s25
    %s26 = sphi 0, %s23
    %s27 = sphi 0, %s26
    %s43 = sphi 0, %s27
    %s47 = sphi 0, %s47
    %s49 = sphi 0, %s47
    %s50 = sphi 0, %s49
    %s64 = sphi 0, %s50
    %s68 = sphi 0, %s68
    %s70 = sphi 0, %s68
    %s71 = sphi 0, %s70
    %s85 = sphi 0, %s71
    %s89 = sphi 0, %s89
    %s91 = sphi 0, %s89
    %s92 = sphi 0, %s91
    %s106 = sphi 0, %s92
    %s110 = sphi 0, %s110
    %s112 = sphi 0, %s110
    %s113 = sphi 0, %s112
    %s127 = sphi 0, %s113
    %s133 = sphi 0, %s135
    %s136 = sphi 0, %s133
    %s137 = sphi 0, %s136
    %s153 = sphi 0, %s137
  $region4: #{fno_forward.5} parent=0 // loop_header_branch
    %16 = sbr.rel (%p14) target = $region8
  $region5: #{fno_forward.5} parent=0 // loop_body
    %s18 = ssub.s32 %s13, 1
    %s19 = ssub.s32 %s13, 2
    %s20 = sadd.s32 %s13, 1
    %s21 = ssub.s32 %s13, %s20
    %p22 = scmp.eq.s32.totalorder %s21, 0
    %s24 = sadd.s32 %s23, 1
    %s25 = scalar_select %p22, %s23, %s24
    %p28 = pneg %p22
    %p29 = scmp.eq.s32.totalorder %s13, 1
    %p30 = por %p28, %p29
    %p31 = scmp.ne.s32.totalorder %s23, %s26
    %p32 = scmp.eq.s32.totalorder %s13, 0
    %p33 = por %p31, %p32
    %p34 = scmp.ne.s32.totalorder %s23, %s26
    %p35 = scmp.eq.s32.totalorder %s18, 1
    %p36 = por %p34, %p35
    %p37 = scmp.ne.s32.totalorder %s26, %s27
    %p38 = scmp.eq.s32.totalorder %s18, 0
    %p39 = por %p37, %p38
    %p40 = scmp.ne.s32.totalorder %s26, %s27
    %p41 = scmp.eq.s32.totalorder %s19, 1
    %p42 = por %p40, %p41
    %p44 = scmp.ne.s32.totalorder %s27, %s43
    %p45 = scmp.eq.s32.totalorder %s19, 0
    %p46 = por %p44, %p45
    %s48 = sadd.s32 %s47, 1
    %p51 = scmp.eq.s32.totalorder %s13, 1
    %p52 = scmp.ne.s32.totalorder %s47, %s49
    %p53 = scmp.eq.s32.totalorder %s13, 0
    %p54 = por %p52, %p53
    %p55 = scmp.ne.s32.totalorder %s47, %s49
    %p56 = scmp.eq.s32.totalorder %s18, 1
    %p57 = por %p55, %p56
    %p58 = scmp.ne.s32.totalorder %s49, %s50
    %p59 = scmp.eq.s32.totalorder %s18, 0
    %p60 = por %p58, %p59
    %p61 = scmp.ne.s32.totalorder %s49, %s50
    %p62 = scmp.eq.s32.totalorder %s19, 1
    %p63 = por %p61, %p62
    %p65 = scmp.ne.s32.totalorder %s50, %s64
    %p66 = scmp.eq.s32.totalorder %s19, 0
    %p67 = por %p65, %p66
    %s69 = sadd.s32 %s68, 1
    %p72 = scmp.eq.s32.totalorder %s13, 1
    %p73 = scmp.ne.s32.totalorder %s68, %s70
    %p74 = scmp.eq.s32.totalorder %s13, 0
    %p75 = por %p73, %p74
    %p76 = scmp.ne.s32.totalorder %s68, %s70
    %p77 = scmp.eq.s32.totalorder %s18, 1
    %p78 = por %p76, %p77
    %p79 = scmp.ne.s32.totalorder %s70, %s71
    %p80 = scmp.eq.s32.totalorder %s18, 0
    %p81 = por %p79, %p80
    %p82 = scmp.ne.s32.totalorder %s70, %s71
    %p83 = scmp.eq.s32.totalorder %s19, 1
    %p84 = por %p82, %p83
    %p86 = scmp.ne.s32.totalorder %s71, %s85
    %p87 = scmp.eq.s32.totalorder %s19, 0
    %p88 = por %p86, %p87
    %s90 = sadd.s32 %s89, 1
    %p93 = scmp.eq.s32.totalorder %s13, 1
    %p94 = scmp.ne.s32.totalorder %s89, %s91
    %p95 = scmp.eq.s32.totalorder %s13, 0
    %p96 = por %p94, %p95
    %p97 = scmp.ne.s32.totalorder %s89, %s91
    %p98 = scmp.eq.s32.totalorder %s18, 1
    %p99 = por %p97, %p98
    %p100 = scmp.ne.s32.totalorder %s91, %s92
    %p101 = scmp.eq.s32.totalorder %s18, 0
    %p102 = por %p100, %p101
    %p103 = scmp.ne.s32.totalorder %s91, %s92
    %p104 = scmp.eq.s32.totalorder %s19, 1
    %p105 = por %p103, %p104
    %p107 = scmp.ne.s32.totalorder %s92, %s106
    %p108 = scmp.eq.s32.totalorder %s19, 0
    %p109 = por %p107, %p108
    %s111 = sadd.s32 %s110, 1
    %p114 = scmp.eq.s32.totalorder %s13, 1
    %p115 = scmp.ne.s32.totalorder %s110, %s112
    %p116 = scmp.eq.s32.totalorder %s13, 0
    %p117 = por %p115, %p116
    %p118 = scmp.ne.s32.totalorder %s110, %s112
    %p119 = scmp.eq.s32.totalorder %s18, 1
    %p120 = por %p118, %p119
    %p121 = scmp.ne.s32.totalorder %s112, %s113
    %p122 = scmp.eq.s32.totalorder %s18, 0
    %p123 = por %p121, %p122
    %p124 = scmp.ne.s32.totalorder %s112, %s113
    %p125 = scmp.eq.s32.totalorder %s19, 1
    %p126 = por %p124, %p125
    %p128 = scmp.ne.s32.totalorder %s113, %s127
    %p129 = scmp.eq.s32.totalorder %s19, 0
    %p130 = por %p128, %p129
    %s131 = ssub.s32 %s13, %s20
    %p132 = scmp.eq.s32.totalorder %s131, 0
    %s134 = sadd.s32 %s133, 1
    %s135 = scalar_select %p132, %s133, %s134
    %p138 = pneg %p132
    %p139 = scmp.eq.s32.totalorder %s13, 1
    %p140 = por %p138, %p139
    %p141 = scmp.ne.s32.totalorder %s133, %s136
    %p142 = scmp.eq.s32.totalorder %s13, 0
    %p143 = por %p141, %p142
    %p144 = scmp.ne.s32.totalorder %s133, %s136
    %p145 = scmp.eq.s32.totalorder %s18, 1
    %p146 = por %p144, %p145
    %p147 = scmp.ne.s32.totalorder %s136, %s137
    %p148 = scmp.eq.s32.totalorder %s18, 0
    %p149 = por %p147, %p148
    %p150 = scmp.ne.s32.totalorder %s136, %s137
    %p151 = scmp.eq.s32.totalorder %s19, 1
    %p152 = por %p150, %p151
    %p154 = scmp.ne.s32.totalorder %s137, %s153
    %p155 = scmp.eq.s32.totalorder %s19, 0
    %p156 = por %p154, %p155
    %p157 = scmp.le.s32.totalorder 1, %s13
    %p158 = scmp.lt.s32.totalorder %s13, 3
    %p159 = pnand %p157, %p158
    %p160 = pneg %p159
    // Predicated region
    $region9: #{fno_forward.5} parent=5 // pred_check
      _
    $region10: #{fno_forward.5} parent=5 // pred_check_branch
      %162 = sbr.rel (%p159) target = $region12
    $region11: #{fno_forward.5} parent=5 // pred_region
      %s163 = ssub.s32 %s13, 1
      // Predicated region
      $region13: #{fno_forward.5} parent=11 // pred_check
        %p164 = pneg %p60
      $region14: #{fno_forward.5} parent=11 // pred_check_branch
        %166 = sbr.rel (%p164) target = $region16
      $region15: #{fno_forward.5} parent=11 // pred_region
        _
      $region16: #{fno_forward.5} parent=11 // pred_fallthru
        _
      // Predicated region
      $region17: #{fno_forward.5} parent=11 // pred_check
        %p167 = pneg %p81
      $region18: #{fno_forward.5} parent=11 // pred_check_branch
        %169 = sbr.rel (%p167) target = $region20
      $region19: #{fno_forward.5} parent=11 // pred_region
        _
      $region20: #{fno_forward.5} parent=11 // pred_fallthru
        _
      // Predicated region
      $region21: #{fno_forward.5} parent=11 // pred_check
        %p170 = pneg %p102
      $region22: #{fno_forward.5} parent=11 // pred_check_branch
        %172 = sbr.rel (%p170) target = $region24
      $region23: #{fno_forward.5} parent=11 // pred_region
        _
      $region24: #{fno_forward.5} parent=11 // pred_fallthru
        _
      // Predicated region
      $region25: #{fno_forward.5} parent=11 // pred_check
        %p173 = pneg %p123
      $region26: #{fno_forward.5} parent=11 // pred_check_branch
        %175 = sbr.rel (%p173) target = $region28
      $region27: #{fno_forward.5} parent=11 // pred_region
        _
      $region28: #{fno_forward.5} parent=11 // pred_fallthru
        _
    $region12: #{fno_forward.5} parent=5 // pred_fallthru
      _
    %p176 = scmp.lt.s32.totalorder %s13, 2
    // Predicated region
    $region29: #{fno_forward.5} parent=5 // pred_check
      %p177 = pneg %p176
    $region30: #{fno_forward.5} parent=5 // pred_check_branch
      %179 = sbr.rel (%p177) target = $region32
    $region31: #{fno_forward.5} parent=5 // pred_region
      // Predicated region
      $region33: #{fno_forward.5} parent=31 // pred_check
        %p180 = pneg %p33
      $region34: #{fno_forward.5} parent=31 // pred_check_branch
        %182 = sbr.rel (%p180) target = $region36
      $region35: #{fno_forward.5} parent=31 // pred_region
        %p183 = scmp.lt.s32.totalorder %s13, 1
        %s184 = scalar_select %p183, %s13, 1
        %s185 = smul.addr %s184, 3
        %s186 = smul.addr %s185, 8
        %s187 = scalar_lea.vmem %s0, %s186
      $region36: #{fno_forward.5} parent=31 // pred_fallthru
        _
    $region32: #{fno_forward.5} parent=5 // pred_fallthru
      _
    %p188 = scmp.le.s32.totalorder 1, %s13
    %p189 = scmp.lt.s32.totalorder %s13, 3
    %p190 = pnand %p188, %p189
    %p191 = pneg %p190
    // Predicated region
    $region37: #{fno_forward.5} parent=5 // pred_check
      _
    $region38: #{fno_forward.5} parent=5 // pred_check_branch
      %193 = sbr.rel (%p190) target = $region40
    $region39: #{fno_forward.5} parent=5 // pred_region
      %s194 = ssub.s32 %s13, 1
      %p195 = scmp.lt.s32.totalorder %s18, 1
      %s196 = scalar_select %p195, %s18, 1
      %s197 = smul.addr %s196, 3
      %s198 = smul.addr %s197, 8
      %s199 = scalar_lea.vmem %s0, %s198
      %p200 = pneg %p39
      %p201 = pneg %p36
      %p202 = pneg %p60
      %p203 = pneg %p57
      %p204 = pneg %p81
      %p205 = pneg %p78
      %p206 = pneg %p102
      %p207 = pneg %p99
      %p208 = pneg %p123
      %p209 = pneg %p120
      %p210 = pneg %p149
      %p211 = pneg %p146
      %p212 = scmp.lt.s32.totalorder %s18, 1
      %s213 = scalar_select %p212, %s18, 1
      %s214 = smul.addr %s213, 3
      %s215 = scalar_lea.vmem %s5, %s214
      %p216 = scmp.lt.s32.totalorder %s18, 1
      %s217 = scalar_select %p216, %s18, 1
      %s218 = smul.addr %s217, 3
      %s219 = smul.addr %s218, 8
      %s220 = scalar_lea.vmem %s0, %s219
      %p221 = scmp.lt.s32.totalorder %s18, 1
      %s222 = scalar_select %p221, %s18, 1
      %s223 = smul.addr %s222, 3
      %s224 = scalar_lea.vmem %s5, %s223
      %v225 = vld [vmem:[%s1] sm:$0xff]
      %v226 = vld [vmem:[%s1 + $0x8] sm:$0xff]
      %v227 = vld [vmem:[%s1 + $0x10] sm:$0xff]
      %v228 = vld [vmem:[%s1 + $0x18] sm:$0xff]
      %v229 = vld [vmem:[%s220] sm:$0xff]
      %v230 = vld [vmem:[%s220 + $0x8] sm:$0xff]
      %v231 = vld [vmem:[%s220 + $0x10] sm:$0xff]
      %v232 = vld [vmem:[%s2] sm:$0xff]
      %v233 = vld [vmem:[%s2 + $0x8] sm:$0xff]
      %v234 = vld [vmem:[%s2 + $0x10] sm:$0xff]
      %v235 = vld [vmem:[%s2 + $0x18] sm:$0xff]
      %237 = vset.pattern.permute.xlu0 0
      %238 = vperm.xlu0 %237, %v232
      %v239 = vpop.permute.xlu0 %238
      %242 = vset.pattern.permute.xlu0 0
      %243 = vperm.xlu0 %242, %v233
      %v244 = vpop.permute.xlu0 %243
      %247 = vset.pattern.permute.xlu0 0
      %248 = vperm.xlu0 %247, %v234
      %v249 = vpop.permute.xlu0 %248
      %252 = vset.pattern.permute.xlu0 0
      %253 = vperm.xlu0 %252, %v235
      %v254 = vpop.permute.xlu0 %253
      %vm256 = vcmask 64512
      %v258 = vsel %vm256, %v225, 0
      %v261 = vsel %vm256, %v226, 0
      %v264 = vsel %vm256, %v227, 0
      %v267 = vsel %vm256, %v228, 0
      %269 = vmatpush.msra.mxu0 0.0
      %270 = vmatpush.msra.mxu0 0.0
      %271 = vmatpush.msra.mxu0 0.0
      %272 = vmatpush.msra.mxu0 0.0
      %273 = vmatpush.msra.mxu0 0.0
      %274 = vmatpush.msra.mxu0 0.0
      %275 = vmatpush.msra.mxu0 0.0
      %276 = vmatpush.msra.mxu0 0.0
      %277 = vmatpush.msra.mxu0 0.0
      %278 = vmatpush.msra.mxu0 0.0
      %279 = vmatpush.msra.mxu0 0.0
      %280 = vmatpush.msra.mxu0 0.0
      %281 = vmatpush.msra.mxu0 0.0
      %282 = vmatpush.msra.mxu0 0.0
      %283 = vmatpush.msra.mxu0 0.0
      %284 = vmatpush.msra.mxu0 %v229
      %285 = vmatmul.f32.gmra.mxu0 %v258
      %v286 = vpop.f32.mrf.mxu0
      %v287 = vadd.f32 %v239, %v286
      %288 = vmatmul.f32.gmra.mxu0 %v261
      %v289 = vpop.f32.mrf.mxu0
      %v290 = vadd.f32 %v244, %v289
      %291 = vmatmul.f32.gmra.mxu0 %v264
      %v292 = vpop.f32.mrf.mxu0
      %v293 = vadd.f32 %v249, %v292
      %294 = vmatmul.f32.gmra.mxu0 %v267
      %v295 = vpop.f32.mrf.mxu0
      %v296 = vadd.f32 %v254, %v295
      %297 = vdwg.mxu0
      %298 = vmatpush.msra.mxu0 0.0
      %299 = vmatpush.msra.mxu0 0.0
      %300 = vmatpush.msra.mxu0 0.0
      %301 = vmatpush.msra.mxu0 0.0
      %302 = vmatpush.msra.mxu0 0.0
      %303 = vmatpush.msra.mxu0 0.0
      %304 = vmatpush.msra.mxu0 0.0
      %305 = vmatpush.msra.mxu0 0.0
      %306 = vmatpush.msra.mxu0 0.0
      %307 = vmatpush.msra.mxu0 0.0
      %308 = vmatpush.msra.mxu0 0.0
      %309 = vmatpush.msra.mxu0 0.0
      %310 = vmatpush.msra.mxu0 0.0
      %311 = vmatpush.msra.mxu0 0.0
      %312 = vmatpush.msra.mxu0 0.0
      %313 = vmatpush.msra.mxu0 %v230
      %314 = vmatmul.f32.gmra.mxu0 %v258
      %v315 = vpop.f32.mrf.mxu0
      %v316 = vadd.f32 %v239, %v315
      %317 = vmatmul.f32.gmra.mxu0 %v261
      %v318 = vpop.f32.mrf.mxu0
      %v319 = vadd.f32 %v244, %v318
      %320 = vmatmul.f32.gmra.mxu0 %v264
      %v321 = vpop.f32.mrf.mxu0
      %v322 = vadd.f32 %v249, %v321
      %323 = vmatmul.f32.gmra.mxu0 %v267
      %v324 = vpop.f32.mrf.mxu0
      %v325 = vadd.f32 %v254, %v324
      %326 = vdwg.mxu0
      %327 = vmatpush.msra.mxu0 0.0
      %328 = vmatpush.msra.mxu0 0.0
      %329 = vmatpush.msra.mxu0 0.0
      %330 = vmatpush.msra.mxu0 0.0
      %331 = vmatpush.msra.mxu0 0.0
      %332 = vmatpush.msra.mxu0 0.0
      %333 = vmatpush.msra.mxu0 0.0
      %334 = vmatpush.msra.mxu0 0.0
      %335 = vmatpush.msra.mxu0 0.0
      %336 = vmatpush.msra.mxu0 0.0
      %337 = vmatpush.msra.mxu0 0.0
      %338 = vmatpush.msra.mxu0 0.0
      %339 = vmatpush.msra.mxu0 0.0
      %340 = vmatpush.msra.mxu0 0.0
      %341 = vmatpush.msra.mxu0 0.0
      %342 = vmatpush.msra.mxu0 %v231
      %343 = vmatmul.f32.gmra.mxu0 %v258
      %v344 = vpop.f32.mrf.mxu0
      %v345 = vadd.f32 %v239, %v344
      %346 = vmatmul.f32.gmra.mxu0 %v261
      %v347 = vpop.f32.mrf.mxu0
      %v348 = vadd.f32 %v244, %v347
      %349 = vmatmul.f32.gmra.mxu0 %v264
      %v350 = vpop.f32.mrf.mxu0
      %v351 = vadd.f32 %v249, %v350
      %352 = vmatmul.f32.gmra.mxu0 %v267
      %v353 = vpop.f32.mrf.mxu0
      %v354 = vadd.f32 %v254, %v353
      %355 = vdwg.mxu0
      %v356 = vmul.f32 %v287, 0.5
      %v357 = vmul.f32 %v316, 0.5
      %v358 = vmul.f32 %v345, 0.5
      %v359 = vmul.f32 %v290, 0.5
      %v360 = vmul.f32 %v319, 0.5
      %v361 = vmul.f32 %v348, 0.5
      %v362 = vmul.f32 %v293, 0.5
      %v363 = vmul.f32 %v322, 0.5
      %v364 = vmul.f32 %v351, 0.5
      %v365 = vmul.f32 %v296, 0.5
      %v366 = vmul.f32 %v325, 0.5
      %v367 = vmul.f32 %v354, 0.5
      %v368 = vmul.f32 %v287, 0.70710677
      %v369 = vmul.f32 %v316, 0.70710677
      %v370 = vmul.f32 %v345, 0.70710677
      %v371 = vmul.f32 %v290, 0.70710677
      %v372 = vmul.f32 %v319, 0.70710677
      %v373 = vmul.f32 %v348, 0.70710677
      %v374 = vmul.f32 %v293, 0.70710677
      %v375 = vmul.f32 %v322, 0.70710677
      %v376 = vmul.f32 %v351, 0.70710677
      %v377 = vmul.f32 %v296, 0.70710677
      %v378 = vmul.f32 %v325, 0.70710677
      %v379 = vmul.f32 %v354, 0.70710677
      %v380 = vmul.f32 %v368, %v368
      %v381 = vmin.f32 16.0, %v380
      %v382 = vmul.f32 %v381, 2.1237322e-06
      %v383 = vadd.f32 %v382, 0.00028619796
      %v384 = vmul.f32 %v381, %v383
      %v385 = vadd.f32 %v384, 0.0036580483
      %v386 = vmul.f32 %v381, %v385
      %v387 = vadd.f32 %v386, 0.05243302
      %v388 = vmul.f32 %v381, %v387
      %v389 = vadd.f32 %v388, 0.18741608
      %v390 = vmul.f32 %v381, %v389
      %v391 = vadd.f32 %v390, 1.1283791
      %v392 = vmul.f32 %v368, %v391
      %v393 = vmul.f32 %v381, 3.8918573e-05
      %v394 = vadd.f32 %v393, 0.001143296
      %v395 = vmul.f32 %v381, %v394
      %v396 = vadd.f32 %v395, 0.014752088
      %v397 = vmul.f32 %v381, %v396
      %v398 = vadd.f32 %v397, 0.112945676
      %v399 = vmul.f32 %v381, %v398
      %v400 = vadd.f32 %v399, 0.4994258
      %v401 = vmul.f32 %v381, %v400
      %v402 = vadd.f32 %v401, 1.0
      %v403 = vrcp.pop %v402
      %v404 = vmul.f32 %v402, %v403
      %v405 = vsub.f32 1.0, %v404
      %v406 = vmul.f32 %v403, %v405
      %v407 = vadd.f32 %v403, %v406
      %vm408 = vweird.f32 %v402
      %vm409 = vweird.f32 %v403
      %vm410 = vmor %vm408, %vm409
      %v411 = vsel %vm410, %v403, %v407
      %v412 = vand.u32 2147483647, %v402
      %vm413 = vcmp.eq.f32.partialorder %v412, 8.507059e+37
      %v414 = vand.u32 %v402, 2147483648
      %v415 = vor.u32 1.1754944e-38, %v414
      %v416 = vsel %vm413, %v415, %v411
      %v417 = vmul.f32 %v392, %v416
      %v418 = vmin.f32 %v417, 1.0
      %v419 = vmax.f32 %v418, -1.0
      %v420 = vmul.f32 %v369, %v369
      %v421 = vmin.f32 16.0, %v420
      %v422 = vmul.f32 %v421, 2.1237322e-06
      %v423 = vadd.f32 %v422, 0.00028619796
      %v424 = vmul.f32 %v421, %v423
      %v425 = vadd.f32 %v424, 0.0036580483
      %v426 = vmul.f32 %v421, %v425
      %v427 = vadd.f32 %v426, 0.05243302
      %v428 = vmul.f32 %v421, %v427
      %v429 = vadd.f32 %v428, 0.18741608
      %v430 = vmul.f32 %v421, %v429
      %v431 = vadd.f32 %v430, 1.1283791
      %v432 = vmul.f32 %v369, %v431
      %v433 = vmul.f32 %v421, 3.8918573e-05
      %v434 = vadd.f32 %v433, 0.001143296
      %v435 = vmul.f32 %v421, %v434
      %v436 = vadd.f32 %v435, 0.014752088
      %v437 = vmul.f32 %v421, %v436
      %v438 = vadd.f32 %v437, 0.112945676
      %v439 = vmul.f32 %v421, %v438
      %v440 = vadd.f32 %v439, 0.4994258
      %v441 = vmul.f32 %v421, %v440
      %v442 = vadd.f32 %v441, 1.0
      %v443 = vrcp.pop %v442
      %v444 = vmul.f32 %v442, %v443
      %v445 = vsub.f32 1.0, %v444
      %v446 = vmul.f32 %v443, %v445
      %v447 = vadd.f32 %v443, %v446
      %vm448 = vweird.f32 %v442
      %vm449 = vweird.f32 %v443
      %vm450 = vmor %vm448, %vm449
      %v451 = vsel %vm450, %v443, %v447
      %v452 = vand.u32 2147483647, %v442
      %vm453 = vcmp.eq.f32.partialorder %v452, 8.507059e+37
      %v454 = vand.u32 %v442, 2147483648
      %v455 = vor.u32 1.1754944e-38, %v454
      %v456 = vsel %vm453, %v455, %v451
      %v457 = vmul.f32 %v432, %v456
      %v458 = vmin.f32 %v457, 1.0
      %v459 = vmax.f32 %v458, -1.0
      %v460 = vmul.f32 %v370, %v370
      %v461 = vmin.f32 16.0, %v460
      %v462 = vmul.f32 %v461, 2.1237322e-06
      %v463 = vadd.f32 %v462, 0.00028619796
      %v464 = vmul.f32 %v461, %v463
      %v465 = vadd.f32 %v464, 0.0036580483
      %v466 = vmul.f32 %v461, %v465
      %v467 = vadd.f32 %v466, 0.05243302
      %v468 = vmul.f32 %v461, %v467
      %v469 = vadd.f32 %v468, 0.18741608
      %v470 = vmul.f32 %v461, %v469
      %v471 = vadd.f32 %v470, 1.1283791
      %v472 = vmul.f32 %v370, %v471
      %v473 = vmul.f32 %v461, 3.8918573e-05
      %v474 = vadd.f32 %v473, 0.001143296
      %v475 = vmul.f32 %v461, %v474
      %v476 = vadd.f32 %v475, 0.014752088
      %v477 = vmul.f32 %v461, %v476
      %v478 = vadd.f32 %v477, 0.112945676
      %v479 = vmul.f32 %v461, %v478
      %v480 = vadd.f32 %v479, 0.4994258
      %v481 = vmul.f32 %v461, %v480
      %v482 = vadd.f32 %v481, 1.0
      %v483 = vrcp.pop %v482
      %v484 = vmul.f32 %v482, %v483
      %v485 = vsub.f32 1.0, %v484
      %v486 = vmul.f32 %v483, %v485
      %v487 = vadd.f32 %v483, %v486
      %vm488 = vweird.f32 %v482
      %vm489 = vweird.f32 %v483
      %vm490 = vmor %vm488, %vm489
      %v491 = vsel %vm490, %v483, %v487
      %v492 = vand.u32 2147483647, %v482
      %vm493 = vcmp.eq.f32.partialorder %v492, 8.507059e+37
      %v494 = vand.u32 %v482, 2147483648
      %v495 = vor.u32 1.1754944e-38, %v494
      %v496 = vsel %vm493, %v495, %v491
      %v497 = vmul.f32 %v472, %v496
      %v498 = vmin.f32 %v497, 1.0
      %v499 = vmax.f32 %v498, -1.0
      %v500 = vmul.f32 %v371, %v371
      %v501 = vmin.f32 16.0, %v500
      %v502 = vmul.f32 %v501, 2.1237322e-06
      %v503 = vadd.f32 %v502, 0.00028619796
      %v504 = vmul.f32 %v501, %v503
      %v505 = vadd.f32 %v504, 0.0036580483
      %v506 = vmul.f32 %v501, %v505
      %v507 = vadd.f32 %v506, 0.05243302
      %v508 = vmul.f32 %v501, %v507
      %v509 = vadd.f32 %v508, 0.18741608
      %v510 = vmul.f32 %v501, %v509
      %v511 = vadd.f32 %v510, 1.1283791
      %v512 = vmul.f32 %v371, %v511
      %v513 = vmul.f32 %v501, 3.8918573e-05
      %v514 = vadd.f32 %v513, 0.001143296
      %v515 = vmul.f32 %v501, %v514
      %v516 = vadd.f32 %v515, 0.014752088
      %v517 = vmul.f32 %v501, %v516
      %v518 = vadd.f32 %v517, 0.112945676
      %v519 = vmul.f32 %v501, %v518
      %v520 = vadd.f32 %v519, 0.4994258
      %v521 = vmul.f32 %v501, %v520
      %v522 = vadd.f32 %v521, 1.0
      %v523 = vrcp.pop %v522
      %v524 = vmul.f32 %v522, %v523
      %v525 = vsub.f32 1.0, %v524
      %v526 = vmul.f32 %v523, %v525
      %v527 = vadd.f32 %v523, %v526
      %vm528 = vweird.f32 %v522
      %vm529 = vweird.f32 %v523
      %vm530 = vmor %vm528, %vm529
      %v531 = vsel %vm530, %v523, %v527
      %v532 = vand.u32 2147483647, %v522
      %vm533 = vcmp.eq.f32.partialorder %v532, 8.507059e+37
      %v534 = vand.u32 %v522, 2147483648
      %v535 = vor.u32 1.1754944e-38, %v534
      %v536 = vsel %vm533, %v535, %v531
      %v537 = vmul.f32 %v512, %v536
      %v538 = vmin.f32 %v537, 1.0
      %v539 = vmax.f32 %v538, -1.0
      %v540 = vmul.f32 %v372, %v372
      %v541 = vmin.f32 16.0, %v540
      %v542 = vmul.f32 %v541, 2.1237322e-06
      %v543 = vadd.f32 %v542, 0.00028619796
      %v544 = vmul.f32 %v541, %v543
      %v545 = vadd.f32 %v544, 0.0036580483
      %v546 = vmul.f32 %v541, %v545
      %v547 = vadd.f32 %v546, 0.05243302
      %v548 = vmul.f32 %v541, %v547
      %v549 = vadd.f32 %v548, 0.18741608
      %v550 = vmul.f32 %v541, %v549
      %v551 = vadd.f32 %v550, 1.1283791
      %v552 = vmul.f32 %v372, %v551
      %v553 = vmul.f32 %v541, 3.8918573e-05
      %v554 = vadd.f32 %v553, 0.001143296
      %v555 = vmul.f32 %v541, %v554
      %v556 = vadd.f32 %v555, 0.014752088
      %v557 = vmul.f32 %v541, %v556
      %v558 = vadd.f32 %v557, 0.112945676
      %v559 = vmul.f32 %v541, %v558
      %v560 = vadd.f32 %v559, 0.4994258
      %v561 = vmul.f32 %v541, %v560
      %v562 = vadd.f32 %v561, 1.0
      %v563 = vrcp.pop %v562
      %v564 = vmul.f32 %v562, %v563
      %v565 = vsub.f32 1.0, %v564
      %v566 = vmul.f32 %v563, %v565
      %v567 = vadd.f32 %v563, %v566
      %vm568 = vweird.f32 %v562
      %vm569 = vweird.f32 %v563
      %vm570 = vmor %vm568, %vm569
      %v571 = vsel %vm570, %v563, %v567
      %v572 = vand.u32 2147483647, %v562
      %vm573 = vcmp.eq.f32.partialorder %v572, 8.507059e+37
      %v574 = vand.u32 %v562, 2147483648
      %v575 = vor.u32 1.1754944e-38, %v574
      %v576 = vsel %vm573, %v575, %v571
      %v577 = vmul.f32 %v552, %v576
      %v578 = vmin.f32 %v577, 1.0
      %v579 = vmax.f32 %v578, -1.0
      %v580 = vmul.f32 %v373, %v373
      %v581 = vmin.f32 16.0, %v580
      %v582 = vmul.f32 %v581, 2.1237322e-06
      %v583 = vadd.f32 %v582, 0.00028619796
      %v584 = vmul.f32 %v581, %v583
      %v585 = vadd.f32 %v584, 0.0036580483
      %v586 = vmul.f32 %v581, %v585
      %v587 = vadd.f32 %v586, 0.05243302
      %v588 = vmul.f32 %v581, %v587
      %v589 = vadd.f32 %v588, 0.18741608
      %v590 = vmul.f32 %v581, %v589
      %v591 = vadd.f32 %v590, 1.1283791
      %v592 = vmul.f32 %v373, %v591
      %v593 = vmul.f32 %v581, 3.8918573e-05
      %v594 = vadd.f32 %v593, 0.001143296
      %v595 = vmul.f32 %v581, %v594
      %v596 = vadd.f32 %v595, 0.014752088
      %v597 = vmul.f32 %v581, %v596
      %v598 = vadd.f32 %v597, 0.112945676
      %v599 = vmul.f32 %v581, %v598
      %v600 = vadd.f32 %v599, 0.4994258
      %v601 = vmul.f32 %v581, %v600
      %v602 = vadd.f32 %v601, 1.0
      %v603 = vrcp.pop %v602
      %v604 = vmul.f32 %v602, %v603
      %v605 = vsub.f32 1.0, %v604
      %v606 = vmul.f32 %v603, %v605
      %v607 = vadd.f32 %v603, %v606
      %vm608 = vweird.f32 %v602
      %vm609 = vweird.f32 %v603
      %vm610 = vmor %vm608, %vm609
      %v611 = vsel %vm610, %v603, %v607
      %v612 = vand.u32 2147483647, %v602
      %vm613 = vcmp.eq.f32.partialorder %v612, 8.507059e+37
      %v614 = vand.u32 %v602, 2147483648
      %v615 = vor.u32 1.1754944e-38, %v614
      %v616 = vsel %vm613, %v615, %v611
      %v617 = vmul.f32 %v592, %v616
      %v618 = vmin.f32 %v617, 1.0
      %v619 = vmax.f32 %v618, -1.0
      %v620 = vmul.f32 %v374, %v374
      %v621 = vmin.f32 16.0, %v620
      %v622 = vmul.f32 %v621, 2.1237322e-06
      %v623 = vadd.f32 %v622, 0.00028619796
      %v624 = vmul.f32 %v621, %v623
      %v625 = vadd.f32 %v624, 0.0036580483
      %v626 = vmul.f32 %v621, %v625
      %v627 = vadd.f32 %v626, 0.05243302
      %v628 = vmul.f32 %v621, %v627
      %v629 = vadd.f32 %v628, 0.18741608
      %v630 = vmul.f32 %v621, %v629
      %v631 = vadd.f32 %v630, 1.1283791
      %v632 = vmul.f32 %v374, %v631
      %v633 = vmul.f32 %v621, 3.8918573e-05
      %v634 = vadd.f32 %v633, 0.001143296
      %v635 = vmul.f32 %v621, %v634
      %v636 = vadd.f32 %v635, 0.014752088
      %v637 = vmul.f32 %v621, %v636
      %v638 = vadd.f32 %v637, 0.112945676
      %v639 = vmul.f32 %v621, %v638
      %v640 = vadd.f32 %v639, 0.4994258
      %v641 = vmul.f32 %v621, %v640
      %v642 = vadd.f32 %v641, 1.0
      %v643 = vrcp.pop %v642
      %v644 = vmul.f32 %v642, %v643
      %v645 = vsub.f32 1.0, %v644
      %v646 = vmul.f32 %v643, %v645
      %v647 = vadd.f32 %v643, %v646
      %vm648 = vweird.f32 %v642
      %vm649 = vweird.f32 %v643
      %vm650 = vmor %vm648, %vm649
      %v651 = vsel %vm650, %v643, %v647
      %v652 = vand.u32 2147483647, %v642
      %vm653 = vcmp.eq.f32.partialorder %v652, 8.507059e+37
      %v654 = vand.u32 %v642, 2147483648
      %v655 = vor.u32 1.1754944e-38, %v654
      %v656 = vsel %vm653, %v655, %v651
      %v657 = vmul.f32 %v632, %v656
      %v658 = vmin.f32 %v657, 1.0
      %v659 = vmax.f32 %v658, -1.0
      %v660 = vmul.f32 %v375, %v375
      %v661 = vmin.f32 16.0, %v660
      %v662 = vmul.f32 %v661, 2.1237322e-06
      %v663 = vadd.f32 %v662, 0.00028619796
      %v664 = vmul.f32 %v661, %v663
      %v665 = vadd.f32 %v664, 0.0036580483
      %v666 = vmul.f32 %v661, %v665
      %v667 = vadd.f32 %v666, 0.05243302
      %v668 = vmul.f32 %v661, %v667
      %v669 = vadd.f32 %v668, 0.18741608
      %v670 = vmul.f32 %v661, %v669
      %v671 = vadd.f32 %v670, 1.1283791
      %v672 = vmul.f32 %v375, %v671
      %v673 = vmul.f32 %v661, 3.8918573e-05
      %v674 = vadd.f32 %v673, 0.001143296
      %v675 = vmul.f32 %v661, %v674
      %v676 = vadd.f32 %v675, 0.014752088
      %v677 = vmul.f32 %v661, %v676
      %v678 = vadd.f32 %v677, 0.112945676
      %v679 = vmul.f32 %v661, %v678
      %v680 = vadd.f32 %v679, 0.4994258
      %v681 = vmul.f32 %v661, %v680
      %v682 = vadd.f32 %v681, 1.0
      %v683 = vrcp.pop %v682
      %v684 = vmul.f32 %v682, %v683
      %v685 = vsub.f32 1.0, %v684
      %v686 = vmul.f32 %v683, %v685
      %v687 = vadd.f32 %v683, %v686
      %vm688 = vweird.f32 %v682
      %vm689 = vweird.f32 %v683
      %vm690 = vmor %vm688, %vm689
      %v691 = vsel %vm690, %v683, %v687
      %v692 = vand.u32 2147483647, %v682
      %vm693 = vcmp.eq.f32.partialorder %v692, 8.507059e+37
      %v694 = vand.u32 %v682, 2147483648
      %v695 = vor.u32 1.1754944e-38, %v694
      %v696 = vsel %vm693, %v695, %v691
      %v697 = vmul.f32 %v672, %v696
      %v698 = vmin.f32 %v697, 1.0
      %v699 = vmax.f32 %v698, -1.0
      %v700 = vmul.f32 %v376, %v376
      %v701 = vmin.f32 16.0, %v700
      %v702 = vmul.f32 %v701, 2.1237322e-06
      %v703 = vadd.f32 %v702, 0.00028619796
      %v704 = vmul.f32 %v701, %v703
      %v705 = vadd.f32 %v704, 0.0036580483
      %v706 = vmul.f32 %v701, %v705
      %v707 = vadd.f32 %v706, 0.05243302
      %v708 = vmul.f32 %v701, %v707
      %v709 = vadd.f32 %v708, 0.18741608
      %v710 = vmul.f32 %v701, %v709
      %v711 = vadd.f32 %v710, 1.1283791
      %v712 = vmul.f32 %v376, %v711
      %v713 = vmul.f32 %v701, 3.8918573e-05
      %v714 = vadd.f32 %v713, 0.001143296
      %v715 = vmul.f32 %v701, %v714
      %v716 = vadd.f32 %v715, 0.014752088
      %v717 = vmul.f32 %v701, %v716
      %v718 = vadd.f32 %v717, 0.112945676
      %v719 = vmul.f32 %v701, %v718
      %v720 = vadd.f32 %v719, 0.4994258
      %v721 = vmul.f32 %v701, %v720
      %v722 = vadd.f32 %v721, 1.0
      %v723 = vrcp.pop %v722
      %v724 = vmul.f32 %v722, %v723
      %v725 = vsub.f32 1.0, %v724
      %v726 = vmul.f32 %v723, %v725
      %v727 = vadd.f32 %v723, %v726
      %vm728 = vweird.f32 %v722
      %vm729 = vweird.f32 %v723
      %vm730 = vmor %vm728, %vm729
      %v731 = vsel %vm730, %v723, %v727
      %v732 = vand.u32 2147483647, %v722
      %vm733 = vcmp.eq.f32.partialorder %v732, 8.507059e+37
      %v734 = vand.u32 %v722, 2147483648
      %v735 = vor.u32 1.1754944e-38, %v734
      %v736 = vsel %vm733, %v735, %v731
      %v737 = vmul.f32 %v712, %v736
      %v738 = vmin.f32 %v737, 1.0
      %v739 = vmax.f32 %v738, -1.0
      %v740 = vmul.f32 %v377, %v377
      %v741 = vmin.f32 16.0, %v740
      %v742 = vmul.f32 %v741, 2.1237322e-06
      %v743 = vadd.f32 %v742, 0.00028619796
      %v744 = vmul.f32 %v741, %v743
      %v745 = vadd.f32 %v744, 0.0036580483
      %v746 = vmul.f32 %v741, %v745
      %v747 = vadd.f32 %v746, 0.05243302
      %v748 = vmul.f32 %v741, %v747
      %v749 = vadd.f32 %v748, 0.18741608
      %v750 = vmul.f32 %v741, %v749
      %v751 = vadd.f32 %v750, 1.1283791
      %v752 = vmul.f32 %v377, %v751
      %v753 = vmul.f32 %v741, 3.8918573e-05
      %v754 = vadd.f32 %v753, 0.001143296
      %v755 = vmul.f32 %v741, %v754
      %v756 = vadd.f32 %v755, 0.014752088
      %v757 = vmul.f32 %v741, %v756
      %v758 = vadd.f32 %v757, 0.112945676
      %v759 = vmul.f32 %v741, %v758
      %v760 = vadd.f32 %v759, 0.4994258
      %v761 = vmul.f32 %v741, %v760
      %v762 = vadd.f32 %v761, 1.0
      %v763 = vrcp.pop %v762
      %v764 = vmul.f32 %v762, %v763
      %v765 = vsub.f32 1.0, %v764
      %v766 = vmul.f32 %v763, %v765
      %v767 = vadd.f32 %v763, %v766
      %vm768 = vweird.f32 %v762
      %vm769 = vweird.f32 %v763
      %vm770 = vmor %vm768, %vm769
      %v771 = vsel %vm770, %v763, %v767
      %v772 = vand.u32 2147483647, %v762
      %vm773 = vcmp.eq.f32.partialorder %v772, 8.507059e+37
      %v774 = vand.u32 %v762, 2147483648
      %v775 = vor.u32 1.1754944e-38, %v774
      %v776 = vsel %vm773, %v775, %v771
      %v777 = vmul.f32 %v752, %v776
      %v778 = vmin.f32 %v777, 1.0
      %v779 = vmax.f32 %v778, -1.0
      %v780 = vmul.f32 %v378, %v378
      %v781 = vmin.f32 16.0, %v780
      %v782 = vmul.f32 %v781, 2.1237322e-06
      %v783 = vadd.f32 %v782, 0.00028619796
      %v784 = vmul.f32 %v781, %v783
      %v785 = vadd.f32 %v784, 0.0036580483
      %v786 = vmul.f32 %v781, %v785
      %v787 = vadd.f32 %v786, 0.05243302
      %v788 = vmul.f32 %v781, %v787
      %v789 = vadd.f32 %v788, 0.18741608
      %v790 = vmul.f32 %v781, %v789
      %v791 = vadd.f32 %v790, 1.1283791
      %v792 = vmul.f32 %v378, %v791
      %v793 = vmul.f32 %v781, 3.8918573e-05
      %v794 = vadd.f32 %v793, 0.001143296
      %v795 = vmul.f32 %v781, %v794
      %v796 = vadd.f32 %v795, 0.014752088
      %v797 = vmul.f32 %v781, %v796
      %v798 = vadd.f32 %v797, 0.112945676
      %v799 = vmul.f32 %v781, %v798
      %v800 = vadd.f32 %v799, 0.4994258
      %v801 = vmul.f32 %v781, %v800
      %v802 = vadd.f32 %v801, 1.0
      %v803 = vrcp.pop %v802
      %v804 = vmul.f32 %v802, %v803
      %v805 = vsub.f32 1.0, %v804
      %v806 = vmul.f32 %v803, %v805
      %v807 = vadd.f32 %v803, %v806
      %vm808 = vweird.f32 %v802
      %vm809 = vweird.f32 %v803
      %vm810 = vmor %vm808, %vm809
      %v811 = vsel %vm810, %v803, %v807
      %v812 = vand.u32 2147483647, %v802
      %vm813 = vcmp.eq.f32.partialorder %v812, 8.507059e+37
      %v814 = vand.u32 %v802, 2147483648
      %v815 = vor.u32 1.1754944e-38, %v814
      %v816 = vsel %vm813, %v815, %v811
      %v817 = vmul.f32 %v792, %v816
      %v818 = vmin.f32 %v817, 1.0
      %v819 = vmax.f32 %v818, -1.0
      %v820 = vmul.f32 %v379, %v379
      %v821 = vmin.f32 16.0, %v820
      %v822 = vmul.f32 %v821, 2.1237322e-06
      %v823 = vadd.f32 %v822, 0.00028619796
      %v824 = vmul.f32 %v821, %v823
      %v825 = vadd.f32 %v824, 0.0036580483
      %v826 = vmul.f32 %v821, %v825
      %v827 = vadd.f32 %v826, 0.05243302
      %v828 = vmul.f32 %v821, %v827
      %v829 = vadd.f32 %v828, 0.18741608
      %v830 = vmul.f32 %v821, %v829
      %v831 = vadd.f32 %v830, 1.1283791
      %v832 = vmul.f32 %v379, %v831
      %v833 = vmul.f32 %v821, 3.8918573e-05
      %v834 = vadd.f32 %v833, 0.001143296
      %v835 = vmul.f32 %v821, %v834
      %v836 = vadd.f32 %v835, 0.014752088
      %v837 = vmul.f32 %v821, %v836
      %v838 = vadd.f32 %v837, 0.112945676
      %v839 = vmul.f32 %v821, %v838
      %v840 = vadd.f32 %v839, 0.4994258
      %v841 = vmul.f32 %v821, %v840
      %v842 = vadd.f32 %v841, 1.0
      %v843 = vrcp.pop %v842
      %v844 = vmul.f32 %v842, %v843
      %v845 = vsub.f32 1.0, %v844
      %v846 = vmul.f32 %v843, %v845
      %v847 = vadd.f32 %v843, %v846
      %vm848 = vweird.f32 %v842
      %vm849 = vweird.f32 %v843
      %vm850 = vmor %vm848, %vm849
      %v851 = vsel %vm850, %v843, %v847
      %v852 = vand.u32 2147483647, %v842
      %vm853 = vcmp.eq.f32.partialorder %v852, 8.507059e+37
      %v854 = vand.u32 %v842, 2147483648
      %v855 = vor.u32 1.1754944e-38, %v854
      %v856 = vsel %vm853, %v855, %v851
      %v857 = vmul.f32 %v832, %v856
      %v858 = vmin.f32 %v857, 1.0
      %v859 = vmax.f32 %v858, -1.0
      %v860 = vadd.f32 %v419, 1.0
      %v861 = vadd.f32 %v459, 1.0
      %v862 = vadd.f32 %v499, 1.0
      %v863 = vadd.f32 %v539, 1.0
      %v864 = vadd.f32 %v579, 1.0
      %v865 = vadd.f32 %v619, 1.0
      %v866 = vadd.f32 %v659, 1.0
      %v867 = vadd.f32 %v699, 1.0
      %v868 = vadd.f32 %v739, 1.0
      %v869 = vadd.f32 %v779, 1.0
      %v870 = vadd.f32 %v819, 1.0
      %v871 = vadd.f32 %v859, 1.0
      %v872 = vmul.f32 %v356, %v860
      %v873 = vmul.f32 %v357, %v861
      %v874 = vmul.f32 %v358, %v862
      %v875 = vmul.f32 %v359, %v863
      %v876 = vmul.f32 %v360, %v864
      %v877 = vmul.f32 %v361, %v865
      %v878 = vmul.f32 %v362, %v866
      %v879 = vmul.f32 %v363, %v867
      %v880 = vmul.f32 %v364, %v868
      %v881 = vmul.f32 %v365, %v869
      %v882 = vmul.f32 %v366, %v870
      %v883 = vmul.f32 %v367, %v871
      %v884 = vld [vmem:[%s3] sm:$0x1]
      %v885 = vld [vmem:[#allocation2] sm:$0x1]
      %887 = vset.pattern.permute.xlu0 0
      %888 = vperm.xlu0 %887, %v885
      %v889 = vpop.permute.xlu0 %888
      %v891 = vperm.slane %v889, 0
      %vm892 = vcmask 261120
      %v894 = vsel %vm892, %v884, 0
      %896 = vmatpush.msra.mxu0 0.0
      %897 = vmatpush.msra.mxu0 0.0
      %898 = vmatpush.msra.mxu0 0.0
      %899 = vmatpush.msra.mxu0 0.0
      %900 = vmatpush.msra.mxu0 0.0
      %901 = vmatpush.msra.mxu0 0.0
      %902 = vmatpush.msra.mxu0 0.0
      %903 = vmatpush.msra.mxu0 0.0
      %904 = vmatpush.msra.mxu0 0.0
      %905 = vmatpush.msra.mxu0 0.0
      %906 = vmatpush.msra.mxu0 0.0
      %907 = vmatpush.msra.mxu0 0.0
      %908 = vmatpush.msra.mxu0 %v881
      %909 = vmatpush.msra.mxu0 %v878
      %910 = vmatpush.msra.mxu0 %v875
      %911 = vmatpush.msra.mxu0 %v872
      %912 = vmatmul.f32.gmra.mxu0 %v894
      %v913 = vpop.f32.mrf.mxu0
      %v914 = vadd.f32 %v891, %v913
      %915 = vdwg.mxu0
      %916 = vmatpush.msra.mxu0 0.0
      %917 = vmatpush.msra.mxu0 0.0
      %918 = vmatpush.msra.mxu0 0.0
      %919 = vmatpush.msra.mxu0 0.0
      %920 = vmatpush.msra.mxu0 0.0
      %921 = vmatpush.msra.mxu0 0.0
      %922 = vmatpush.msra.mxu0 0.0
      %923 = vmatpush.msra.mxu0 0.0
      %924 = vmatpush.msra.mxu0 0.0
      %925 = vmatpush.msra.mxu0 0.0
      %926 = vmatpush.msra.mxu0 0.0
      %927 = vmatpush.msra.mxu0 0.0
      %928 = vmatpush.msra.mxu0 %v882
      %929 = vmatpush.msra.mxu0 %v879
      %930 = vmatpush.msra.mxu0 %v876
      %931 = vmatpush.msra.mxu0 %v873
      %932 = vmatmul.f32.gmra.mxu0 %v894
      %v933 = vpop.f32.mrf.mxu0
      %v934 = vadd.f32 %v891, %v933
      %935 = vdwg.mxu0
      %936 = vmatpush.msra.mxu0 0.0
      %937 = vmatpush.msra.mxu0 0.0
      %938 = vmatpush.msra.mxu0 0.0
      %939 = vmatpush.msra.mxu0 0.0
      %940 = vmatpush.msra.mxu0 0.0
      %941 = vmatpush.msra.mxu0 0.0
      %942 = vmatpush.msra.mxu0 0.0
      %943 = vmatpush.msra.mxu0 0.0
      %944 = vmatpush.msra.mxu0 0.0
      %945 = vmatpush.msra.mxu0 0.0
      %946 = vmatpush.msra.mxu0 0.0
      %947 = vmatpush.msra.mxu0 0.0
      %948 = vmatpush.msra.mxu0 %v883
      %949 = vmatpush.msra.mxu0 %v880
      %950 = vmatpush.msra.mxu0 %v877
      %951 = vmatpush.msra.mxu0 %v874
      %952 = vmatmul.f32.gmra.mxu0 %v894
      %v953 = vpop.f32.mrf.mxu0
      %v954 = vadd.f32 %v891, %v953
      %955 = vdwg.mxu0
      %v959 = vrot.slane %v934, 7
      %v960 = vrot.slane %v954, 6
      %vm961 = vcmask 1040384
      %v962 = vsel %vm961, %v914, %v959
      %vm963 = vcmask 1041408
      %v964 = vsel %vm963, %v962, %v960
      %v966 = vlaneseq
      %vm967 = vcmp.ge.s32.totalorder %v966, 0
      %vm968 = vcmp.lt.s32.totalorder %v966, 384
      %vm969 = vmand %vm967, %vm968
      %970 = vst.msk [vmem:[%s224] sm:$0x7] %vm969, %v964
      %p971 = scmp.lt.s32.totalorder %s18, 1
      %s972 = scalar_select %p971, %s18, 1
      %s973 = smul.addr %s972, 3
      %s974 = scalar_lea.vmem %s5, %s973
      // Predicated region
      $region41: #{fno_forward.5} parent=39 // pred_check
        %p975 = pneg %p146
      $region42: #{fno_forward.5} parent=39 // pred_check_branch
        %977 = sbr.rel (%p975) target = $region44
      $region43: #{fno_forward.5} parent=39 // pred_region
        _
      $region44: #{fno_forward.5} parent=39 // pred_fallthru
        _
    $region40: #{fno_forward.5} parent=5 // pred_fallthru
      _
    %p978 = scmp.le.s32.totalorder 2, %s13
    // Predicated region
    $region45: #{fno_forward.5} parent=5 // pred_check
      %p979 = pneg %p978
    $region46: #{fno_forward.5} parent=5 // pred_check_branch
      %981 = sbr.rel (%p979) target = $region48
    $region47: #{fno_forward.5} parent=5 // pred_region
      %s982 = ssub.s32 %s13, 2
      // Predicated region
      $region49: #{fno_forward.5} parent=47 // pred_check
        %p983 = pneg %p152
      $region50: #{fno_forward.5} parent=47 // pred_check_branch
        %985 = sbr.rel (%p983) target = $region52
      $region51: #{fno_forward.5} parent=47 // pred_region
        %p986 = scmp.lt.s32.totalorder %s19, 1
        %s987 = scalar_select %p986, %s19, 1
        %s988 = smul.addr %s987, 3
        %s989 = scalar_lea.vmem %s5, %s988
      $region52: #{fno_forward.5} parent=47 // pred_fallthru
        _
    $region48: #{fno_forward.5} parent=5 // pred_fallthru
      _
  $region6: #{fno_forward.5} parent=0 // loop_footer
    %s17 = sadd.s32 1, %s13
  $region7: #{fno_forward.5} parent=0 // loop_footer_branch
    %12 = sbr.rel target = $region3
  $region8: #{fno_forward.5} parent=0 // loop_exit
    _

</llo_original>
